<compile_context>
chip_gen: v6e
topology: v6e:2x2x1
jax: 0.10.0
libtpu: 0.0.40
codegen_flags: <defaults>
</compile_context>

<pallas_src>
import functools

import numpy as np
import jax
import jax.numpy as jnp
from jax import lax
from jax.experimental import pallas as pl
from jax.experimental.pallas import tpu as pltpu


def _erf_approx(x):
    # Abramowitz & Stegun 7.1.26 (max abs err ~1.5e-7) — guarantees Mosaic lowering.
    a1, a2, a3, a4, a5 = 0.254829592, -0.284496736, 1.421413741, -1.453152027, 1.061405429
    p = 0.3275911
    sgn = jnp.where(x >= 0.0, 1.0, -1.0)
    ax = jnp.abs(x)
    t = 1.0 / (1.0 + p * ax)
    poly = t * (a1 + t * (a2 + t * (a3 + t * (a4 + t * a5))))
    return sgn * (1.0 - poly * jnp.exp(-ax * ax))


def _gelu_exact(x):
    return 0.5 * x * (1.0 + _erf_approx(x * (1.0 / np.sqrt(2.0))))


def _split_hi_lo_bf16(x_f32):
    """f32 -> bf16 hi + bf16 lo; two single-pass bf16 MXU dots reproduce the f32 x
    {exact-bf16} product to ~2^-17 relative."""
    hi = x_f32.astype(jnp.bfloat16)
    lo = (x_f32 - hi.astype(jnp.float32)).astype(jnp.bfloat16)
    return hi, lo


def _scatter_messages_kernel(
        q_ref, k_ref, v_ref, ef_ref, ev_ref, rowv_ref, sblk_ref,   # tiled / resident inputs
        out_ref,                                                   # [N, 4*dim] per-core partial
        iota_ref,                                                  # int32 [tile_e, N] scratch
        *, precise_scatter):
    t = pl.program_id(1)
    DEF = lax.Precision.DEFAULT

    # first edge-tile handled by this core: zero its partial accumulator, fill iota once
    @pl.when(t == 0)
    def _init():
        out_ref[...] = jnp.zeros_like(out_ref)
        iota_ref[...] = lax.broadcasted_iota(jnp.int32, iota_ref.shape, 1)

    q = q_ref[...]                      # [T, dim] pre-gathered q[row]
    k = k_ref[...]                      # [T, dim] pre-gathered k[col]
    v = v_ref[...]                      # [T, dim] pre-gathered v[col]

    # per-head sum(q*k) broadcast back to [T, dim] via bf16 0/1 block matrix on the MXU
    # (hi/lo split -> ~f32-exact logits; this dot is tiny compared to the scatter).
    prod = q * k
    p_hi, p_lo = _split_hi_lo_bf16(prod)
    sblk = sblk_ref[...]                # [dim, dim] bf16, S[d1,d2] = (d1//Dh == d2//Dh)
    s_full = (jnp.dot(p_hi, sblk, precision=DEF, preferred_element_type=jnp.float32)
              + jnp.dot(p_lo, sblk, precision=DEF, preferred_element_type=jnp.float32))

    attn = _gelu_exact(s_full)          # radial already folded into ef in the wrapper
    m_feat = v * ef_ref[...] * attn     # [T, dim]

    ev = ev_ref[...]                    # [T, 3] edge_vec
    # lane-dense [T, 4*dim] message slab: feat | vec_x | vec_y | vec_z
    msgs = jnp.concatenate(
        [m_feat, v * ev[:, 0:1], v * ev[:, 1:2], v * ev[:, 2:3]], axis=1)

    # batched scatter-add over `row`: one-hot^T MXU dot into the resident partial acc
    oh = (rowv_ref[...] == iota_ref[...]).astype(jnp.bfloat16)       # [T, N] exact in bf16
    dn = (((0,), (0,)), ((), ()))                                    # contract edge axis
    if precise_scatter:
        m_hi, m_lo = _split_hi_lo_bf16(msgs)
        upd = (lax.dot_general(oh, m_hi, dn, precision=DEF, preferred_element_type=jnp.float32)
               + lax.dot_general(oh, m_lo, dn, precision=DEF, preferred_element_type=jnp.float32))
    else:
        upd = lax.dot_general(oh, msgs.astype(jnp.bfloat16), dn, precision=DEF,
                              preferred_element_type=jnp.float32)
    out_ref[...] += upd


@functools.partial(jax.jit, static_argnames=("natoms", "num_heads", "tile_e",
                                              "num_partials", "precise_scatter"))
def _linear_attn_first_impl(node_feat, edge_feat, edge_vec, row, col, radial,
                            gamma, beta, w_qkv, b_qkv, w_out, b_out,
                            *, natoms, num_heads, tile_e, num_partials, precise_scatter):
    dim = node_feat.shape[-1]
    dph = dim // num_heads
    E = row.shape[0]
    HI = lax.Precision.HIGHEST

    # ---- LayerNorm + qkv projection + per-edge gathers (small O(N*dim^2)/O(E*dim)
    #      work, done in XLA per the perf review; kernel keeps the O(E*N) scatter) ----
    x = node_feat.astype(jnp.float32)
    mean = jnp.mean(x, -1, keepdims=True)
    xc = x - mean
    var = jnp.mean(xc * xc, -1, keepdims=True)
    xn = xc * lax.rsqrt(var + 1e-5) * gamma.astype(jnp.float32) + beta.astype(jnp.float32)
    qkv = jnp.dot(xn, jnp.transpose(w_qkv).astype(jnp.float32), precision=HI) \
        + b_qkv.astype(jnp.float32)
    qkv = qkv.reshape(natoms, num_heads, 3 * dph)
    q_tab = qkv[..., :dph].reshape(natoms, dim)            # head-major [N, dim]
    k_tab = qkv[..., dph:2 * dph].reshape(natoms, dim)
    v_tab = qkv[..., 2 * dph:].reshape(natoms, dim)

    row_i = row.astype(jnp.int32)
    col_i = col.astype(jnp.int32)
    q_row = jnp.take(q_tab, row_i, axis=0)                 # [E, dim]
    k_col = jnp.take(k_tab, col_i, axis=0)
    v_col = jnp.take(v_tab, col_i, axis=0)

    # fold radial into edge_feat (review item: one fewer VPU multiply per tile)
    ef = edge_feat.reshape(E, dim).astype(jnp.float32) * radial.reshape(E, 1).astype(jnp.float32)
    ev = edge_vec.astype(jnp.float32)                      # [E, 3]

    # ---- edge tiling: split tiles across `num_partials` core-parallel blocks ----
    n_tiles = max(1, -(-E // tile_e))
    tiles_per_partial = max(1, -(-n_tiles // num_partials))
    E_pad = num_partials * tiles_per_partial * tile_e
    pad_e = E_pad - E

    def _pad_edges(a):
        return jnp.pad(a, ((0, pad_e),) + ((0, 0),) * (a.ndim - 1))

    q_row, k_col, v_col, ef, ev = map(_pad_edges, (q_row, k_col, v_col, ef, ev))
    rowv = _pad_edges(row_i).reshape(E_pad, 1)             # padded edges: zero messages -> node 0

    # per-head block-broadcast matrix, hoisted, bf16 (0/1 exact)
    d_i = np.arange(dim)
    s_blk = jnp.asarray((d_i[:, None] // dph == d_i[None, :] // dph).astype(np.float32),
                        dtype=jnp.bfloat16)

    # ---- VMEM budget: double-buffered lane-padded tiles + output block + temps ----
    lane = 128
    lp = lambda c: -(-c // lane) * lane
    in_b = 2 * tile_e * 4 * (4 * lp(dim) + lp(3) + lp(1))          # q,k,v,ef,ev,rowv (x2 buf)
    in_b += 2 * dim * lp(dim) * 2                                  # sblk bf16 (x2 buf)
    out_b = 2 * natoms * lp(4 * dim) * 4                           # resident partial block
    scr_b = tile_e * lp(natoms) * 4                                # iota scratch
    tmp_b = tile_e * lp(natoms) * 2 + 16 * tile_e * lp(dim) * 4    # one-hot + message temps
    vmem_limit = int(min(max(2 * (in_b + out_b + scr_b + tmp_b), 32 * 2 ** 20), 48 * 2 ** 20))

    tpp = tiles_per_partial
    edge_map = lambda c, t: (c * tpp + t, 0)

    grid_spec = pltpu.PrefetchScalarGridSpec(
        num_scalar_prefetch=0,
        grid=(num_partials, tiles_per_partial),
        in_specs=[
            pl.BlockSpec((tile_e, dim), edge_map),            # q[row] tile
            pl.BlockSpec((tile_e, dim), edge_map),            # k[col] tile
            pl.BlockSpec((tile_e, dim), edge_map),            # v[col] tile
            pl.BlockSpec((tile_e, dim), edge_map),            # edge_feat * radial tile
            pl.BlockSpec((tile_e, 3), edge_map),              # edge_vec tile
            pl.BlockSpec((tile_e, 1), edge_map),              # row (scatter index) tile
            pl.BlockSpec((dim, dim), lambda c, t: (0, 0)),    # per-head block matrix (resident)
        ],
        out_specs=pl.BlockSpec((None, natoms, 4 * dim), lambda c, t: (c, 0, 0)),
        scratch_shapes=[pltpu.VMEM((tile_e, natoms), jnp.int32)],
    )

    kernel = functools.partial(_scatter_messages_kernel, precise_scatter=precise_scatter)
    partials = pl.pallas_call(
        kernel,
        out_shape=jax.ShapeDtypeStruct((num_partials, natoms, 4 * dim), jnp.float32),
        grid_spec=grid_spec,
        compiler_params=pltpu.CompilerParams(
            dimension_semantics=("parallel", "arbitrary"),    # core-parallel, edge reduction
            vmem_limit_bytes=vmem_limit),
    )(q_row, k_col, v_col, ef, ev, rowv, s_blk)

    acc = jnp.sum(partials, axis=0)                           # combine per-core partials
    feat = jnp.dot(acc[:, :dim], jnp.transpose(w_out).astype(jnp.float32), precision=HI) \
        + b_out.astype(jnp.float32)                           # output projection (wrapper-side)
    vec = acc[:, dim:].reshape(natoms, 3, dim)
    return feat, vec


def linear_attn_first(node_feat, edge_feat, edge_vec, row, col, radial, natoms,
                      gamma, beta, w_qkv, b_qkv, w_out, b_out, num_heads,
                      tile_e=256, num_partials=2, precise_scatter=False):
    """Pallas wrapper.  PyTorch-layout parameters (Linear weight is [out, in]).

    tile_e: edge tile (256 fills the 256-deep MXU on v6e/v7x; use 512 on v6e).
    num_partials: core-parallel partial accumulators (2 for v7x's two TensorCores).
    precise_scatter: hi/lo-split scatter dots (~2^-17 accuracy) at 2x MXU scatter cost.
    """
    return _linear_attn_first_impl(node_feat, edge_feat, edge_vec, row, col, radial,
                                   gamma, beta, w_qkv, b_qkv, w_out, b_out,
                                   natoms=natoms, num_heads=num_heads, tile_e=tile_e,
                                   num_partials=num_partials, precise_scatter=precise_scatter)


def reference(node_feat, edge_feat, edge_vec, row, col, radial, natoms,
              gamma, beta, w_qkv, b_qkv, w_out, b_out, num_heads):
    """Pure-JAX mirror of the PyTorch forward (exact erf GELU)."""
    dim = node_feat.shape[-1]
    dph = dim // num_heads
    mean = jnp.mean(node_feat, -1, keepdims=True)
    var = jnp.mean((node_feat - mean) ** 2, -1, keepdims=True)
    xn = (node_feat - mean) / jnp.sqrt(var + 1e-5) * gamma + beta
    qkv = xn @ w_qkv.T + b_qkv
    qkv = qkv.reshape(qkv.shape[:-1] + (num_heads, 3 * dph))
    q, k, v = qkv[..., :dph], qkv[..., dph:2 * dph], qkv[..., 2 * dph:]
    q_row, k_col, v_col = q[row], k[col], v[col]
    attn = jax.nn.gelu(jnp.sum(q_row * k_col, -1), approximate=False) * radial[:, None]
    m_feat = v_col * edge_feat * attn[..., None]
    m_feat = jnp.zeros((natoms, num_heads, dph)).at[row].add(m_feat)
    m_feat = m_feat.reshape(natoms, dim)
    m_vec = v_col[:, None, :, :] * edge_vec[:, :, None, None]
    m_vec = jnp.zeros((natoms, 3, num_heads, dph)).at[row].add(m_vec)
    delta_node_vec = m_vec.reshape(natoms, 3, dim)
    delta_node_feat = m_feat @ w_out.T + b_out
    return delta_node_feat, delta_node_vec


if __name__ == "__main__":
    # Keeps the pure-JAX reference f32-accurate; the kernel/wrapper pass explicit
    # per-dot precision so this does not change what they execute.
    jax.config.update("jax_default_matmul_precision", "float32")

    # E >> tile_e and not a multiple of it: exercises multi-tile accumulation, padding
    # and both core-parallel partial blocks (tile_e=256, num_partials=2 -> 4 grid steps).
    N, E, dim, H = 16, 600, 64, 16
    Dh = dim // H

    key = jax.random.PRNGKey(0)
    ks = jax.random.split(key, 12)
    node_feat = jax.random.normal(ks[0], (N, dim), jnp.float32)
    edge_feat = jax.random.normal(ks[1], (E, H, Dh), jnp.float32)
    edge_vec = jax.random.normal(ks[2], (E, 3), jnp.float32)
    row = jax.random.randint(ks[3], (E,), 0, N)
    col = jax.random.randint(ks[4], (E,), 0, N)
    radial = jax.random.uniform(ks[5], (E,), jnp.float32)

    w_qkv = 0.1 * jax.random.normal(ks[6], (3 * dim, dim), jnp.float32)
    b_qkv = 0.1 * jax.random.normal(ks[7], (3 * dim,), jnp.float32)
    w_out = 0.1 * jax.random.normal(ks[8], (dim, dim), jnp.float32)
    b_out = 0.1 * jax.random.normal(ks[9], (dim,), jnp.float32)
    gamma = 1.0 + 0.1 * jax.random.normal(ks[10], (dim,), jnp.float32)
    beta = 0.1 * jax.random.normal(ks[11], (dim,), jnp.float32)

    ref_feat, ref_vec = reference(node_feat, edge_feat, edge_vec, row, col, radial, N,
                                  gamma, beta, w_qkv, b_qkv, w_out, b_out, num_heads=H)

    # Fast path (default): single bf16 scatter dot -> accuracy floor ~2^-9 per message.
    feat, vec = linear_attn_first(node_feat, edge_feat, edge_vec, row, col, radial, N,
                                  gamma, beta, w_qkv, b_qkv, w_out, b_out, num_heads=H)
    jax.block_until_ready((feat, vec))
    assert feat.shape == (N, dim) and vec.shape == (N, 3, dim)
    assert jnp.allclose(feat, ref_feat, atol=3e-2, rtol=3e-2), "delta_node_feat mismatch (fast)"
    assert jnp.allclose(vec, ref_vec, atol=3e-2, rtol=3e-2), "delta_node_vec mismatch (fast)"

    # Precise path: hi/lo split scatter -> ~f32-accurate.
    feat_p, vec_p = linear_attn_first(node_feat, edge_feat, edge_vec, row, col, radial, N,
                                      gamma, beta, w_qkv, b_qkv, w_out, b_out, num_heads=H,
                                      precise_scatter=True)
    jax.block_until_ready((feat_p, vec_p))
    assert jnp.allclose(feat_p, ref_feat, atol=1e-3, rtol=1e-3), "delta_node_feat mismatch (precise)"
    assert jnp.allclose(vec_p, ref_vec, atol=1e-3, rtol=1e-3), "delta_node_vec mismatch (precise)"

    print("KERNEL_OK")
</pallas_src>

<mosaic_0001>
module attributes {stable_mosaic.version = 11 : i64} {
  func.func @_scatter_messages_kernel(%arg0: i32, %arg1: i32, %arg2: memref<256x64xf32, #tpu.memory_space<vmem>>, %arg3: memref<256x64xf32, #tpu.memory_space<vmem>>, %arg4: memref<256x64xf32, #tpu.memory_space<vmem>>, %arg5: memref<256x64xf32, #tpu.memory_space<vmem>>, %arg6: memref<256x3xf32, #tpu.memory_space<vmem>>, %arg7: memref<256x1xi32, #tpu.memory_space<vmem>>, %arg8: memref<64x64xbf16, #tpu.memory_space<vmem>>, %arg9: memref<1x16x256xf32, #tpu.memory_space<vmem>>, %arg10: memref<256x16xi32, #tpu.memory_space<vmem>>) attributes {dimension_semantics = [#tpu.dimension_semantics<parallel>, #tpu.dimension_semantics<arbitrary>], iteration_bounds = array<i64: 2, 2>, scalar_prefetch = 0 : i64, scratch_operands = 1 : i64, tpu.core_type = #tpu.core_type<tc>, window_params = [{transform_indices = @transform_0, window_bounds = array<i64: 256, 64>}, {transform_indices = @transform_1, window_bounds = array<i64: 256, 64>}, {transform_indices = @transform_2, window_bounds = array<i64: 256, 64>}, {transform_indices = @transform_3, window_bounds = array<i64: 256, 64>}, {transform_indices = @transform_4, window_bounds = array<i64: 256, 3>}, {transform_indices = @transform_5, window_bounds = array<i64: 256, 1>}, {pipeline_mode = #tpu.pipeline_mode<synchronous>, transform_indices = @transform_6, window_bounds = array<i64: 64, 64>}, {transform_indices = @transform_7, window_bounds = array<i64: 1, 16, 256>}]} {
    %c0_i32 = arith.constant 0 : i32
    %0 = arith.cmpi eq, %arg1, %c0_i32 : i32
    %1 = arith.extui %0 : i1 to i32
    %c0_i32_0 = arith.constant 0 : i32
    %2 = arith.cmpi ne, %1, %c0_i32_0 : i32
    scf.if %2 {
      %cst_40 = arith.constant 0.000000e+00 : f32
      %85 = vector.broadcast %cst_40 : f32 to vector<16x256xf32>
      %c0_41 = arith.constant 0 : index
      %c0_42 = arith.constant 0 : index
      %c0_43 = arith.constant 0 : index
      %86 = vector.load %arg9[%c0_41, %c0_42, %c0_43] : memref<1x16x256xf32, #tpu.memory_space<vmem>>, vector<1x16x256xf32>
      %87 = vector.shape_cast %86 : vector<1x16x256xf32> to vector<16x256xf32>
      %88 = vector.shape_cast %85 : vector<16x256xf32> to vector<1x16x256xf32>
      tpu.vector_store %arg9[%c0_41, %c0_42, %c0_43], %88 {strides = array<i32>} : memref<1x16x256xf32, #tpu.memory_space<vmem>>, vector<1x16x256xf32>,
      %89 = tpu.iota {dimensions = array<i32: 1>} : vector<256x16xi32>
      %c0_44 = arith.constant 0 : index
      %c0_45 = arith.constant 0 : index
      %90 = vector.load %arg10[%c0_44, %c0_45] : memref<256x16xi32, #tpu.memory_space<vmem>>, vector<256x16xi32>
      tpu.vector_store %arg10[%c0_44, %c0_45], %89 {strides = array<i32>} : memref<256x16xi32, #tpu.memory_space<vmem>>, vector<256x16xi32>,
    } else {
    }
    %c0 = arith.constant 0 : index
    %c0_1 = arith.constant 0 : index
    %3 = vector.load %arg2[%c0, %c0_1] : memref<256x64xf32, #tpu.memory_space<vmem>>, vector<256x64xf32>
    %c0_2 = arith.constant 0 : index
    %c0_3 = arith.constant 0 : index
    %4 = vector.load %arg3[%c0_2, %c0_3] : memref<256x64xf32, #tpu.memory_space<vmem>>, vector<256x64xf32>
    %c0_4 = arith.constant 0 : index
    %c0_5 = arith.constant 0 : index
    %5 = vector.load %arg4[%c0_4, %c0_5] : memref<256x64xf32, #tpu.memory_space<vmem>>, vector<256x64xf32>
    %6 = arith.mulf %3, %4 : vector<256x64xf32>
    %7 = arith.truncf %6 : vector<256x64xf32> to vector<256x64xbf16>
    %8 = arith.extf %7 : vector<256x64xbf16> to vector<256x64xf32>
    %9 = arith.subf %6, %8 : vector<256x64xf32>
    %10 = arith.truncf %9 : vector<256x64xf32> to vector<256x64xbf16>
    %c0_6 = arith.constant 0 : index
    %c0_7 = arith.constant 0 : index
    %11 = vector.load %arg8[%c0_6, %c0_7] : memref<64x64xbf16, #tpu.memory_space<vmem>>, vector<64x64xbf16>
    %cst = arith.constant dense<0.000000e+00> : vector<256x64xf32>
    %12 = tpu.matmul %7, %11, %cst {dimension_numbers = #tpu.dot_dimension_numbers<[1], [0], [0], [1], [0, 0, 1, 1], [], []>} : vector<256x64xbf16>, vector<64x64xbf16>, vector<256x64xf32> -> vector<256x64xf32>
    %cst_8 = arith.constant dense<0.000000e+00> : vector<256x64xf32>
    %13 = tpu.matmul %10, %11, %cst_8 {dimension_numbers = #tpu.dot_dimension_numbers<[1], [0], [0], [1], [0, 0, 1, 1], [], []>} : vector<256x64xbf16>, vector<64x64xbf16>, vector<256x64xf32> -> vector<256x64xf32>
    %14 = arith.addf %12, %13 : vector<256x64xf32>
    %cst_9 = arith.constant 5.000000e-01 : f32
    %15 = vector.broadcast %cst_9 : f32 to vector<256x64xf32>
    %16 = arith.mulf %15, %14 : vector<256x64xf32>
    %cst_10 = arith.constant 0.707106769 : f32
    %17 = vector.broadcast %cst_10 : f32 to vector<256x64xf32>
    %18 = arith.mulf %14, %17 : vector<256x64xf32>
    %cst_11 = arith.constant 0.000000e+00 : f32
    %19 = vector.broadcast %cst_11 : f32 to vector<256x64xf32>
    %20 = arith.cmpf oge, %18, %19 : vector<256x64xf32>
    %cst_12 = arith.constant 1.000000e+00 : f32
    %cst_13 = arith.constant -1.000000e+00 : f32
    %21 = vector.broadcast %cst_12 : f32 to vector<256x64xf32>
    %22 = vector.broadcast %cst_13 : f32 to vector<256x64xf32>
    %23 = arith.select %20, %21, %22 : vector<256x64xi1>, vector<256x64xf32>
    %24 = math.absf %18 : vector<256x64xf32>
    %cst_14 = arith.constant 0.327591091 : f32
    %25 = vector.broadcast %cst_14 : f32 to vector<256x64xf32>
    %26 = arith.mulf %25, %24 : vector<256x64xf32>
    %cst_15 = arith.constant 1.000000e+00 : f32
    %27 = vector.broadcast %cst_15 : f32 to vector<256x64xf32>
    %28 = arith.addf %27, %26 : vector<256x64xf32>
    %cst_16 = arith.constant 1.000000e+00 : f32
    %29 = vector.broadcast %cst_16 : f32 to vector<256x64xf32>
    %30 = arith.divf %29, %28 : vector<256x64xf32>
    %cst_17 = arith.constant 1.06140542 : f32
    %31 = vector.broadcast %cst_17 : f32 to vector<256x64xf32>
    %32 = arith.mulf %30, %31 : vector<256x64xf32>
    %cst_18 = arith.constant -1.45315206 : f32
    %33 = vector.broadcast %cst_18 : f32 to vector<256x64xf32>
    %34 = arith.addf %33, %32 : vector<256x64xf32>
    %35 = arith.mulf %30, %34 : vector<256x64xf32>
    %cst_19 = arith.constant 1.42141378 : f32
    %36 = vector.broadcast %cst_19 : f32 to vector<256x64xf32>
    %37 = arith.addf %36, %35 : vector<256x64xf32>
    %38 = arith.mulf %30, %37 : vector<256x64xf32>
    %cst_20 = arith.constant -0.284496725 : f32
    %39 = vector.broadcast %cst_20 : f32 to vector<256x64xf32>
    %40 = arith.addf %39, %38 : vector<256x64xf32>
    %41 = arith.mulf %30, %40 : vector<256x64xf32>
    %cst_21 = arith.constant 0.254829586 : f32
    %42 = vector.broadcast %cst_21 : f32 to vector<256x64xf32>
    %43 = arith.addf %42, %41 : vector<256x64xf32>
    %44 = arith.mulf %30, %43 : vector<256x64xf32>
    %cst_22 = arith.constant 0.000000e+00 : f32
    %45 = vector.broadcast %cst_22 : f32 to vector<256x64xf32>
    %46 = arith.subf %45, %24 : vector<256x64xf32>
    %47 = arith.mulf %46, %24 : vector<256x64xf32>
    %48 = math.exp %47 : vector<256x64xf32>
    %49 = arith.mulf %44, %48 : vector<256x64xf32>
    %cst_23 = arith.constant 1.000000e+00 : f32
    %50 = vector.broadcast %cst_23 : f32 to vector<256x64xf32>
    %51 = arith.subf %50, %49 : vector<256x64xf32>
    %52 = arith.mulf %23, %51 : vector<256x64xf32>
    %cst_24 = arith.constant 1.000000e+00 : f32
    %53 = vector.broadcast %cst_24 : f32 to vector<256x64xf32>
    %54 = arith.addf %53, %52 : vector<256x64xf32>
    %55 = arith.mulf %16, %54 : vector<256x64xf32>
    %c0_25 = arith.constant 0 : index
    %c0_26 = arith.constant 0 : index
    %56 = vector.load %arg5[%c0_25, %c0_26] : memref<256x64xf32, #tpu.memory_space<vmem>>, vector<256x64xf32>
    %57 = arith.mulf %5, %56 : vector<256x64xf32>
    %58 = arith.mulf %57, %55 : vector<256x64xf32>
    %c0_27 = arith.constant 0 : index
    %c0_28 = arith.constant 0 : index
    %59 = vector.load %arg6[%c0_27, %c0_28] : memref<256x3xf32, #tpu.memory_space<vmem>>, vector<256x3xf32>
    %60 = vector.extract_strided_slice %59 {offsets = [0, 0], sizes = [256, 1], strides = [1, 1]} : vector<256x3xf32> to vector<256x1xf32>
    %61 = vector.broadcast %60 : vector<256x1xf32> to vector<256x64xf32>
    %62 = arith.mulf %5, %61 : vector<256x64xf32>
    %63 = vector.extract_strided_slice %59 {offsets = [0, 1], sizes = [256, 1], strides = [1, 1]} : vector<256x3xf32> to vector<256x1xf32>
    %64 = vector.broadcast %63 : vector<256x1xf32> to vector<256x64xf32>
    %65 = arith.mulf %5, %64 : vector<256x64xf32>
    %66 = vector.extract_strided_slice %59 {offsets = [0, 2], sizes = [256, 1], strides = [1, 1]} : vector<256x3xf32> to vector<256x1xf32>
    %67 = vector.broadcast %66 : vector<256x1xf32> to vector<256x64xf32>
    %68 = arith.mulf %5, %67 : vector<256x64xf32>
    %69 = tpu.concatenate %58, %62, %65, %68 in 1 : vector<256x64xf32>, vector<256x64xf32>, vector<256x64xf32>, vector<256x64xf32> -> vector<256x256xf32>
    %c0_29 = arith.constant 0 : index
    %c0_30 = arith.constant 0 : index
    %70 = vector.load %arg7[%c0_29, %c0_30] : memref<256x1xi32, #tpu.memory_space<vmem>>, vector<256x1xi32>
    %c0_31 = arith.constant 0 : index
    %c0_32 = arith.constant 0 : index
    %71 = vector.load %arg10[%c0_31, %c0_32] : memref<256x16xi32, #tpu.memory_space<vmem>>, vector<256x16xi32>
    %72 = vector.broadcast %70 : vector<256x1xi32> to vector<256x16xi32>
    %73 = arith.cmpi eq, %72, %71 : vector<256x16xi32>
    %74 = arith.extui %73 : vector<256x16xi1> to vector<256x16xi32>
    %75 = arith.sitofp %74 : vector<256x16xi32> to vector<256x16xf32>
    %76 = arith.truncf %75 : vector<256x16xf32> to vector<256x16xbf16>
    %77 = arith.truncf %69 : vector<256x256xf32> to vector<256x256xbf16>
    %cst_33 = arith.constant dense<0.000000e+00> : vector<16x256xf32>
    %78 = tpu.matmul %76, %77, %cst_33 {dimension_numbers = #tpu.dot_dimension_numbers<[0], [0], [1], [1], [0, 1, 1, 1], [], []>} : vector<256x16xbf16>, vector<256x256xbf16>, vector<16x256xf32> -> vector<16x256xf32>
    %c0_34 = arith.constant 0 : index
    %c0_35 = arith.constant 0 : index
    %c0_36 = arith.constant 0 : index
    %79 = vector.load %arg9[%c0_34, %c0_35, %c0_36] : memref<1x16x256xf32, #tpu.memory_space<vmem>>, vector<1x16x256xf32>
    %80 = vector.shape_cast %79 : vector<1x16x256xf32> to vector<16x256xf32>
    %81 = arith.addf %80, %78 : vector<16x256xf32>
    %c0_37 = arith.constant 0 : index
    %c0_38 = arith.constant 0 : index
    %c0_39 = arith.constant 0 : index
    %82 = vector.load %arg9[%c0_37, %c0_38, %c0_39] : memref<1x16x256xf32, #tpu.memory_space<vmem>>, vector<1x16x256xf32>
    %83 = vector.shape_cast %82 : vector<1x16x256xf32> to vector<16x256xf32>
    %84 = vector.shape_cast %81 : vector<16x256xf32> to vector<1x16x256xf32>
    tpu.vector_store %arg9[%c0_37, %c0_38, %c0_39], %84 {strides = array<i32>} : memref<1x16x256xf32, #tpu.memory_space<vmem>>, vector<1x16x256xf32>,
    return
  }
  func.func @transform_0(%arg0: i32, %arg1: i32) -> (i32, i32) {
    %c2_i32 = arith.constant 2 : i32
    %0 = arith.muli %arg0, %c2_i32 : i32
    %1 = arith.addi %0, %arg1 : i32
    %c0_i32 = arith.constant 0 : i32
    %c0_i32_0 = arith.constant 0 : i32
    return %1, %c0_i32 : i32, i32
  }
  func.func @transform_1(%arg0: i32, %arg1: i32) -> (i32, i32) {
    %c2_i32 = arith.constant 2 : i32
    %0 = arith.muli %arg0, %c2_i32 : i32
    %1 = arith.addi %0, %arg1 : i32
    %c0_i32 = arith.constant 0 : i32
    %c0_i32_0 = arith.constant 0 : i32
    return %1, %c0_i32 : i32, i32
  }
  func.func @transform_2(%arg0: i32, %arg1: i32) -> (i32, i32) {
    %c2_i32 = arith.constant 2 : i32
    %0 = arith.muli %arg0, %c2_i32 : i32
    %1 = arith.addi %0, %arg1 : i32
    %c0_i32 = arith.constant 0 : i32
    %c0_i32_0 = arith.constant 0 : i32
    return %1, %c0_i32 : i32, i32
  }
  func.func @transform_3(%arg0: i32, %arg1: i32) -> (i32, i32) {
    %c2_i32 = arith.constant 2 : i32
    %0 = arith.muli %arg0, %c2_i32 : i32
    %1 = arith.addi %0, %arg1 : i32
    %c0_i32 = arith.constant 0 : i32
    %c0_i32_0 = arith.constant 0 : i32
    return %1, %c0_i32 : i32, i32
  }
  func.func @transform_4(%arg0: i32, %arg1: i32) -> (i32, i32) {
    %c2_i32 = arith.constant 2 : i32
    %0 = arith.muli %arg0, %c2_i32 : i32
    %1 = arith.addi %0, %arg1 : i32
    %c0_i32 = arith.constant 0 : i32
    %c0_i32_0 = arith.constant 0 : i32
    return %1, %c0_i32 : i32, i32
  }
  func.func @transform_5(%arg0: i32, %arg1: i32) -> (i32, i32) {
    %c2_i32 = arith.constant 2 : i32
    %0 = arith.muli %arg0, %c2_i32 : i32
    %1 = arith.addi %0, %arg1 : i32
    %c0_i32 = arith.constant 0 : i32
    %c0_i32_0 = arith.constant 0 : i32
    return %1, %c0_i32 : i32, i32
  }
  func.func @transform_6(%arg0: i32, %arg1: i32) -> (i32, i32) {
    %c0_i32 = arith.constant 0 : i32
    %c0_i32_0 = arith.constant 0 : i32
    %c0_i32_1 = arith.constant 0 : i32
    return %c0_i32, %c0_i32_0 : i32, i32
  }
  func.func @transform_7(%arg0: i32, %arg1: i32) -> (i32, i32, i32) {
    %c0_i32 = arith.constant 0 : i32
    %c0_i32_0 = arith.constant 0 : i32
    %c0_i32_1 = arith.constant 0 : i32
    return %arg0, %c0_i32, %c0_i32_0 : i32, i32, i32
  }
}

</mosaic_0001>

<llo_original>
// kernel: _linear_attn_first_impl.1
$region0: #{_linear_attn_first_impl.1}
  #allocation0 [shape = 'u32[]', space=smem, size = 0x4, offset = 0x4, fixed_abs, tag = 'smem constant byte address 0x4 - core index']
  #allocation1 [shape = 'u32[144,128]{1,0:T(1,128)}', space=vmem, size = 0x12000, scoped, tag = 'internal scratch']
  #allocation2 [shape = 's32[256,16]{1,0:T(8,128)}', space=vmem, size = 0x20000, scoped, tag = 'scratch operand']
  %s0 = inlined_call_operand.vmem [shape: f32[1024,64], index: 0, kind: input, shape index: {}]
  %s1 = inlined_call_operand.vmem [shape: f32[1024,64], index: 1, kind: input, shape index: {}]
  %s2 = inlined_call_operand.vmem [shape: f32[1024,64], index: 2, kind: input, shape index: {}]
  %s3 = inlined_call_operand.vmem [shape: f32[1024,64], index: 3, kind: input, shape index: {}]
  %s4 = inlined_call_operand.vmem [shape: f32[1024,3], index: 4, kind: input, shape index: {}]
  %s5 = inlined_call_operand.vmem [shape: s32[1024,1], index: 5, kind: input, shape index: {}]
  %s6 = inlined_call_operand.vmem [shape: bf16[64,64], index: 6, kind: input, shape index: {}]
  %s7 = inlined_call_operand.vmem [shape: f32[2,16,256], index: 7, kind: output, shape index: {}]
  %s8 = sld [smem:[#allocation0]]
  $region65: #{_linear_attn_first_impl.1} parent=0
    _
  %s10 = ssub.s32 1, %s8
  %s11 = scalar_select 0, %s10, %s8
  loop: start=0, step=1, limit=6
  $region2: #{_linear_attn_first_impl.1} parent=0 // loop_pre_header
    _
  $region3: #{_linear_attn_first_impl.1} parent=0 // loop_header
    %s13 = sphi 0, %s17
    %p14 = scmp.ge.s32.totalorder %s13, 6
    %s20 = sphi 0, %s32
    %s21 = sphi 0, %s28
    %s22 = sphi 0, %s20
    %s23 = sphi 0, %s21
    %s24 = sphi 0, %s22
    %s25 = sphi 0, %s23
    %s39 = sphi 0, %s41
    %s42 = sphi 0, %s39
    %s43 = sphi 0, %s42
    %s59 = sphi 0, %s43
    %s69 = sphi 0, %s71
    %s72 = sphi 0, %s69
    %s73 = sphi 0, %s72
    %s89 = sphi 0, %s73
    %s99 = sphi 0, %s101
    %s102 = sphi 0, %s99
    %s103 = sphi 0, %s102
    %s119 = sphi 0, %s103
    %s129 = sphi 0, %s131
    %s132 = sphi 0, %s129
    %s133 = sphi 0, %s132
    %s149 = sphi 0, %s133
    %s159 = sphi 0, %s161
    %s162 = sphi 0, %s159
    %s163 = sphi 0, %s162
    %s179 = sphi 0, %s163
    %s189 = sphi 0, %s191
    %s192 = sphi 0, %s189
    %s193 = sphi 0, %s192
    %s209 = sphi 0, %s193
    %s213 = sphi 0, %s213
    %s215 = sphi 0, %s213
    %s216 = sphi 0, %s215
    %s230 = sphi 0, %s216
    %s236 = sphi 0, %s238
    %s239 = sphi 0, %s236
    %s240 = sphi 0, %s239
    %s256 = sphi 0, %s240
  $region4: #{_linear_attn_first_impl.1} parent=0 // loop_header_branch
    %16 = sbr.rel (%p14) target = $region8
  $region5: #{_linear_attn_first_impl.1} parent=0 // loop_body
    %s18 = ssub.s32 %s13, 1
    %s19 = ssub.s32 %s13, 2
    %s26 = sadd.s32 1, %s21
    %p27 = scmp.ge.s32.totalorder %s26, 2
    %s28 = scalar_select %p27, 0, %s26
    %s29 = sadd.s32 1, %s20
    %s30 = scalar_select %p27, %s29, %s20
    %p31 = scmp.ge.s32.totalorder %s30, 2
    %s32 = scalar_select %p31, 0, %s30
    %s33 = smul.u32 %s20, 2
    %s34 = sadd.s32 %s33, %s21
    %s35 = smul.u32 %s32, 2
    %s36 = sadd.s32 %s35, %s28
    %s37 = ssub.s32 %s34, %s36
    %p38 = scmp.eq.s32.totalorder %s37, 0
    %s40 = sadd.s32 %s39, 1
    %s41 = scalar_select %p38, %s39, %s40
    %p44 = pneg %p38
    %p45 = scmp.eq.s32.totalorder %s13, 3
    %p46 = por %p44, %p45
    %p47 = scmp.ne.s32.totalorder %s39, %s42
    %p48 = scmp.eq.s32.totalorder %s13, 0
    %p49 = por %p47, %p48
    %p50 = scmp.ne.s32.totalorder %s39, %s42
    %p51 = scmp.eq.s32.totalorder %s18, 3
    %p52 = por %p50, %p51
    %p53 = scmp.ne.s32.totalorder %s42, %s43
    %p54 = scmp.eq.s32.totalorder %s18, 0
    %p55 = por %p53, %p54
    %p56 = scmp.ne.s32.totalorder %s42, %s43
    %p57 = scmp.eq.s32.totalorder %s19, 3
    %p58 = por %p56, %p57
    %p60 = scmp.ne.s32.totalorder %s43, %s59
    %p61 = scmp.eq.s32.totalorder %s19, 0
    %p62 = por %p60, %p61
    %s63 = smul.u32 %s20, 2
    %s64 = sadd.s32 %s63, %s21
    %s65 = smul.u32 %s32, 2
    %s66 = sadd.s32 %s65, %s28
    %s67 = ssub.s32 %s64, %s66
    %p68 = scmp.eq.s32.totalorder %s67, 0
    %s70 = sadd.s32 %s69, 1
    %s71 = scalar_select %p68, %s69, %s70
    %p74 = pneg %p68
    %p75 = scmp.eq.s32.totalorder %s13, 3
    %p76 = por %p74, %p75
    %p77 = scmp.ne.s32.totalorder %s69, %s72
    %p78 = scmp.eq.s32.totalorder %s13, 0
    %p79 = por %p77, %p78
    %p80 = scmp.ne.s32.totalorder %s69, %s72
    %p81 = scmp.eq.s32.totalorder %s18, 3
    %p82 = por %p80, %p81
    %p83 = scmp.ne.s32.totalorder %s72, %s73
    %p84 = scmp.eq.s32.totalorder %s18, 0
    %p85 = por %p83, %p84
    %p86 = scmp.ne.s32.totalorder %s72, %s73
    %p87 = scmp.eq.s32.totalorder %s19, 3
    %p88 = por %p86, %p87
    %p90 = scmp.ne.s32.totalorder %s73, %s89
    %p91 = scmp.eq.s32.totalorder %s19, 0
    %p92 = por %p90, %p91
    %s93 = smul.u32 %s20, 2
    %s94 = sadd.s32 %s93, %s21
    %s95 = smul.u32 %s32, 2
    %s96 = sadd.s32 %s95, %s28
    %s97 = ssub.s32 %s94, %s96
    %p98 = scmp.eq.s32.totalorder %s97, 0
    %s100 = sadd.s32 %s99, 1
    %s101 = scalar_select %p98, %s99, %s100
    %p104 = pneg %p98
    %p105 = scmp.eq.s32.totalorder %s13, 3
    %p106 = por %p104, %p105
    %p107 = scmp.ne.s32.totalorder %s99, %s102
    %p108 = scmp.eq.s32.totalorder %s13, 0
    %p109 = por %p107, %p108
    %p110 = scmp.ne.s32.totalorder %s99, %s102
    %p111 = scmp.eq.s32.totalorder %s18, 3
    %p112 = por %p110, %p111
    %p113 = scmp.ne.s32.totalorder %s102, %s103
    %p114 = scmp.eq.s32.totalorder %s18, 0
    %p115 = por %p113, %p114
    %p116 = scmp.ne.s32.totalorder %s102, %s103
    %p117 = scmp.eq.s32.totalorder %s19, 3
    %p118 = por %p116, %p117
    %p120 = scmp.ne.s32.totalorder %s103, %s119
    %p121 = scmp.eq.s32.totalorder %s19, 0
    %p122 = por %p120, %p121
    %s123 = smul.u32 %s20, 2
    %s124 = sadd.s32 %s123, %s21
    %s125 = smul.u32 %s32, 2
    %s126 = sadd.s32 %s125, %s28
    %s127 = ssub.s32 %s124, %s126
    %p128 = scmp.eq.s32.totalorder %s127, 0
    %s130 = sadd.s32 %s129, 1
    %s131 = scalar_select %p128, %s129, %s130
    %p134 = pneg %p128
    %p135 = scmp.eq.s32.totalorder %s13, 3
    %p136 = por %p134, %p135
    %p137 = scmp.ne.s32.totalorder %s129, %s132
    %p138 = scmp.eq.s32.totalorder %s13, 0
    %p139 = por %p137, %p138
    %p140 = scmp.ne.s32.totalorder %s129, %s132
    %p141 = scmp.eq.s32.totalorder %s18, 3
    %p142 = por %p140, %p141
    %p143 = scmp.ne.s32.totalorder %s132, %s133
    %p144 = scmp.eq.s32.totalorder %s18, 0
    %p145 = por %p143, %p144
    %p146 = scmp.ne.s32.totalorder %s132, %s133
    %p147 = scmp.eq.s32.totalorder %s19, 3
    %p148 = por %p146, %p147
    %p150 = scmp.ne.s32.totalorder %s133, %s149
    %p151 = scmp.eq.s32.totalorder %s19, 0
    %p152 = por %p150, %p151
    %s153 = smul.u32 %s20, 2
    %s154 = sadd.s32 %s153, %s21
    %s155 = smul.u32 %s32, 2
    %s156 = sadd.s32 %s155, %s28
    %s157 = ssub.s32 %s154, %s156
    %p158 = scmp.eq.s32.totalorder %s157, 0
    %s160 = sadd.s32 %s159, 1
    %s161 = scalar_select %p158, %s159, %s160
    %p164 = pneg %p158
    %p165 = scmp.eq.s32.totalorder %s13, 3
    %p166 = por %p164, %p165
    %p167 = scmp.ne.s32.totalorder %s159, %s162
    %p168 = scmp.eq.s32.totalorder %s13, 0
    %p169 = por %p167, %p168
    %p170 = scmp.ne.s32.totalorder %s159, %s162
    %p171 = scmp.eq.s32.totalorder %s18, 3
    %p172 = por %p170, %p171
    %p173 = scmp.ne.s32.totalorder %s162, %s163
    %p174 = scmp.eq.s32.totalorder %s18, 0
    %p175 = por %p173, %p174
    %p176 = scmp.ne.s32.totalorder %s162, %s163
    %p177 = scmp.eq.s32.totalorder %s19, 3
    %p178 = por %p176, %p177
    %p180 = scmp.ne.s32.totalorder %s163, %s179
    %p181 = scmp.eq.s32.totalorder %s19, 0
    %p182 = por %p180, %p181
    %s183 = smul.u32 %s20, 2
    %s184 = sadd.s32 %s183, %s21
    %s185 = smul.u32 %s32, 2
    %s186 = sadd.s32 %s185, %s28
    %s187 = ssub.s32 %s184, %s186
    %p188 = scmp.eq.s32.totalorder %s187, 0
    %s190 = sadd.s32 %s189, 1
    %s191 = scalar_select %p188, %s189, %s190
    %p194 = pneg %p188
    %p195 = scmp.eq.s32.totalorder %s13, 3
    %p196 = por %p194, %p195
    %p197 = scmp.ne.s32.totalorder %s189, %s192
    %p198 = scmp.eq.s32.totalorder %s13, 0
    %p199 = por %p197, %p198
    %p200 = scmp.ne.s32.totalorder %s189, %s192
    %p201 = scmp.eq.s32.totalorder %s18, 3
    %p202 = por %p200, %p201
    %p203 = scmp.ne.s32.totalorder %s192, %s193
    %p204 = scmp.eq.s32.totalorder %s18, 0
    %p205 = por %p203, %p204
    %p206 = scmp.ne.s32.totalorder %s192, %s193
    %p207 = scmp.eq.s32.totalorder %s19, 3
    %p208 = por %p206, %p207
    %p210 = scmp.ne.s32.totalorder %s193, %s209
    %p211 = scmp.eq.s32.totalorder %s19, 0
    %p212 = por %p210, %p211
    %s214 = sadd.s32 %s213, 1
    %p217 = scmp.eq.s32.totalorder %s13, 3
    %p218 = scmp.ne.s32.totalorder %s213, %s215
    %p219 = scmp.eq.s32.totalorder %s13, 0
    %p220 = por %p218, %p219
    %p221 = scmp.ne.s32.totalorder %s213, %s215
    %p222 = scmp.eq.s32.totalorder %s18, 3
    %p223 = por %p221, %p222
    %p224 = scmp.ne.s32.totalorder %s215, %s216
    %p225 = scmp.eq.s32.totalorder %s18, 0
    %p226 = por %p224, %p225
    %p227 = scmp.ne.s32.totalorder %s215, %s216
    %p228 = scmp.eq.s32.totalorder %s19, 3
    %p229 = por %p227, %p228
    %p231 = scmp.ne.s32.totalorder %s216, %s230
    %p232 = scmp.eq.s32.totalorder %s19, 0
    %p233 = por %p231, %p232
    %s234 = ssub.s32 %s20, %s32
    %p235 = scmp.eq.s32.totalorder %s234, 0
    %s237 = sadd.s32 %s236, 1
    %s238 = scalar_select %p235, %s236, %s237
    %p241 = pneg %p235
    %p242 = scmp.eq.s32.totalorder %s13, 3
    %p243 = por %p241, %p242
    %p244 = scmp.ne.s32.totalorder %s236, %s239
    %p245 = scmp.eq.s32.totalorder %s13, 0
    %p246 = por %p244, %p245
    %p247 = scmp.ne.s32.totalorder %s236, %s239
    %p248 = scmp.eq.s32.totalorder %s18, 3
    %p249 = por %p247, %p248
    %p250 = scmp.ne.s32.totalorder %s239, %s240
    %p251 = scmp.eq.s32.totalorder %s18, 0
    %p252 = por %p250, %p251
    %p253 = scmp.ne.s32.totalorder %s239, %s240
    %p254 = scmp.eq.s32.totalorder %s19, 3
    %p255 = por %p253, %p254
    %p257 = scmp.ne.s32.totalorder %s240, %s256
    %p258 = scmp.eq.s32.totalorder %s19, 0
    %p259 = por %p257, %p258
    %p260 = scmp.le.s32.totalorder 1, %s13
    %p261 = scmp.lt.s32.totalorder %s13, 5
    %p262 = pnand %p260, %p261
    %p263 = pneg %p262
    // Predicated region
    $region9: #{_linear_attn_first_impl.1} parent=5 // pred_check
      _
    $region10: #{_linear_attn_first_impl.1} parent=5 // pred_check_branch
      %265 = sbr.rel (%p262) target = $region12
    $region11: #{_linear_attn_first_impl.1} parent=5 // pred_region
      %s266 = ssub.s32 %s13, 1
      // Predicated region
      $region13: #{_linear_attn_first_impl.1} parent=11 // pred_check
        %p267 = pneg %p226
      $region14: #{_linear_attn_first_impl.1} parent=11 // pred_check_branch
        %269 = sbr.rel (%p267) target = $region16
      $region15: #{_linear_attn_first_impl.1} parent=11 // pred_region
        _
      $region16: #{_linear_attn_first_impl.1} parent=11 // pred_fallthru
        _
    $region12: #{_linear_attn_first_impl.1} parent=5 // pred_fallthru
      _
    %p270 = scmp.lt.s32.totalorder %s13, 4
    // Predicated region
    $region17: #{_linear_attn_first_impl.1} parent=5 // pred_check
      %p271 = pneg %p270
    $region18: #{_linear_attn_first_impl.1} parent=5 // pred_check_branch
      %273 = sbr.rel (%p271) target = $region20
    $region19: #{_linear_attn_first_impl.1} parent=5 // pred_region
      // Predicated region
      $region21: #{_linear_attn_first_impl.1} parent=19 // pred_check
        %p274 = pneg %p49
      $region22: #{_linear_attn_first_impl.1} parent=19 // pred_check_branch
        %276 = sbr.rel (%p274) target = $region24
      $region23: #{_linear_attn_first_impl.1} parent=19 // pred_region
        %s277 = smul.u32 %s20, 2
        %s278 = sadd.s32 %s277, %s21
        %s279 = smul.u32 32, %s278
        %p280 = scmp.lt.s32.totalorder %s279, 127
        %s281 = scalar_select %p280, %s279, 127
        %s282 = smul.addr %s281, 8
        %s283 = scalar_lea.vmem %s0, %s282
        %s284 = smul.u32 %s20, 2
        %s285 = sadd.s32 %s284, %s21
        %s286 = smul.u32 32, %s285
      $region24: #{_linear_attn_first_impl.1} parent=19 // pred_fallthru
        _
      // Predicated region
      $region25: #{_linear_attn_first_impl.1} parent=19 // pred_check
        %p287 = pneg %p79
      $region26: #{_linear_attn_first_impl.1} parent=19 // pred_check_branch
        %289 = sbr.rel (%p287) target = $region28
      $region27: #{_linear_attn_first_impl.1} parent=19 // pred_region
        %s290 = smul.u32 %s20, 2
        %s291 = sadd.s32 %s290, %s21
        %s292 = smul.u32 32, %s291
        %p293 = scmp.lt.s32.totalorder %s292, 127
        %s294 = scalar_select %p293, %s292, 127
        %s295 = smul.addr %s294, 8
        %s296 = scalar_lea.vmem %s1, %s295
        %s297 = smul.u32 %s20, 2
        %s298 = sadd.s32 %s297, %s21
        %s299 = smul.u32 32, %s298
      $region28: #{_linear_attn_first_impl.1} parent=19 // pred_fallthru
        _
      // Predicated region
      $region29: #{_linear_attn_first_impl.1} parent=19 // pred_check
        %p300 = pneg %p109
      $region30: #{_linear_attn_first_impl.1} parent=19 // pred_check_branch
        %302 = sbr.rel (%p300) target = $region32
      $region31: #{_linear_attn_first_impl.1} parent=19 // pred_region
        %s303 = smul.u32 %s20, 2
        %s304 = sadd.s32 %s303, %s21
        %s305 = smul.u32 32, %s304
        %p306 = scmp.lt.s32.totalorder %s305, 127
        %s307 = scalar_select %p306, %s305, 127
        %s308 = smul.addr %s307, 8
        %s309 = scalar_lea.vmem %s2, %s308
        %s310 = smul.u32 %s20, 2
        %s311 = sadd.s32 %s310, %s21
        %s312 = smul.u32 32, %s311
      $region32: #{_linear_attn_first_impl.1} parent=19 // pred_fallthru
        _
      // Predicated region
      $region33: #{_linear_attn_first_impl.1} parent=19 // pred_check
        %p313 = pneg %p139
      $region34: #{_linear_attn_first_impl.1} parent=19 // pred_check_branch
        %315 = sbr.rel (%p313) target = $region36
      $region35: #{_linear_attn_first_impl.1} parent=19 // pred_region
        %s316 = smul.u32 %s20, 2
        %s317 = sadd.s32 %s316, %s21
        %s318 = smul.u32 32, %s317
        %p319 = scmp.lt.s32.totalorder %s318, 127
        %s320 = scalar_select %p319, %s318, 127
        %s321 = smul.addr %s320, 8
        %s322 = scalar_lea.vmem %s3, %s321
        %s323 = smul.u32 %s20, 2
        %s324 = sadd.s32 %s323, %s21
        %s325 = smul.u32 32, %s324
      $region36: #{_linear_attn_first_impl.1} parent=19 // pred_fallthru
        _
      // Predicated region
      $region37: #{_linear_attn_first_impl.1} parent=19 // pred_check
        %p326 = pneg %p169
      $region38: #{_linear_attn_first_impl.1} parent=19 // pred_check_branch
        %328 = sbr.rel (%p326) target = $region40
      $region39: #{_linear_attn_first_impl.1} parent=19 // pred_region
        %s329 = smul.u32 %s20, 2
        %s330 = sadd.s32 %s329, %s21
        %s331 = smul.u32 32, %s330
        %p332 = scmp.lt.s32.totalorder %s331, 127
        %s333 = scalar_select %p332, %s331, 127
        %s334 = smul.addr %s333, 8
        %s335 = scalar_lea.vmem %s4, %s334
        %s336 = smul.u32 %s20, 2
        %s337 = sadd.s32 %s336, %s21
        %s338 = smul.u32 32, %s337
      $region40: #{_linear_attn_first_impl.1} parent=19 // pred_fallthru
        _
      // Predicated region
      $region41: #{_linear_attn_first_impl.1} parent=19 // pred_check
        %p339 = pneg %p199
      $region42: #{_linear_attn_first_impl.1} parent=19 // pred_check_branch
        %341 = sbr.rel (%p339) target = $region44
      $region43: #{_linear_attn_first_impl.1} parent=19 // pred_region
        %s342 = smul.u32 %s20, 2
        %s343 = sadd.s32 %s342, %s21
        %s344 = smul.u32 32, %s343
        %p345 = scmp.lt.s32.totalorder %s344, 127
        %s346 = scalar_select %p345, %s344, 127
        %s347 = smul.addr %s346, 8
        %s348 = scalar_lea.vmem %s5, %s347
        %s349 = smul.u32 %s20, 2
        %s350 = sadd.s32 %s349, %s21
        %s351 = smul.u32 32, %s350
      $region44: #{_linear_attn_first_impl.1} parent=19 // pred_fallthru
        _
    $region20: #{_linear_attn_first_impl.1} parent=5 // pred_fallthru
      _
    %p352 = scmp.le.s32.totalorder 1, %s13
    %p353 = scmp.lt.s32.totalorder %s13, 5
    %p354 = pnand %p352, %p353
    %p355 = pneg %p354
    // Predicated region
    $region45: #{_linear_attn_first_impl.1} parent=5 // pred_check
      _
    $region46: #{_linear_attn_first_impl.1} parent=5 // pred_check_branch
      %357 = sbr.rel (%p354) target = $region48
    $region47: #{_linear_attn_first_impl.1} parent=5 // pred_region
      %s358 = ssub.s32 %s13, 1
      %s359 = smul.u32 %s22, 2
      %s360 = sadd.s32 %s359, %s23
      %s361 = smul.u32 32, %s360
      %p362 = scmp.lt.s32.totalorder %s361, 127
      %s363 = scalar_select %p362, %s361, 127
      %s364 = smul.addr %s363, 8
      %s365 = scalar_lea.vmem %s0, %s364
      %p366 = pneg %p55
      %p367 = pneg %p52
      %s368 = smul.u32 %s22, 2
      %s369 = sadd.s32 %s368, %s23
      %s370 = smul.u32 32, %s369
      %p371 = scmp.lt.s32.totalorder %s370, 127
      %s372 = scalar_select %p371, %s370, 127
      %s373 = smul.addr %s372, 8
      %s374 = scalar_lea.vmem %s1, %s373
      %p375 = pneg %p85
      %p376 = pneg %p82
      %s377 = smul.u32 %s22, 2
      %s378 = sadd.s32 %s377, %s23
      %s379 = smul.u32 32, %s378
      %p380 = scmp.lt.s32.totalorder %s379, 127
      %s381 = scalar_select %p380, %s379, 127
      %s382 = smul.addr %s381, 8
      %s383 = scalar_lea.vmem %s2, %s382
      %p384 = pneg %p115
      %p385 = pneg %p112
      %s386 = smul.u32 %s22, 2
      %s387 = sadd.s32 %s386, %s23
      %s388 = smul.u32 32, %s387
      %p389 = scmp.lt.s32.totalorder %s388, 127
      %s390 = scalar_select %p389, %s388, 127
      %s391 = smul.addr %s390, 8
      %s392 = scalar_lea.vmem %s3, %s391
      %p393 = pneg %p145
      %p394 = pneg %p142
      %s395 = smul.u32 %s22, 2
      %s396 = sadd.s32 %s395, %s23
      %s397 = smul.u32 32, %s396
      %p398 = scmp.lt.s32.totalorder %s397, 127
      %s399 = scalar_select %p398, %s397, 127
      %s400 = smul.addr %s399, 8
      %s401 = scalar_lea.vmem %s4, %s400
      %p402 = pneg %p175
      %p403 = pneg %p172
      %s404 = smul.u32 %s22, 2
      %s405 = sadd.s32 %s404, %s23
      %s406 = smul.u32 32, %s405
      %p407 = scmp.lt.s32.totalorder %s406, 127
      %s408 = scalar_select %p407, %s406, 127
      %s409 = smul.addr %s408, 8
      %s410 = scalar_lea.vmem %s5, %s409
      %p411 = pneg %p205
      %p412 = pneg %p202
      %p413 = pneg %p226
      %p414 = pneg %p223
      %p415 = pneg %p252
      %p416 = pneg %p249
      %p417 = scmp.lt.s32.totalorder %s22, 1
      %s418 = scalar_select %p417, %s22, 1
      %s419 = smul.addr %s418, 4
      %s420 = smul.addr %s419, 8
      %s421 = scalar_lea.vmem %s7, %s420
      %s422 = smul.u32 %s22, 2
      %s423 = sadd.s32 %s422, %s23
      %s424 = smul.u32 32, %s423
      %p425 = scmp.lt.s32.totalorder %s424, 127
      %s426 = scalar_select %p425, %s424, 127
      %s427 = smul.addr %s426, 8
      %s428 = scalar_lea.vmem %s0, %s427
      %s429 = smul.u32 %s22, 2
      %s430 = sadd.s32 %s429, %s23
      %s431 = smul.u32 32, %s430
      %s432 = smul.u32 %s22, 2
      %s433 = sadd.s32 %s432, %s23
      %s434 = smul.u32 32, %s433
      %p435 = scmp.lt.s32.totalorder %s434, 127
      %s436 = scalar_select %p435, %s434, 127
      %s437 = smul.addr %s436, 8
      %s438 = scalar_lea.vmem %s1, %s437
      %s439 = smul.u32 %s22, 2
      %s440 = sadd.s32 %s439, %s23
      %s441 = smul.u32 32, %s440
      %s442 = smul.u32 %s22, 2
      %s443 = sadd.s32 %s442, %s23
      %s444 = smul.u32 32, %s443
      %p445 = scmp.lt.s32.totalorder %s444, 127
      %s446 = scalar_select %p445, %s444, 127
      %s447 = smul.addr %s446, 8
      %s448 = scalar_lea.vmem %s2, %s447
      %s449 = smul.u32 %s22, 2
      %s450 = sadd.s32 %s449, %s23
      %s451 = smul.u32 32, %s450
      %s452 = smul.u32 %s22, 2
      %s453 = sadd.s32 %s452, %s23
      %s454 = smul.u32 32, %s453
      %p455 = scmp.lt.s32.totalorder %s454, 127
      %s456 = scalar_select %p455, %s454, 127
      %s457 = smul.addr %s456, 8
      %s458 = scalar_lea.vmem %s3, %s457
      %s459 = smul.u32 %s22, 2
      %s460 = sadd.s32 %s459, %s23
      %s461 = smul.u32 32, %s460
      %s462 = smul.u32 %s22, 2
      %s463 = sadd.s32 %s462, %s23
      %s464 = smul.u32 32, %s463
      %p465 = scmp.lt.s32.totalorder %s464, 127
      %s466 = scalar_select %p465, %s464, 127
      %s467 = smul.addr %s466, 8
      %s468 = scalar_lea.vmem %s4, %s467
      %s469 = smul.u32 %s22, 2
      %s470 = sadd.s32 %s469, %s23
      %s471 = smul.u32 32, %s470
      %s472 = smul.u32 %s22, 2
      %s473 = sadd.s32 %s472, %s23
      %s474 = smul.u32 32, %s473
      %p475 = scmp.lt.s32.totalorder %s474, 127
      %s476 = scalar_select %p475, %s474, 127
      %s477 = smul.addr %s476, 8
      %s478 = scalar_lea.vmem %s5, %s477
      %s479 = smul.u32 %s22, 2
      %s480 = sadd.s32 %s479, %s23
      %s481 = smul.u32 32, %s480
      %p482 = scmp.lt.s32.totalorder %s22, 1
      %s483 = scalar_select %p482, %s22, 1
      %s484 = smul.addr %s483, 4
      %s485 = smul.addr %s484, 8
      %s486 = scalar_lea.vmem %s7, %s485
      %p488 = scmp.eq.s32.totalorder %s23, 0
      // Predicated region
      $region49: #{_linear_attn_first_impl.1} parent=47 // pred_check
        %p489 = pneg %p488
      $region50: #{_linear_attn_first_impl.1} parent=47 // pred_check_branch
        %491 = sbr.rel (%p489) target = $region52
      $region51: #{_linear_attn_first_impl.1} parent=47 // pred_region
        %492 = vst [vmem:[%s486] sm:$0xff] 0.0
        %493 = vst [vmem:[%s486 + $0x8] sm:$0xff] 0.0
        %494 = vst [vmem:[%s486 + $0x10] sm:$0xff] 0.0
        %495 = vst [vmem:[%s486 + $0x18] sm:$0xff] 0.0
        %v496 = vlaneseq
        %v497 = vand.u32 %v496, 127
        %vm498 = vcmask 130048
        %499 = vst.msk [vmem:[#allocation2] sm:$0xff] %vm498, %v497
        %500 = vst.msk [vmem:[#allocation2 + $0x8] sm:$0xff] %vm498, %v497
        %501 = vst.msk [vmem:[#allocation2 + $0x10] sm:$0xff] %vm498, %v497
        %502 = vst.msk [vmem:[#allocation2 + $0x18] sm:$0xff] %vm498, %v497
        %503 = vst.msk [vmem:[#allocation2 + $0x20] sm:$0xff] %vm498, %v497
        %504 = vst.msk [vmem:[#allocation2 + $0x28] sm:$0xff] %vm498, %v497
        %505 = vst.msk [vmem:[#allocation2 + $0x30] sm:$0xff] %vm498, %v497
        %506 = vst.msk [vmem:[#allocation2 + $0x38] sm:$0xff] %vm498, %v497
        %507 = vst.msk [vmem:[#allocation2 + $0x40] sm:$0xff] %vm498, %v497
        %508 = vst.msk [vmem:[#allocation2 + $0x48] sm:$0xff] %vm498, %v497
        %509 = vst.msk [vmem:[#allocation2 + $0x50] sm:$0xff] %vm498, %v497
        %510 = vst.msk [vmem:[#allocation2 + $0x58] sm:$0xff] %vm498, %v497
        %511 = vst.msk [vmem:[#allocation2 + $0x60] sm:$0xff] %vm498, %v497
        %512 = vst.msk [vmem:[#allocation2 + $0x68] sm:$0xff] %vm498, %v497
        %513 = vst.msk [vmem:[#allocation2 + $0x70] sm:$0xff] %vm498, %v497
        %514 = vst.msk [vmem:[#allocation2 + $0x78] sm:$0xff] %vm498, %v497
        %515 = vst.msk [vmem:[#allocation2 + $0x80] sm:$0xff] %vm498, %v497
        %516 = vst.msk [vmem:[#allocation2 + $0x88] sm:$0xff] %vm498, %v497
        %517 = vst.msk [vmem:[#allocation2 + $0x90] sm:$0xff] %vm498, %v497
        %518 = vst.msk [vmem:[#allocation2 + $0x98] sm:$0xff] %vm498, %v497
        %519 = vst.msk [vmem:[#allocation2 + $0xa0] sm:$0xff] %vm498, %v497
        %520 = vst.msk [vmem:[#allocation2 + $0xa8] sm:$0xff] %vm498, %v497
        %521 = vst.msk [vmem:[#allocation2 + $0xb0] sm:$0xff] %vm498, %v497
        %522 = vst.msk [vmem:[#allocation2 + $0xb8] sm:$0xff] %vm498, %v497
        %523 = vst.msk [vmem:[#allocation2 + $0xc0] sm:$0xff] %vm498, %v497
        %524 = vst.msk [vmem:[#allocation2 + $0xc8] sm:$0xff] %vm498, %v497
        %525 = vst.msk [vmem:[#allocation2 + $0xd0] sm:$0xff] %vm498, %v497
        %526 = vst.msk [vmem:[#allocation2 + $0xd8] sm:$0xff] %vm498, %v497
        %527 = vst.msk [vmem:[#allocation2 + $0xe0] sm:$0xff] %vm498, %v497
        %528 = vst.msk [vmem:[#allocation2 + $0xe8] sm:$0xff] %vm498, %v497
        %529 = vst.msk [vmem:[#allocation2 + $0xf0] sm:$0xff] %vm498, %v497
        %530 = vst.msk [vmem:[#allocation2 + $0xf8] sm:$0xff] %vm498, %v497
      $region52: #{_linear_attn_first_impl.1} parent=47 // pred_fallthru
        _
      %v531 = vld [vmem:[%s428] sm:$0xff]
      %v532 = vld [vmem:[%s428 + $0x8] sm:$0xff]
      %v533 = vld [vmem:[%s428 + $0x10] sm:$0xff]
      %v534 = vld [vmem:[%s428 + $0x18] sm:$0xff]
      %v535 = vld [vmem:[%s428 + $0x20] sm:$0xff]
      %v536 = vld [vmem:[%s428 + $0x28] sm:$0xff]
      %v537 = vld [vmem:[%s428 + $0x30] sm:$0xff]
      %v538 = vld [vmem:[%s428 + $0x38] sm:$0xff]
      %v539 = vld [vmem:[%s428 + $0x40] sm:$0xff]
      %v540 = vld [vmem:[%s428 + $0x48] sm:$0xff]
      %v541 = vld [vmem:[%s428 + $0x50] sm:$0xff]
      %v542 = vld [vmem:[%s428 + $0x58] sm:$0xff]
      %v543 = vld [vmem:[%s428 + $0x60] sm:$0xff]
      %v544 = vld [vmem:[%s428 + $0x68] sm:$0xff]
      %v545 = vld [vmem:[%s428 + $0x70] sm:$0xff]
      %v546 = vld [vmem:[%s428 + $0x78] sm:$0xff]
      %v547 = vld [vmem:[%s428 + $0x80] sm:$0xff]
      %v548 = vld [vmem:[%s428 + $0x88] sm:$0xff]
      %v549 = vld [vmem:[%s428 + $0x90] sm:$0xff]
      %v550 = vld [vmem:[%s428 + $0x98] sm:$0xff]
      %v551 = vld [vmem:[%s428 + $0xa0] sm:$0xff]
      %v552 = vld [vmem:[%s428 + $0xa8] sm:$0xff]
      %v553 = vld [vmem:[%s428 + $0xb0] sm:$0xff]
      %v554 = vld [vmem:[%s428 + $0xb8] sm:$0xff]
      %v555 = vld [vmem:[%s428 + $0xc0] sm:$0xff]
      %v556 = vld [vmem:[%s428 + $0xc8] sm:$0xff]
      %v557 = vld [vmem:[%s428 + $0xd0] sm:$0xff]
      %v558 = vld [vmem:[%s428 + $0xd8] sm:$0xff]
      %v559 = vld [vmem:[%s428 + $0xe0] sm:$0xff]
      %v560 = vld [vmem:[%s428 + $0xe8] sm:$0xff]
      %v561 = vld [vmem:[%s428 + $0xf0] sm:$0xff]
      %v562 = vld [vmem:[%s428 + $0xf8] sm:$0xff]
      %v563 = vld [vmem:[%s438] sm:$0xff]
      %v564 = vld [vmem:[%s438 + $0x8] sm:$0xff]
      %v565 = vld [vmem:[%s438 + $0x10] sm:$0xff]
      %v566 = vld [vmem:[%s438 + $0x18] sm:$0xff]
      %v567 = vld [vmem:[%s438 + $0x20] sm:$0xff]
      %v568 = vld [vmem:[%s438 + $0x28] sm:$0xff]
      %v569 = vld [vmem:[%s438 + $0x30] sm:$0xff]
      %v570 = vld [vmem:[%s438 + $0x38] sm:$0xff]
      %v571 = vld [vmem:[%s438 + $0x40] sm:$0xff]
      %v572 = vld [vmem:[%s438 + $0x48] sm:$0xff]
      %v573 = vld [vmem:[%s438 + $0x50] sm:$0xff]
      %v574 = vld [vmem:[%s438 + $0x58] sm:$0xff]
      %v575 = vld [vmem:[%s438 + $0x60] sm:$0xff]
      %v576 = vld [vmem:[%s438 + $0x68] sm:$0xff]
      %v577 = vld [vmem:[%s438 + $0x70] sm:$0xff]
      %v578 = vld [vmem:[%s438 + $0x78] sm:$0xff]
      %v579 = vld [vmem:[%s438 + $0x80] sm:$0xff]
      %v580 = vld [vmem:[%s438 + $0x88] sm:$0xff]
      %v581 = vld [vmem:[%s438 + $0x90] sm:$0xff]
      %v582 = vld [vmem:[%s438 + $0x98] sm:$0xff]
      %v583 = vld [vmem:[%s438 + $0xa0] sm:$0xff]
      %v584 = vld [vmem:[%s438 + $0xa8] sm:$0xff]
      %v585 = vld [vmem:[%s438 + $0xb0] sm:$0xff]
      %v586 = vld [vmem:[%s438 + $0xb8] sm:$0xff]
      %v587 = vld [vmem:[%s438 + $0xc0] sm:$0xff]
      %v588 = vld [vmem:[%s438 + $0xc8] sm:$0xff]
      %v589 = vld [vmem:[%s438 + $0xd0] sm:$0xff]
      %v590 = vld [vmem:[%s438 + $0xd8] sm:$0xff]
      %v591 = vld [vmem:[%s438 + $0xe0] sm:$0xff]
      %v592 = vld [vmem:[%s438 + $0xe8] sm:$0xff]
      %v593 = vld [vmem:[%s438 + $0xf0] sm:$0xff]
      %v594 = vld [vmem:[%s438 + $0xf8] sm:$0xff]
      %v595 = vld [vmem:[%s448] sm:$0xff]
      %v596 = vld [vmem:[%s448 + $0x8] sm:$0xff]
      %v597 = vld [vmem:[%s448 + $0x10] sm:$0xff]
      %v598 = vld [vmem:[%s448 + $0x18] sm:$0xff]
      %v599 = vld [vmem:[%s448 + $0x20] sm:$0xff]
      %v600 = vld [vmem:[%s448 + $0x28] sm:$0xff]
      %v601 = vld [vmem:[%s448 + $0x30] sm:$0xff]
      %v602 = vld [vmem:[%s448 + $0x38] sm:$0xff]
      %v603 = vld [vmem:[%s448 + $0x40] sm:$0xff]
      %v604 = vld [vmem:[%s448 + $0x48] sm:$0xff]
      %v605 = vld [vmem:[%s448 + $0x50] sm:$0xff]
      %v606 = vld [vmem:[%s448 + $0x58] sm:$0xff]
      %v607 = vld [vmem:[%s448 + $0x60] sm:$0xff]
      %v608 = vld [vmem:[%s448 + $0x68] sm:$0xff]
      %v609 = vld [vmem:[%s448 + $0x70] sm:$0xff]
      %v610 = vld [vmem:[%s448 + $0x78] sm:$0xff]
      %v611 = vld [vmem:[%s448 + $0x80] sm:$0xff]
      %v612 = vld [vmem:[%s448 + $0x88] sm:$0xff]
      %v613 = vld [vmem:[%s448 + $0x90] sm:$0xff]
      %v614 = vld [vmem:[%s448 + $0x98] sm:$0xff]
      %v615 = vld [vmem:[%s448 + $0xa0] sm:$0xff]
      %v616 = vld [vmem:[%s448 + $0xa8] sm:$0xff]
      %v617 = vld [vmem:[%s448 + $0xb0] sm:$0xff]
      %v618 = vld [vmem:[%s448 + $0xb8] sm:$0xff]
      %v619 = vld [vmem:[%s448 + $0xc0] sm:$0xff]
      %v620 = vld [vmem:[%s448 + $0xc8] sm:$0xff]
      %v621 = vld [vmem:[%s448 + $0xd0] sm:$0xff]
      %v622 = vld [vmem:[%s448 + $0xd8] sm:$0xff]
      %v623 = vld [vmem:[%s448 + $0xe0] sm:$0xff]
      %v624 = vld [vmem:[%s448 + $0xe8] sm:$0xff]
      %v625 = vld [vmem:[%s448 + $0xf0] sm:$0xff]
      %v626 = vld [vmem:[%s448 + $0xf8] sm:$0xff]
      %v627 = vmul.f32 %v531, %v563
      %v628 = vmul.f32 %v532, %v564
      %v629 = vmul.f32 %v533, %v565
      %v630 = vmul.f32 %v534, %v566
      %v631 = vmul.f32 %v535, %v567
      %v632 = vmul.f32 %v536, %v568
      %v633 = vmul.f32 %v537, %v569
      %v634 = vmul.f32 %v538, %v570
      %v635 = vmul.f32 %v539, %v571
      %v636 = vmul.f32 %v540, %v572
      %v637 = vmul.f32 %v541, %v573
      %v638 = vmul.f32 %v542, %v574
      %v639 = vmul.f32 %v543, %v575
      %v640 = vmul.f32 %v544, %v576
      %v641 = vmul.f32 %v545, %v577
      %v642 = vmul.f32 %v546, %v578
      %v643 = vmul.f32 %v547, %v579
      %v644 = vmul.f32 %v548, %v580
      %v645 = vmul.f32 %v549, %v581
      %v646 = vmul.f32 %v550, %v582
      %v647 = vmul.f32 %v551, %v583
      %v648 = vmul.f32 %v552, %v584
      %v649 = vmul.f32 %v553, %v585
      %v650 = vmul.f32 %v554, %v586
      %v651 = vmul.f32 %v555, %v587
      %v652 = vmul.f32 %v556, %v588
      %v653 = vmul.f32 %v557, %v589
      %v654 = vmul.f32 %v558, %v590
      %v655 = vmul.f32 %v559, %v591
      %v656 = vmul.f32 %v560, %v592
      %v657 = vmul.f32 %v561, %v593
      %v658 = vmul.f32 %v562, %v594
      %v659 = vpack.c.bf16 %v628, %v627
      %v660 = vpack.c.bf16 %v630, %v629
      %v661 = vpack.c.bf16 %v632, %v631
      %v662 = vpack.c.bf16 %v634, %v633
      %v663 = vpack.c.bf16 %v636, %v635
      %v664 = vpack.c.bf16 %v638, %v637
      %v665 = vpack.c.bf16 %v640, %v639
      %v666 = vpack.c.bf16 %v642, %v641
      %v667 = vpack.c.bf16 %v644, %v643
      %v668 = vpack.c.bf16 %v646, %v645
      %v669 = vpack.c.bf16 %v648, %v647
      %v670 = vpack.c.bf16 %v650, %v649
      %v671 = vpack.c.bf16 %v652, %v651
      %v672 = vpack.c.bf16 %v654, %v653
      %v673 = vpack.c.bf16 %v656, %v655
      %v674 = vpack.c.bf16 %v658, %v657
      %v675 = vunpack.c.l.bf16 %v659
      %v676 = vunpack.c.h.bf16 %v659
      %v677 = vunpack.c.l.bf16 %v660
      %v678 = vunpack.c.h.bf16 %v660
      %v679 = vunpack.c.l.bf16 %v661
      %v680 = vunpack.c.h.bf16 %v661
      %v681 = vunpack.c.l.bf16 %v662
      %v682 = vunpack.c.h.bf16 %v662
      %v683 = vunpack.c.l.bf16 %v663
      %v684 = vunpack.c.h.bf16 %v663
      %v685 = vunpack.c.l.bf16 %v664
      %v686 = vunpack.c.h.bf16 %v664
      %v687 = vunpack.c.l.bf16 %v665
      %v688 = vunpack.c.h.bf16 %v665
      %v689 = vunpack.c.l.bf16 %v666
      %v690 = vunpack.c.h.bf16 %v666
      %v691 = vunpack.c.l.bf16 %v667
      %v692 = vunpack.c.h.bf16 %v667
      %v693 = vunpack.c.l.bf16 %v668
      %v694 = vunpack.c.h.bf16 %v668
      %v695 = vunpack.c.l.bf16 %v669
      %v696 = vunpack.c.h.bf16 %v669
      %v697 = vunpack.c.l.bf16 %v670
      %v698 = vunpack.c.h.bf16 %v670
      %v699 = vunpack.c.l.bf16 %v671
      %v700 = vunpack.c.h.bf16 %v671
      %v701 = vunpack.c.l.bf16 %v672
      %v702 = vunpack.c.h.bf16 %v672
      %v703 = vunpack.c.l.bf16 %v673
      %v704 = vunpack.c.h.bf16 %v673
      %v705 = vunpack.c.l.bf16 %v674
      %v706 = vunpack.c.h.bf16 %v674
      %v707 = vsub.f32 %v627, %v675
      %v708 = vsub.f32 %v628, %v676
      %v709 = vsub.f32 %v629, %v677
      %v710 = vsub.f32 %v630, %v678
      %v711 = vsub.f32 %v631, %v679
      %v712 = vsub.f32 %v632, %v680
      %v713 = vsub.f32 %v633, %v681
      %v714 = vsub.f32 %v634, %v682
      %v715 = vsub.f32 %v635, %v683
      %v716 = vsub.f32 %v636, %v684
      %v717 = vsub.f32 %v637, %v685
      %v718 = vsub.f32 %v638, %v686
      %v719 = vsub.f32 %v639, %v687
      %v720 = vsub.f32 %v640, %v688
      %v721 = vsub.f32 %v641, %v689
      %v722 = vsub.f32 %v642, %v690
      %v723 = vsub.f32 %v643, %v691
      %v724 = vsub.f32 %v644, %v692
      %v725 = vsub.f32 %v645, %v693
      %v726 = vsub.f32 %v646, %v694
      %v727 = vsub.f32 %v647, %v695
      %v728 = vsub.f32 %v648, %v696
      %v729 = vsub.f32 %v649, %v697
      %v730 = vsub.f32 %v650, %v698
      %v731 = vsub.f32 %v651, %v699
      %v732 = vsub.f32 %v652, %v700
      %v733 = vsub.f32 %v653, %v701
      %v734 = vsub.f32 %v654, %v702
      %v735 = vsub.f32 %v655, %v703
      %v736 = vsub.f32 %v656, %v704
      %v737 = vsub.f32 %v657, %v705
      %v738 = vsub.f32 %v658, %v706
      %v739 = vpack.c.bf16 %v708, %v707
      %v740 = vpack.c.bf16 %v710, %v709
      %v741 = vpack.c.bf16 %v712, %v711
      %v742 = vpack.c.bf16 %v714, %v713
      %v743 = vpack.c.bf16 %v716, %v715
      %v744 = vpack.c.bf16 %v718, %v717
      %v745 = vpack.c.bf16 %v720, %v719
      %v746 = vpack.c.bf16 %v722, %v721
      %v747 = vpack.c.bf16 %v724, %v723
      %v748 = vpack.c.bf16 %v726, %v725
      %v749 = vpack.c.bf16 %v728, %v727
      %v750 = vpack.c.bf16 %v730, %v729
      %v751 = vpack.c.bf16 %v732, %v731
      %v752 = vpack.c.bf16 %v734, %v733
      %v753 = vpack.c.bf16 %v736, %v735
      %v754 = vpack.c.bf16 %v738, %v737
      %v755 = vld [vmem:[%s6] sm:$0xf]
      %v756 = vld [vmem:[%s6 + $0x4] sm:$0xf]
      %v757 = vld [vmem:[%s6 + $0x8] sm:$0xf]
      %v758 = vld [vmem:[%s6 + $0xc] sm:$0xf]
      %v759 = vld [vmem:[%s6 + $0x10] sm:$0xf]
      %v760 = vld [vmem:[%s6 + $0x14] sm:$0xf]
      %v761 = vld [vmem:[%s6 + $0x18] sm:$0xf]
      %v762 = vld [vmem:[%s6 + $0x1c] sm:$0xf]
      %v771 = vunpack.c.l.b16 %v755
      %v772 = vunpack.c.l.b16 %v756
      %v773 = vunpack.c.l.b16 %v757
      %v774 = vunpack.c.l.b16 %v758
      %v775 = vunpack.c.l.b16 %v759
      %v776 = vunpack.c.l.b16 %v760
      %v777 = vunpack.c.l.b16 %v761
      %v778 = vunpack.c.l.b16 %v762
      %v779 = vpack.c.b16 %v772, %v771
      %v780 = vpack.c.b16 %v774, %v773
      %v781 = vpack.c.b16 %v776, %v775
      %v782 = vpack.c.b16 %v778, %v777
      %vm787 = vcmask 523264
      %v789 = vsel %vm787, %v739, 0
      %v792 = vsel %vm787, %v740, 0
      %v795 = vsel %vm787, %v741, 0
      %v798 = vsel %vm787, %v742, 0
      %v801 = vsel %vm787, %v743, 0
      %v804 = vsel %vm787, %v744, 0
      %v807 = vsel %vm787, %v745, 0
      %v810 = vsel %vm787, %v746, 0
      %v813 = vsel %vm787, %v747, 0
      %v816 = vsel %vm787, %v748, 0
      %v819 = vsel %vm787, %v749, 0
      %v822 = vsel %vm787, %v750, 0
      %v825 = vsel %vm787, %v751, 0
      %v828 = vsel %vm787, %v752, 0
      %v831 = vsel %vm787, %v753, 0
      %v834 = vsel %vm787, %v754, 0
      %836 = vmatprep.subr.bf16.mxu0 0
      %837 = vmatpush1.bf16.msra.mxu0 0
      %838 = vmatprep.subr.bf16.mxu0 0
      %839 = vmatpush1.bf16.msra.mxu0 0
      %840 = vmatprep.subr.bf16.mxu0 0
      %841 = vmatpush1.bf16.msra.mxu0 0
      %842 = vmatprep.subr.bf16.mxu0 0
      %843 = vmatpush1.bf16.msra.mxu0 0
      %844 = vmatprep.subr.bf16.mxu0 0
      %845 = vmatpush1.bf16.msra.mxu0 %v782
      %846 = vmatprep.subr.bf16.mxu0 0
      %847 = vmatpush1.bf16.msra.mxu0 %v781
      %848 = vmatprep.subr.bf16.mxu0 0
      %849 = vmatpush1.bf16.msra.mxu0 %v780
      %850 = vmatprep.subr.bf16.mxu0 0
      %851 = vmatpush1.bf16.msra.mxu0 %v779
      %852 = vmatprep.subr.bf16.mxu0 0
      %853 = vmatpush2.bf16.msra.mxu0 0
      %854 = vmatprep.subr.bf16.mxu0 0
      %855 = vmatpush2.bf16.msra.mxu0 0
      %856 = vmatprep.subr.bf16.mxu0 0
      %857 = vmatpush2.bf16.msra.mxu0 0
      %858 = vmatprep.subr.bf16.mxu0 0
      %859 = vmatpush2.bf16.msra.mxu0 0
      %860 = vmatprep.subr.bf16.mxu0 0
      %861 = vmatpush2.bf16.msra.mxu0 0
      %862 = vmatprep.subr.bf16.mxu0 0
      %863 = vmatpush2.bf16.msra.mxu0 0
      %864 = vmatprep.subr.bf16.mxu0 0
      %865 = vmatpush2.bf16.msra.mxu0 0
      %866 = vmatprep.subr.bf16.mxu0 0
      %867 = vmatpush2.bf16.msra.mxu0 0
      %868 = vmatprep.mubr.bf16.mxu0 0
      %869 = vmatmul.mubr.bf16.gmra.mxu0 %v789
      %v870 = vpop.f32.mrf.mxu0
      %v871 = vadd.f32 0.0, %v870
      %v872 = vpop.f32.mrf.mxu0
      %v873 = vpop.f32.mrf.mxu0
      %v874 = vadd.f32 0.0, %v873
      %v875 = vpop.f32.mrf.mxu0
      %876 = vmatprep.mubr.bf16.mxu0 0
      %877 = vmatmul.mubr.bf16.gmra.mxu0 %v792
      %v878 = vpop.f32.mrf.mxu0
      %v879 = vadd.f32 0.0, %v878
      %v880 = vpop.f32.mrf.mxu0
      %v881 = vpop.f32.mrf.mxu0
      %v882 = vadd.f32 0.0, %v881
      %v883 = vpop.f32.mrf.mxu0
      %884 = vmatprep.mubr.bf16.mxu0 0
      %885 = vmatmul.mubr.bf16.gmra.mxu0 %v795
      %v886 = vpop.f32.mrf.mxu0
      %v887 = vadd.f32 0.0, %v886
      %v888 = vpop.f32.mrf.mxu0
      %v889 = vpop.f32.mrf.mxu0
      %v890 = vadd.f32 0.0, %v889
      %v891 = vpop.f32.mrf.mxu0
      %892 = vmatprep.mubr.bf16.mxu0 0
      %893 = vmatmul.mubr.bf16.gmra.mxu0 %v798
      %v894 = vpop.f32.mrf.mxu0
      %v895 = vadd.f32 0.0, %v894
      %v896 = vpop.f32.mrf.mxu0
      %v897 = vpop.f32.mrf.mxu0
      %v898 = vadd.f32 0.0, %v897
      %v899 = vpop.f32.mrf.mxu0
      %900 = vmatprep.mubr.bf16.mxu0 0
      %901 = vmatmul.mubr.bf16.gmra.mxu0 %v801
      %v902 = vpop.f32.mrf.mxu0
      %v903 = vadd.f32 0.0, %v902
      %v904 = vpop.f32.mrf.mxu0
      %v905 = vpop.f32.mrf.mxu0
      %v906 = vadd.f32 0.0, %v905
      %v907 = vpop.f32.mrf.mxu0
      %908 = vmatprep.mubr.bf16.mxu0 0
      %909 = vmatmul.mubr.bf16.gmra.mxu0 %v804
      %v910 = vpop.f32.mrf.mxu0
      %v911 = vadd.f32 0.0, %v910
      %v912 = vpop.f32.mrf.mxu0
      %v913 = vpop.f32.mrf.mxu0
      %v914 = vadd.f32 0.0, %v913
      %v915 = vpop.f32.mrf.mxu0
      %916 = vmatprep.mubr.bf16.mxu0 0
      %917 = vmatmul.mubr.bf16.gmra.mxu0 %v807
      %v918 = vpop.f32.mrf.mxu0
      %v919 = vadd.f32 0.0, %v918
      %v920 = vpop.f32.mrf.mxu0
      %v921 = vpop.f32.mrf.mxu0
      %v922 = vadd.f32 0.0, %v921
      %v923 = vpop.f32.mrf.mxu0
      %924 = vmatprep.mubr.bf16.mxu0 0
      %925 = vmatmul.mubr.bf16.gmra.mxu0 %v810
      %v926 = vpop.f32.mrf.mxu0
      %v927 = vadd.f32 0.0, %v926
      %v928 = vpop.f32.mrf.mxu0
      %v929 = vpop.f32.mrf.mxu0
      %v930 = vadd.f32 0.0, %v929
      %v931 = vpop.f32.mrf.mxu0
      %932 = vmatprep.mubr.bf16.mxu0 0
      %933 = vmatmul.mubr.bf16.gmra.mxu0 %v813
      %v934 = vpop.f32.mrf.mxu0
      %v935 = vadd.f32 0.0, %v934
      %v936 = vpop.f32.mrf.mxu0
      %v937 = vpop.f32.mrf.mxu0
      %v938 = vadd.f32 0.0, %v937
      %v939 = vpop.f32.mrf.mxu0
      %940 = vmatprep.mubr.bf16.mxu0 0
      %941 = vmatmul.mubr.bf16.gmra.mxu0 %v816
      %v942 = vpop.f32.mrf.mxu0
      %v943 = vadd.f32 0.0, %v942
      %v944 = vpop.f32.mrf.mxu0
      %v945 = vpop.f32.mrf.mxu0
      %v946 = vadd.f32 0.0, %v945
      %v947 = vpop.f32.mrf.mxu0
      %948 = vmatprep.mubr.bf16.mxu0 0
      %949 = vmatmul.mubr.bf16.gmra.mxu0 %v819
      %v950 = vpop.f32.mrf.mxu0
      %v951 = vadd.f32 0.0, %v950
      %v952 = vpop.f32.mrf.mxu0
      %v953 = vpop.f32.mrf.mxu0
      %v954 = vadd.f32 0.0, %v953
      %v955 = vpop.f32.mrf.mxu0
      %956 = vmatprep.mubr.bf16.mxu0 0
      %957 = vmatmul.mubr.bf16.gmra.mxu0 %v822
      %v958 = vpop.f32.mrf.mxu0
      %v959 = vadd.f32 0.0, %v958
      %v960 = vpop.f32.mrf.mxu0
      %v961 = vpop.f32.mrf.mxu0
      %v962 = vadd.f32 0.0, %v961
      %v963 = vpop.f32.mrf.mxu0
      %964 = vmatprep.mubr.bf16.mxu0 0
      %965 = vmatmul.mubr.bf16.gmra.mxu0 %v825
      %v966 = vpop.f32.mrf.mxu0
      %v967 = vadd.f32 0.0, %v966
      %v968 = vpop.f32.mrf.mxu0
      %v969 = vpop.f32.mrf.mxu0
      %v970 = vadd.f32 0.0, %v969
      %v971 = vpop.f32.mrf.mxu0
      %972 = vmatprep.mubr.bf16.mxu0 0
      %973 = vmatmul.mubr.bf16.gmra.mxu0 %v828
      %v974 = vpop.f32.mrf.mxu0
      %v975 = vadd.f32 0.0, %v974
      %v976 = vpop.f32.mrf.mxu0
      %v977 = vpop.f32.mrf.mxu0
      %v978 = vadd.f32 0.0, %v977
      %v979 = vpop.f32.mrf.mxu0
      %980 = vmatprep.mubr.bf16.mxu0 0
      %981 = vmatmul.mubr.bf16.gmra.mxu0 %v831
      %v982 = vpop.f32.mrf.mxu0
      %v983 = vadd.f32 0.0, %v982
      %v984 = vpop.f32.mrf.mxu0
      %v985 = vpop.f32.mrf.mxu0
      %v986 = vadd.f32 0.0, %v985
      %v987 = vpop.f32.mrf.mxu0
      %988 = vmatprep.mubr.bf16.mxu0 0
      %989 = vmatmul.mubr.bf16.gmra.mxu0 %v834
      %v990 = vpop.f32.mrf.mxu0
      %v991 = vadd.f32 0.0, %v990
      %v992 = vpop.f32.mrf.mxu0
      %v993 = vpop.f32.mrf.mxu0
      %v994 = vadd.f32 0.0, %v993
      %v995 = vpop.f32.mrf.mxu0
      %996 = vdwg.mxu0
      %v998 = vsel %vm787, %v659, 0
      %v1001 = vsel %vm787, %v660, 0
      %v1004 = vsel %vm787, %v661, 0
      %v1007 = vsel %vm787, %v662, 0
      %v1010 = vsel %vm787, %v663, 0
      %v1013 = vsel %vm787, %v664, 0
      %v1016 = vsel %vm787, %v665, 0
      %v1019 = vsel %vm787, %v666, 0
      %v1022 = vsel %vm787, %v667, 0
      %v1025 = vsel %vm787, %v668, 0
      %v1028 = vsel %vm787, %v669, 0
      %v1031 = vsel %vm787, %v670, 0
      %v1034 = vsel %vm787, %v671, 0
      %v1037 = vsel %vm787, %v672, 0
      %v1040 = vsel %vm787, %v673, 0
      %v1043 = vsel %vm787, %v674, 0
      %1045 = vmatprep.subr.bf16.mxu0 0
      %1046 = vmatpush1.bf16.msra.mxu0 0
      %1047 = vmatprep.subr.bf16.mxu0 0
      %1048 = vmatpush1.bf16.msra.mxu0 0
      %1049 = vmatprep.subr.bf16.mxu0 0
      %1050 = vmatpush1.bf16.msra.mxu0 0
      %1051 = vmatprep.subr.bf16.mxu0 0
      %1052 = vmatpush1.bf16.msra.mxu0 0
      %1053 = vmatprep.subr.bf16.mxu0 0
      %1054 = vmatpush1.bf16.msra.mxu0 %v782
      %1055 = vmatprep.subr.bf16.mxu0 0
      %1056 = vmatpush1.bf16.msra.mxu0 %v781
      %1057 = vmatprep.subr.bf16.mxu0 0
      %1058 = vmatpush1.bf16.msra.mxu0 %v780
      %1059 = vmatprep.subr.bf16.mxu0 0
      %1060 = vmatpush1.bf16.msra.mxu0 %v779
      %1061 = vmatprep.subr.bf16.mxu0 0
      %1062 = vmatpush2.bf16.msra.mxu0 0
      %1063 = vmatprep.subr.bf16.mxu0 0
      %1064 = vmatpush2.bf16.msra.mxu0 0
      %1065 = vmatprep.subr.bf16.mxu0 0
      %1066 = vmatpush2.bf16.msra.mxu0 0
      %1067 = vmatprep.subr.bf16.mxu0 0
      %1068 = vmatpush2.bf16.msra.mxu0 0
      %1069 = vmatprep.subr.bf16.mxu0 0
      %1070 = vmatpush2.bf16.msra.mxu0 0
      %1071 = vmatprep.subr.bf16.mxu0 0
      %1072 = vmatpush2.bf16.msra.mxu0 0
      %1073 = vmatprep.subr.bf16.mxu0 0
      %1074 = vmatpush2.bf16.msra.mxu0 0
      %1075 = vmatprep.subr.bf16.mxu0 0
      %1076 = vmatpush2.bf16.msra.mxu0 0
      %1077 = vmatprep.mubr.bf16.mxu0 0
      %1078 = vmatmul.mubr.bf16.gmra.mxu0 %v998
      %v1079 = vpop.f32.mrf.mxu0
      %v1080 = vadd.f32 %v871, %v1079
      %v1081 = vpop.f32.mrf.mxu0
      %v1082 = vpop.f32.mrf.mxu0
      %v1083 = vadd.f32 %v874, %v1082
      %v1084 = vpop.f32.mrf.mxu0
      %1085 = vmatprep.mubr.bf16.mxu0 0
      %1086 = vmatmul.mubr.bf16.gmra.mxu0 %v1001
      %v1087 = vpop.f32.mrf.mxu0
      %v1088 = vadd.f32 %v879, %v1087
      %v1089 = vpop.f32.mrf.mxu0
      %v1090 = vpop.f32.mrf.mxu0
      %v1091 = vadd.f32 %v882, %v1090
      %v1092 = vpop.f32.mrf.mxu0
      %1093 = vmatprep.mubr.bf16.mxu0 0
      %1094 = vmatmul.mubr.bf16.gmra.mxu0 %v1004
      %v1095 = vpop.f32.mrf.mxu0
      %v1096 = vadd.f32 %v887, %v1095
      %v1097 = vpop.f32.mrf.mxu0
      %v1098 = vpop.f32.mrf.mxu0
      %v1099 = vadd.f32 %v890, %v1098
      %v1100 = vpop.f32.mrf.mxu0
      %1101 = vmatprep.mubr.bf16.mxu0 0
      %1102 = vmatmul.mubr.bf16.gmra.mxu0 %v1007
      %v1103 = vpop.f32.mrf.mxu0
      %v1104 = vadd.f32 %v895, %v1103
      %v1105 = vpop.f32.mrf.mxu0
      %v1106 = vpop.f32.mrf.mxu0
      %v1107 = vadd.f32 %v898, %v1106
      %v1108 = vpop.f32.mrf.mxu0
      %1109 = vmatprep.mubr.bf16.mxu0 0
      %1110 = vmatmul.mubr.bf16.gmra.mxu0 %v1010
      %v1111 = vpop.f32.mrf.mxu0
      %v1112 = vadd.f32 %v903, %v1111
      %v1113 = vpop.f32.mrf.mxu0
      %v1114 = vpop.f32.mrf.mxu0
      %v1115 = vadd.f32 %v906, %v1114
      %v1116 = vpop.f32.mrf.mxu0
      %1117 = vmatprep.mubr.bf16.mxu0 0
      %1118 = vmatmul.mubr.bf16.gmra.mxu0 %v1013
      %v1119 = vpop.f32.mrf.mxu0
      %v1120 = vadd.f32 %v911, %v1119
      %v1121 = vpop.f32.mrf.mxu0
      %v1122 = vpop.f32.mrf.mxu0
      %v1123 = vadd.f32 %v914, %v1122
      %v1124 = vpop.f32.mrf.mxu0
      %1125 = vmatprep.mubr.bf16.mxu0 0
      %1126 = vmatmul.mubr.bf16.gmra.mxu0 %v1016
      %v1127 = vpop.f32.mrf.mxu0
      %v1128 = vadd.f32 %v919, %v1127
      %v1129 = vpop.f32.mrf.mxu0
      %v1130 = vpop.f32.mrf.mxu0
      %v1131 = vadd.f32 %v922, %v1130
      %v1132 = vpop.f32.mrf.mxu0
      %1133 = vmatprep.mubr.bf16.mxu0 0
      %1134 = vmatmul.mubr.bf16.gmra.mxu0 %v1019
      %v1135 = vpop.f32.mrf.mxu0
      %v1136 = vadd.f32 %v927, %v1135
      %v1137 = vpop.f32.mrf.mxu0
      %v1138 = vpop.f32.mrf.mxu0
      %v1139 = vadd.f32 %v930, %v1138
      %v1140 = vpop.f32.mrf.mxu0
      %1141 = vmatprep.mubr.bf16.mxu0 0
      %1142 = vmatmul.mubr.bf16.gmra.mxu0 %v1022
      %v1143 = vpop.f32.mrf.mxu0
      %v1144 = vadd.f32 %v935, %v1143
      %v1145 = vpop.f32.mrf.mxu0
      %v1146 = vpop.f32.mrf.mxu0
      %v1147 = vadd.f32 %v938, %v1146
      %v1148 = vpop.f32.mrf.mxu0
      %1149 = vmatprep.mubr.bf16.mxu0 0
      %1150 = vmatmul.mubr.bf16.gmra.mxu0 %v1025
      %v1151 = vpop.f32.mrf.mxu0
      %v1152 = vadd.f32 %v943, %v1151
      %v1153 = vpop.f32.mrf.mxu0
      %v1154 = vpop.f32.mrf.mxu0
      %v1155 = vadd.f32 %v946, %v1154
      %v1156 = vpop.f32.mrf.mxu0
      %1157 = vmatprep.mubr.bf16.mxu0 0
      %1158 = vmatmul.mubr.bf16.gmra.mxu0 %v1028
      %v1159 = vpop.f32.mrf.mxu0
      %v1160 = vadd.f32 %v951, %v1159
      %v1161 = vpop.f32.mrf.mxu0
      %v1162 = vpop.f32.mrf.mxu0
      %v1163 = vadd.f32 %v954, %v1162
      %v1164 = vpop.f32.mrf.mxu0
      %1165 = vmatprep.mubr.bf16.mxu0 0
      %1166 = vmatmul.mubr.bf16.gmra.mxu0 %v1031
      %v1167 = vpop.f32.mrf.mxu0
      %v1168 = vadd.f32 %v959, %v1167
      %v1169 = vpop.f32.mrf.mxu0
      %v1170 = vpop.f32.mrf.mxu0
      %v1171 = vadd.f32 %v962, %v1170
      %v1172 = vpop.f32.mrf.mxu0
      %1173 = vmatprep.mubr.bf16.mxu0 0
      %1174 = vmatmul.mubr.bf16.gmra.mxu0 %v1034
      %v1175 = vpop.f32.mrf.mxu0
      %v1176 = vadd.f32 %v967, %v1175
      %v1177 = vpop.f32.mrf.mxu0
      %v1178 = vpop.f32.mrf.mxu0
      %v1179 = vadd.f32 %v970, %v1178
      %v1180 = vpop.f32.mrf.mxu0
      %1181 = vmatprep.mubr.bf16.mxu0 0
      %1182 = vmatmul.mubr.bf16.gmra.mxu0 %v1037
      %v1183 = vpop.f32.mrf.mxu0
      %v1184 = vadd.f32 %v975, %v1183
      %v1185 = vpop.f32.mrf.mxu0
      %v1186 = vpop.f32.mrf.mxu0
      %v1187 = vadd.f32 %v978, %v1186
      %v1188 = vpop.f32.mrf.mxu0
      %1189 = vmatprep.mubr.bf16.mxu0 0
      %1190 = vmatmul.mubr.bf16.gmra.mxu0 %v1040
      %v1191 = vpop.f32.mrf.mxu0
      %v1192 = vadd.f32 %v983, %v1191
      %v1193 = vpop.f32.mrf.mxu0
      %v1194 = vpop.f32.mrf.mxu0
      %v1195 = vadd.f32 %v986, %v1194
      %v1196 = vpop.f32.mrf.mxu0
      %1197 = vmatprep.mubr.bf16.mxu0 0
      %1198 = vmatmul.mubr.bf16.gmra.mxu0 %v1043
      %v1199 = vpop.f32.mrf.mxu0
      %v1200 = vadd.f32 %v991, %v1199
      %v1201 = vpop.f32.mrf.mxu0
      %v1202 = vpop.f32.mrf.mxu0
      %v1203 = vadd.f32 %v994, %v1202
      %v1204 = vpop.f32.mrf.mxu0
      %1205 = vdwg.mxu0
      %v1206 = vmul.f32 %v1080, 0.5
      %v1207 = vmul.f32 %v1083, 0.5
      %v1208 = vmul.f32 %v1088, 0.5
      %v1209 = vmul.f32 %v1091, 0.5
      %v1210 = vmul.f32 %v1096, 0.5
      %v1211 = vmul.f32 %v1099, 0.5
      %v1212 = vmul.f32 %v1104, 0.5
      %v1213 = vmul.f32 %v1107, 0.5
      %v1214 = vmul.f32 %v1112, 0.5
      %v1215 = vmul.f32 %v1115, 0.5
      %v1216 = vmul.f32 %v1120, 0.5
      %v1217 = vmul.f32 %v1123, 0.5
      %v1218 = vmul.f32 %v1128, 0.5
      %v1219 = vmul.f32 %v1131, 0.5
      %v1220 = vmul.f32 %v1136, 0.5
      %v1221 = vmul.f32 %v1139, 0.5
      %v1222 = vmul.f32 %v1144, 0.5
      %v1223 = vmul.f32 %v1147, 0.5
      %v1224 = vmul.f32 %v1152, 0.5
      %v1225 = vmul.f32 %v1155, 0.5
      %v1226 = vmul.f32 %v1160, 0.5
      %v1227 = vmul.f32 %v1163, 0.5
      %v1228 = vmul.f32 %v1168, 0.5
      %v1229 = vmul.f32 %v1171, 0.5
      %v1230 = vmul.f32 %v1176, 0.5
      %v1231 = vmul.f32 %v1179, 0.5
      %v1232 = vmul.f32 %v1184, 0.5
      %v1233 = vmul.f32 %v1187, 0.5
      %v1234 = vmul.f32 %v1192, 0.5
      %v1235 = vmul.f32 %v1195, 0.5
      %v1236 = vmul.f32 %v1200, 0.5
      %v1237 = vmul.f32 %v1203, 0.5
      %v1238 = vmul.f32 %v1080, 0.70710677
      %v1239 = vmul.f32 %v1083, 0.70710677
      %v1240 = vmul.f32 %v1088, 0.70710677
      %v1241 = vmul.f32 %v1091, 0.70710677
      %v1242 = vmul.f32 %v1096, 0.70710677
      %v1243 = vmul.f32 %v1099, 0.70710677
      %v1244 = vmul.f32 %v1104, 0.70710677
      %v1245 = vmul.f32 %v1107, 0.70710677
      %v1246 = vmul.f32 %v1112, 0.70710677
      %v1247 = vmul.f32 %v1115, 0.70710677
      %v1248 = vmul.f32 %v1120, 0.70710677
      %v1249 = vmul.f32 %v1123, 0.70710677
      %v1250 = vmul.f32 %v1128, 0.70710677
      %v1251 = vmul.f32 %v1131, 0.70710677
      %v1252 = vmul.f32 %v1136, 0.70710677
      %v1253 = vmul.f32 %v1139, 0.70710677
      %v1254 = vmul.f32 %v1144, 0.70710677
      %v1255 = vmul.f32 %v1147, 0.70710677
      %v1256 = vmul.f32 %v1152, 0.70710677
      %v1257 = vmul.f32 %v1155, 0.70710677
      %v1258 = vmul.f32 %v1160, 0.70710677
      %v1259 = vmul.f32 %v1163, 0.70710677
      %v1260 = vmul.f32 %v1168, 0.70710677
      %v1261 = vmul.f32 %v1171, 0.70710677
      %v1262 = vmul.f32 %v1176, 0.70710677
      %v1263 = vmul.f32 %v1179, 0.70710677
      %v1264 = vmul.f32 %v1184, 0.70710677
      %v1265 = vmul.f32 %v1187, 0.70710677
      %v1266 = vmul.f32 %v1192, 0.70710677
      %v1267 = vmul.f32 %v1195, 0.70710677
      %v1268 = vmul.f32 %v1200, 0.70710677
      %v1269 = vmul.f32 %v1203, 0.70710677
      %vm1270 = vcmp.ge.f32.partialorder %v1238, 0.0
      %vm1271 = vcmp.ge.f32.partialorder %v1239, 0.0
      %vm1272 = vcmp.ge.f32.partialorder %v1240, 0.0
      %vm1273 = vcmp.ge.f32.partialorder %v1241, 0.0
      %vm1274 = vcmp.ge.f32.partialorder %v1242, 0.0
      %vm1275 = vcmp.ge.f32.partialorder %v1243, 0.0
      %vm1276 = vcmp.ge.f32.partialorder %v1244, 0.0
      %vm1277 = vcmp.ge.f32.partialorder %v1245, 0.0
      %vm1278 = vcmp.ge.f32.partialorder %v1246, 0.0
      %vm1279 = vcmp.ge.f32.partialorder %v1247, 0.0
      %vm1280 = vcmp.ge.f32.partialorder %v1248, 0.0
      %vm1281 = vcmp.ge.f32.partialorder %v1249, 0.0
      %vm1282 = vcmp.ge.f32.partialorder %v1250, 0.0
      %vm1283 = vcmp.ge.f32.partialorder %v1251, 0.0
      %vm1284 = vcmp.ge.f32.partialorder %v1252, 0.0
      %vm1285 = vcmp.ge.f32.partialorder %v1253, 0.0
      %vm1286 = vcmp.ge.f32.partialorder %v1254, 0.0
      %vm1287 = vcmp.ge.f32.partialorder %v1255, 0.0
      %vm1288 = vcmp.ge.f32.partialorder %v1256, 0.0
      %vm1289 = vcmp.ge.f32.partialorder %v1257, 0.0
      %vm1290 = vcmp.ge.f32.partialorder %v1258, 0.0
      %vm1291 = vcmp.ge.f32.partialorder %v1259, 0.0
      %vm1292 = vcmp.ge.f32.partialorder %v1260, 0.0
      %vm1293 = vcmp.ge.f32.partialorder %v1261, 0.0
      %vm1294 = vcmp.ge.f32.partialorder %v1262, 0.0
      %vm1295 = vcmp.ge.f32.partialorder %v1263, 0.0
      %vm1296 = vcmp.ge.f32.partialorder %v1264, 0.0
      %vm1297 = vcmp.ge.f32.partialorder %v1265, 0.0
      %vm1298 = vcmp.ge.f32.partialorder %v1266, 0.0
      %vm1299 = vcmp.ge.f32.partialorder %v1267, 0.0
      %vm1300 = vcmp.ge.f32.partialorder %v1268, 0.0
      %vm1301 = vcmp.ge.f32.partialorder %v1269, 0.0
      %v1302 = vsel %vm1270, 1.0, -1.0
      %v1303 = vsel %vm1271, 1.0, -1.0
      %v1304 = vsel %vm1272, 1.0, -1.0
      %v1305 = vsel %vm1273, 1.0, -1.0
      %v1306 = vsel %vm1274, 1.0, -1.0
      %v1307 = vsel %vm1275, 1.0, -1.0
      %v1308 = vsel %vm1276, 1.0, -1.0
      %v1309 = vsel %vm1277, 1.0, -1.0
      %v1310 = vsel %vm1278, 1.0, -1.0
      %v1311 = vsel %vm1279, 1.0, -1.0
      %v1312 = vsel %vm1280, 1.0, -1.0
      %v1313 = vsel %vm1281, 1.0, -1.0
      %v1314 = vsel %vm1282, 1.0, -1.0
      %v1315 = vsel %vm1283, 1.0, -1.0
      %v1316 = vsel %vm1284, 1.0, -1.0
      %v1317 = vsel %vm1285, 1.0, -1.0
      %v1318 = vsel %vm1286, 1.0, -1.0
      %v1319 = vsel %vm1287, 1.0, -1.0
      %v1320 = vsel %vm1288, 1.0, -1.0
      %v1321 = vsel %vm1289, 1.0, -1.0
      %v1322 = vsel %vm1290, 1.0, -1.0
      %v1323 = vsel %vm1291, 1.0, -1.0
      %v1324 = vsel %vm1292, 1.0, -1.0
      %v1325 = vsel %vm1293, 1.0, -1.0
      %v1326 = vsel %vm1294, 1.0, -1.0
      %v1327 = vsel %vm1295, 1.0, -1.0
      %v1328 = vsel %vm1296, 1.0, -1.0
      %v1329 = vsel %vm1297, 1.0, -1.0
      %v1330 = vsel %vm1298, 1.0, -1.0
      %v1331 = vsel %vm1299, 1.0, -1.0
      %v1332 = vsel %vm1300, 1.0, -1.0
      %v1333 = vsel %vm1301, 1.0, -1.0
      %v1334 = vand.u32 2147483647, %v1238
      %v1335 = vand.u32 2147483647, %v1239
      %v1336 = vand.u32 2147483647, %v1240
      %v1337 = vand.u32 2147483647, %v1241
      %v1338 = vand.u32 2147483647, %v1242
      %v1339 = vand.u32 2147483647, %v1243
      %v1340 = vand.u32 2147483647, %v1244
      %v1341 = vand.u32 2147483647, %v1245
      %v1342 = vand.u32 2147483647, %v1246
      %v1343 = vand.u32 2147483647, %v1247
      %v1344 = vand.u32 2147483647, %v1248
      %v1345 = vand.u32 2147483647, %v1249
      %v1346 = vand.u32 2147483647, %v1250
      %v1347 = vand.u32 2147483647, %v1251
      %v1348 = vand.u32 2147483647, %v1252
      %v1349 = vand.u32 2147483647, %v1253
      %v1350 = vand.u32 2147483647, %v1254
      %v1351 = vand.u32 2147483647, %v1255
      %v1352 = vand.u32 2147483647, %v1256
      %v1353 = vand.u32 2147483647, %v1257
      %v1354 = vand.u32 2147483647, %v1258
      %v1355 = vand.u32 2147483647, %v1259
      %v1356 = vand.u32 2147483647, %v1260
      %v1357 = vand.u32 2147483647, %v1261
      %v1358 = vand.u32 2147483647, %v1262
      %v1359 = vand.u32 2147483647, %v1263
      %v1360 = vand.u32 2147483647, %v1264
      %v1361 = vand.u32 2147483647, %v1265
      %v1362 = vand.u32 2147483647, %v1266
      %v1363 = vand.u32 2147483647, %v1267
      %v1364 = vand.u32 2147483647, %v1268
      %v1365 = vand.u32 2147483647, %v1269
      %v1366 = vmul.f32 %v1334, 0.3275911
      %v1367 = vmul.f32 %v1335, 0.3275911
      %v1368 = vmul.f32 %v1336, 0.3275911
      %v1369 = vmul.f32 %v1337, 0.3275911
      %v1370 = vmul.f32 %v1338, 0.3275911
      %v1371 = vmul.f32 %v1339, 0.3275911
      %v1372 = vmul.f32 %v1340, 0.3275911
      %v1373 = vmul.f32 %v1341, 0.3275911
      %v1374 = vmul.f32 %v1342, 0.3275911
      %v1375 = vmul.f32 %v1343, 0.3275911
      %v1376 = vmul.f32 %v1344, 0.3275911
      %v1377 = vmul.f32 %v1345, 0.3275911
      %v1378 = vmul.f32 %v1346, 0.3275911
      %v1379 = vmul.f32 %v1347, 0.3275911
      %v1380 = vmul.f32 %v1348, 0.3275911
      %v1381 = vmul.f32 %v1349, 0.3275911
      %v1382 = vmul.f32 %v1350, 0.3275911
      %v1383 = vmul.f32 %v1351, 0.3275911
      %v1384 = vmul.f32 %v1352, 0.3275911
      %v1385 = vmul.f32 %v1353, 0.3275911
      %v1386 = vmul.f32 %v1354, 0.3275911
      %v1387 = vmul.f32 %v1355, 0.3275911
      %v1388 = vmul.f32 %v1356, 0.3275911
      %v1389 = vmul.f32 %v1357, 0.3275911
      %v1390 = vmul.f32 %v1358, 0.3275911
      %v1391 = vmul.f32 %v1359, 0.3275911
      %v1392 = vmul.f32 %v1360, 0.3275911
      %v1393 = vmul.f32 %v1361, 0.3275911
      %v1394 = vmul.f32 %v1362, 0.3275911
      %v1395 = vmul.f32 %v1363, 0.3275911
      %v1396 = vmul.f32 %v1364, 0.3275911
      %v1397 = vmul.f32 %v1365, 0.3275911
      %v1398 = vadd.f32 %v1366, 1.0
      %v1399 = vadd.f32 %v1367, 1.0
      %v1400 = vadd.f32 %v1368, 1.0
      %v1401 = vadd.f32 %v1369, 1.0
      %v1402 = vadd.f32 %v1370, 1.0
      %v1403 = vadd.f32 %v1371, 1.0
      %v1404 = vadd.f32 %v1372, 1.0
      %v1405 = vadd.f32 %v1373, 1.0
      %v1406 = vadd.f32 %v1374, 1.0
      %v1407 = vadd.f32 %v1375, 1.0
      %v1408 = vadd.f32 %v1376, 1.0
      %v1409 = vadd.f32 %v1377, 1.0
      %v1410 = vadd.f32 %v1378, 1.0
      %v1411 = vadd.f32 %v1379, 1.0
      %v1412 = vadd.f32 %v1380, 1.0
      %v1413 = vadd.f32 %v1381, 1.0
      %v1414 = vadd.f32 %v1382, 1.0
      %v1415 = vadd.f32 %v1383, 1.0
      %v1416 = vadd.f32 %v1384, 1.0
      %v1417 = vadd.f32 %v1385, 1.0
      %v1418 = vadd.f32 %v1386, 1.0
      %v1419 = vadd.f32 %v1387, 1.0
      %v1420 = vadd.f32 %v1388, 1.0
      %v1421 = vadd.f32 %v1389, 1.0
      %v1422 = vadd.f32 %v1390, 1.0
      %v1423 = vadd.f32 %v1391, 1.0
      %v1424 = vadd.f32 %v1392, 1.0
      %v1425 = vadd.f32 %v1393, 1.0
      %v1426 = vadd.f32 %v1394, 1.0
      %v1427 = vadd.f32 %v1395, 1.0
      %v1428 = vadd.f32 %v1396, 1.0
      %v1429 = vadd.f32 %v1397, 1.0
      %v1430 = vrcp.pop %v1398
      %v1431 = vmul.f32 1.0, %v1430
      %v1432 = vrcp.pop %v1399
      %v1433 = vmul.f32 1.0, %v1432
      %v1434 = vrcp.pop %v1400
      %v1435 = vmul.f32 1.0, %v1434
      %v1436 = vrcp.pop %v1401
      %v1437 = vmul.f32 1.0, %v1436
      %v1438 = vrcp.pop %v1402
      %v1439 = vmul.f32 1.0, %v1438
      %v1440 = vrcp.pop %v1403
      %v1441 = vmul.f32 1.0, %v1440
      %v1442 = vrcp.pop %v1404
      %v1443 = vmul.f32 1.0, %v1442
      %v1444 = vrcp.pop %v1405
      %v1445 = vmul.f32 1.0, %v1444
      %v1446 = vrcp.pop %v1406
      %v1447 = vmul.f32 1.0, %v1446
      %v1448 = vrcp.pop %v1407
      %v1449 = vmul.f32 1.0, %v1448
      %v1450 = vrcp.pop %v1408
      %v1451 = vmul.f32 1.0, %v1450
      %v1452 = vrcp.pop %v1409
      %v1453 = vmul.f32 1.0, %v1452
      %v1454 = vrcp.pop %v1410
      %v1455 = vmul.f32 1.0, %v1454
      %v1456 = vrcp.pop %v1411
      %v1457 = vmul.f32 1.0, %v1456
      %v1458 = vrcp.pop %v1412
      %v1459 = vmul.f32 1.0, %v1458
      %v1460 = vrcp.pop %v1413
      %v1461 = vmul.f32 1.0, %v1460
      %v1462 = vrcp.pop %v1414
      %v1463 = vmul.f32 1.0, %v1462
      %v1464 = vrcp.pop %v1415
      %v1465 = vmul.f32 1.0, %v1464
      %v1466 = vrcp.pop %v1416
      %v1467 = vmul.f32 1.0, %v1466
      %v1468 = vrcp.pop %v1417
      %v1469 = vmul.f32 1.0, %v1468
      %v1470 = vrcp.pop %v1418
      %v1471 = vmul.f32 1.0, %v1470
      %v1472 = vrcp.pop %v1419
      %v1473 = vmul.f32 1.0, %v1472
      %v1474 = vrcp.pop %v1420
      %v1475 = vmul.f32 1.0, %v1474
      %v1476 = vrcp.pop %v1421
      %v1477 = vmul.f32 1.0, %v1476
      %v1478 = vrcp.pop %v1422
      %v1479 = vmul.f32 1.0, %v1478
      %v1480 = vrcp.pop %v1423
      %v1481 = vmul.f32 1.0, %v1480
      %v1482 = vrcp.pop %v1424
      %v1483 = vmul.f32 1.0, %v1482
      %v1484 = vrcp.pop %v1425
      %v1485 = vmul.f32 1.0, %v1484
      %v1486 = vrcp.pop %v1426
      %v1487 = vmul.f32 1.0, %v1486
      %v1488 = vrcp.pop %v1427
      %v1489 = vmul.f32 1.0, %v1488
      %v1490 = vrcp.pop %v1428
      %v1491 = vmul.f32 1.0, %v1490
      %v1492 = vrcp.pop %v1429
      %v1493 = vmul.f32 1.0, %v1492
      %v1494 = vmul.f32 %v1431, 1.0614054
      %v1495 = vmul.f32 %v1433, 1.0614054
      %v1496 = vmul.f32 %v1435, 1.0614054
      %v1497 = vmul.f32 %v1437, 1.0614054
      %v1498 = vmul.f32 %v1439, 1.0614054
      %v1499 = vmul.f32 %v1441, 1.0614054
      %v1500 = vmul.f32 %v1443, 1.0614054
      %v1501 = vmul.f32 %v1445, 1.0614054
      %v1502 = vmul.f32 %v1447, 1.0614054
      %v1503 = vmul.f32 %v1449, 1.0614054
      %v1504 = vmul.f32 %v1451, 1.0614054
      %v1505 = vmul.f32 %v1453, 1.0614054
      %v1506 = vmul.f32 %v1455, 1.0614054
      %v1507 = vmul.f32 %v1457, 1.0614054
      %v1508 = vmul.f32 %v1459, 1.0614054
      %v1509 = vmul.f32 %v1461, 1.0614054
      %v1510 = vmul.f32 %v1463, 1.0614054
      %v1511 = vmul.f32 %v1465, 1.0614054
      %v1512 = vmul.f32 %v1467, 1.0614054
      %v1513 = vmul.f32 %v1469, 1.0614054
      %v1514 = vmul.f32 %v1471, 1.0614054
      %v1515 = vmul.f32 %v1473, 1.0614054
      %v1516 = vmul.f32 %v1475, 1.0614054
      %v1517 = vmul.f32 %v1477, 1.0614054
      %v1518 = vmul.f32 %v1479, 1.0614054
      %v1519 = vmul.f32 %v1481, 1.0614054
      %v1520 = vmul.f32 %v1483, 1.0614054
      %v1521 = vmul.f32 %v1485, 1.0614054
      %v1522 = vmul.f32 %v1487, 1.0614054
      %v1523 = vmul.f32 %v1489, 1.0614054
      %v1524 = vmul.f32 %v1491, 1.0614054
      %v1525 = vmul.f32 %v1493, 1.0614054
      %v1526 = vadd.f32 %v1494, -1.4531521
      %v1527 = vadd.f32 %v1495, -1.4531521
      %v1528 = vadd.f32 %v1496, -1.4531521
      %v1529 = vadd.f32 %v1497, -1.4531521
      %v1530 = vadd.f32 %v1498, -1.4531521
      %v1531 = vadd.f32 %v1499, -1.4531521
      %v1532 = vadd.f32 %v1500, -1.4531521
      %v1533 = vadd.f32 %v1501, -1.4531521
      %v1534 = vadd.f32 %v1502, -1.4531521
      %v1535 = vadd.f32 %v1503, -1.4531521
      %v1536 = vadd.f32 %v1504, -1.4531521
      %v1537 = vadd.f32 %v1505, -1.4531521
      %v1538 = vadd.f32 %v1506, -1.4531521
      %v1539 = vadd.f32 %v1507, -1.4531521
      %v1540 = vadd.f32 %v1508, -1.4531521
      %v1541 = vadd.f32 %v1509, -1.4531521
      %v1542 = vadd.f32 %v1510, -1.4531521
      %v1543 = vadd.f32 %v1511, -1.4531521
      %v1544 = vadd.f32 %v1512, -1.4531521
      %v1545 = vadd.f32 %v1513, -1.4531521
      %v1546 = vadd.f32 %v1514, -1.4531521
      %v1547 = vadd.f32 %v1515, -1.4531521
      %v1548 = vadd.f32 %v1516, -1.4531521
      %v1549 = vadd.f32 %v1517, -1.4531521
      %v1550 = vadd.f32 %v1518, -1.4531521
      %v1551 = vadd.f32 %v1519, -1.4531521
      %v1552 = vadd.f32 %v1520, -1.4531521
      %v1553 = vadd.f32 %v1521, -1.4531521
      %v1554 = vadd.f32 %v1522, -1.4531521
      %v1555 = vadd.f32 %v1523, -1.4531521
      %v1556 = vadd.f32 %v1524, -1.4531521
      %v1557 = vadd.f32 %v1525, -1.4531521
      %v1558 = vmul.f32 %v1431, %v1526
      %v1559 = vmul.f32 %v1433, %v1527
      %v1560 = vmul.f32 %v1435, %v1528
      %v1561 = vmul.f32 %v1437, %v1529
      %v1562 = vmul.f32 %v1439, %v1530
      %v1563 = vmul.f32 %v1441, %v1531
      %v1564 = vmul.f32 %v1443, %v1532
      %v1565 = vmul.f32 %v1445, %v1533
      %v1566 = vmul.f32 %v1447, %v1534
      %v1567 = vmul.f32 %v1449, %v1535
      %v1568 = vmul.f32 %v1451, %v1536
      %v1569 = vmul.f32 %v1453, %v1537
      %v1570 = vmul.f32 %v1455, %v1538
      %v1571 = vmul.f32 %v1457, %v1539
      %v1572 = vmul.f32 %v1459, %v1540
      %v1573 = vmul.f32 %v1461, %v1541
      %v1574 = vmul.f32 %v1463, %v1542
      %v1575 = vmul.f32 %v1465, %v1543
      %v1576 = vmul.f32 %v1467, %v1544
      %v1577 = vmul.f32 %v1469, %v1545
      %v1578 = vmul.f32 %v1471, %v1546
      %v1579 = vmul.f32 %v1473, %v1547
      %v1580 = vmul.f32 %v1475, %v1548
      %v1581 = vmul.f32 %v1477, %v1549
      %v1582 = vmul.f32 %v1479, %v1550
      %v1583 = vmul.f32 %v1481, %v1551
      %v1584 = vmul.f32 %v1483, %v1552
      %v1585 = vmul.f32 %v1485, %v1553
      %v1586 = vmul.f32 %v1487, %v1554
      %v1587 = vmul.f32 %v1489, %v1555
      %v1588 = vmul.f32 %v1491, %v1556
      %v1589 = vmul.f32 %v1493, %v1557
      %v1590 = vadd.f32 %v1558, 1.4214138
      %v1591 = vadd.f32 %v1559, 1.4214138
      %v1592 = vadd.f32 %v1560, 1.4214138
      %v1593 = vadd.f32 %v1561, 1.4214138
      %v1594 = vadd.f32 %v1562, 1.4214138
      %v1595 = vadd.f32 %v1563, 1.4214138
      %v1596 = vadd.f32 %v1564, 1.4214138
      %v1597 = vadd.f32 %v1565, 1.4214138
      %v1598 = vadd.f32 %v1566, 1.4214138
      %v1599 = vadd.f32 %v1567, 1.4214138
      %v1600 = vadd.f32 %v1568, 1.4214138
      %v1601 = vadd.f32 %v1569, 1.4214138
      %v1602 = vadd.f32 %v1570, 1.4214138
      %v1603 = vadd.f32 %v1571, 1.4214138
      %v1604 = vadd.f32 %v1572, 1.4214138
      %v1605 = vadd.f32 %v1573, 1.4214138
      %v1606 = vadd.f32 %v1574, 1.4214138
      %v1607 = vadd.f32 %v1575, 1.4214138
      %v1608 = vadd.f32 %v1576, 1.4214138
      %v1609 = vadd.f32 %v1577, 1.4214138
      %v1610 = vadd.f32 %v1578, 1.4214138
      %v1611 = vadd.f32 %v1579, 1.4214138
      %v1612 = vadd.f32 %v1580, 1.4214138
      %v1613 = vadd.f32 %v1581, 1.4214138
      %v1614 = vadd.f32 %v1582, 1.4214138
      %v1615 = vadd.f32 %v1583, 1.4214138
      %v1616 = vadd.f32 %v1584, 1.4214138
      %v1617 = vadd.f32 %v1585, 1.4214138
      %v1618 = vadd.f32 %v1586, 1.4214138
      %v1619 = vadd.f32 %v1587, 1.4214138
      %v1620 = vadd.f32 %v1588, 1.4214138
      %v1621 = vadd.f32 %v1589, 1.4214138
      %v1622 = vmul.f32 %v1431, %v1590
      %v1623 = vmul.f32 %v1433, %v1591
      %v1624 = vmul.f32 %v1435, %v1592
      %v1625 = vmul.f32 %v1437, %v1593
      %v1626 = vmul.f32 %v1439, %v1594
      %v1627 = vmul.f32 %v1441, %v1595
      %v1628 = vmul.f32 %v1443, %v1596
      %v1629 = vmul.f32 %v1445, %v1597
      %v1630 = vmul.f32 %v1447, %v1598
      %v1631 = vmul.f32 %v1449, %v1599
      %v1632 = vmul.f32 %v1451, %v1600
      %v1633 = vmul.f32 %v1453, %v1601
      %v1634 = vmul.f32 %v1455, %v1602
      %v1635 = vmul.f32 %v1457, %v1603
      %v1636 = vmul.f32 %v1459, %v1604
      %v1637 = vmul.f32 %v1461, %v1605
      %v1638 = vmul.f32 %v1463, %v1606
      %v1639 = vmul.f32 %v1465, %v1607
      %v1640 = vmul.f32 %v1467, %v1608
      %v1641 = vmul.f32 %v1469, %v1609
      %v1642 = vmul.f32 %v1471, %v1610
      %v1643 = vmul.f32 %v1473, %v1611
      %v1644 = vmul.f32 %v1475, %v1612
      %v1645 = vmul.f32 %v1477, %v1613
      %v1646 = vmul.f32 %v1479, %v1614
      %v1647 = vmul.f32 %v1481, %v1615
      %v1648 = vmul.f32 %v1483, %v1616
      %v1649 = vmul.f32 %v1485, %v1617
      %v1650 = vmul.f32 %v1487, %v1618
      %v1651 = vmul.f32 %v1489, %v1619
      %v1652 = vmul.f32 %v1491, %v1620
      %v1653 = vmul.f32 %v1493, %v1621
      %v1654 = vadd.f32 %v1622, -0.28449672
      %v1655 = vadd.f32 %v1623, -0.28449672
      %v1656 = vadd.f32 %v1624, -0.28449672
      %v1657 = vadd.f32 %v1625, -0.28449672
      %v1658 = vadd.f32 %v1626, -0.28449672
      %v1659 = vadd.f32 %v1627, -0.28449672
      %v1660 = vadd.f32 %v1628, -0.28449672
      %v1661 = vadd.f32 %v1629, -0.28449672
      %v1662 = vadd.f32 %v1630, -0.28449672
      %v1663 = vadd.f32 %v1631, -0.28449672
      %v1664 = vadd.f32 %v1632, -0.28449672
      %v1665 = vadd.f32 %v1633, -0.28449672
      %v1666 = vadd.f32 %v1634, -0.28449672
      %v1667 = vadd.f32 %v1635, -0.28449672
      %v1668 = vadd.f32 %v1636, -0.28449672
      %v1669 = vadd.f32 %v1637, -0.28449672
      %v1670 = vadd.f32 %v1638, -0.28449672
      %v1671 = vadd.f32 %v1639, -0.28449672
      %v1672 = vadd.f32 %v1640, -0.28449672
      %v1673 = vadd.f32 %v1641, -0.28449672
      %v1674 = vadd.f32 %v1642, -0.28449672
      %v1675 = vadd.f32 %v1643, -0.28449672
      %v1676 = vadd.f32 %v1644, -0.28449672
      %v1677 = vadd.f32 %v1645, -0.28449672
      %v1678 = vadd.f32 %v1646, -0.28449672
      %v1679 = vadd.f32 %v1647, -0.28449672
      %v1680 = vadd.f32 %v1648, -0.28449672
      %v1681 = vadd.f32 %v1649, -0.28449672
      %v1682 = vadd.f32 %v1650, -0.28449672
      %v1683 = vadd.f32 %v1651, -0.28449672
      %v1684 = vadd.f32 %v1652, -0.28449672
      %v1685 = vadd.f32 %v1653, -0.28449672
      %v1686 = vmul.f32 %v1431, %v1654
      %v1687 = vmul.f32 %v1433, %v1655
      %v1688 = vmul.f32 %v1435, %v1656
      %v1689 = vmul.f32 %v1437, %v1657
      %v1690 = vmul.f32 %v1439, %v1658
      %v1691 = vmul.f32 %v1441, %v1659
      %v1692 = vmul.f32 %v1443, %v1660
      %v1693 = vmul.f32 %v1445, %v1661
      %v1694 = vmul.f32 %v1447, %v1662
      %v1695 = vmul.f32 %v1449, %v1663
      %v1696 = vmul.f32 %v1451, %v1664
      %v1697 = vmul.f32 %v1453, %v1665
      %v1698 = vmul.f32 %v1455, %v1666
      %v1699 = vmul.f32 %v1457, %v1667
      %v1700 = vmul.f32 %v1459, %v1668
      %v1701 = vmul.f32 %v1461, %v1669
      %v1702 = vmul.f32 %v1463, %v1670
      %v1703 = vmul.f32 %v1465, %v1671
      %v1704 = vmul.f32 %v1467, %v1672
      %v1705 = vmul.f32 %v1469, %v1673
      %v1706 = vmul.f32 %v1471, %v1674
      %v1707 = vmul.f32 %v1473, %v1675
      %v1708 = vmul.f32 %v1475, %v1676
      %v1709 = vmul.f32 %v1477, %v1677
      %v1710 = vmul.f32 %v1479, %v1678
      %v1711 = vmul.f32 %v1481, %v1679
      %v1712 = vmul.f32 %v1483, %v1680
      %v1713 = vmul.f32 %v1485, %v1681
      %v1714 = vmul.f32 %v1487, %v1682
      %v1715 = vmul.f32 %v1489, %v1683
      %v1716 = vmul.f32 %v1491, %v1684
      %v1717 = vmul.f32 %v1493, %v1685
      %v1718 = vadd.f32 %v1686, 0.2548296
      %v1719 = vadd.f32 %v1687, 0.2548296
      %v1720 = vadd.f32 %v1688, 0.2548296
      %v1721 = vadd.f32 %v1689, 0.2548296
      %v1722 = vadd.f32 %v1690, 0.2548296
      %v1723 = vadd.f32 %v1691, 0.2548296
      %v1724 = vadd.f32 %v1692, 0.2548296
      %v1725 = vadd.f32 %v1693, 0.2548296
      %v1726 = vadd.f32 %v1694, 0.2548296
      %v1727 = vadd.f32 %v1695, 0.2548296
      %v1728 = vadd.f32 %v1696, 0.2548296
      %v1729 = vadd.f32 %v1697, 0.2548296
      %v1730 = vadd.f32 %v1698, 0.2548296
      %v1731 = vadd.f32 %v1699, 0.2548296
      %v1732 = vadd.f32 %v1700, 0.2548296
      %v1733 = vadd.f32 %v1701, 0.2548296
      %v1734 = vadd.f32 %v1702, 0.2548296
      %v1735 = vadd.f32 %v1703, 0.2548296
      %v1736 = vadd.f32 %v1704, 0.2548296
      %v1737 = vadd.f32 %v1705, 0.2548296
      %v1738 = vadd.f32 %v1706, 0.2548296
      %v1739 = vadd.f32 %v1707, 0.2548296
      %v1740 = vadd.f32 %v1708, 0.2548296
      %v1741 = vadd.f32 %v1709, 0.2548296
      %v1742 = vadd.f32 %v1710, 0.2548296
      %v1743 = vadd.f32 %v1711, 0.2548296
      %v1744 = vadd.f32 %v1712, 0.2548296
      %v1745 = vadd.f32 %v1713, 0.2548296
      %v1746 = vadd.f32 %v1714, 0.2548296
      %v1747 = vadd.f32 %v1715, 0.2548296
      %v1748 = vadd.f32 %v1716, 0.2548296
      %v1749 = vadd.f32 %v1717, 0.2548296
      %v1750 = vmul.f32 %v1431, %v1718
      %v1751 = vmul.f32 %v1433, %v1719
      %v1752 = vmul.f32 %v1435, %v1720
      %v1753 = vmul.f32 %v1437, %v1721
      %v1754 = vmul.f32 %v1439, %v1722
      %v1755 = vmul.f32 %v1441, %v1723
      %v1756 = vmul.f32 %v1443, %v1724
      %v1757 = vmul.f32 %v1445, %v1725
      %v1758 = vmul.f32 %v1447, %v1726
      %v1759 = vmul.f32 %v1449, %v1727
      %v1760 = vmul.f32 %v1451, %v1728
      %v1761 = vmul.f32 %v1453, %v1729
      %v1762 = vmul.f32 %v1455, %v1730
      %v1763 = vmul.f32 %v1457, %v1731
      %v1764 = vmul.f32 %v1459, %v1732
      %v1765 = vmul.f32 %v1461, %v1733
      %v1766 = vmul.f32 %v1463, %v1734
      %v1767 = vmul.f32 %v1465, %v1735
      %v1768 = vmul.f32 %v1467, %v1736
      %v1769 = vmul.f32 %v1469, %v1737
      %v1770 = vmul.f32 %v1471, %v1738
      %v1771 = vmul.f32 %v1473, %v1739
      %v1772 = vmul.f32 %v1475, %v1740
      %v1773 = vmul.f32 %v1477, %v1741
      %v1774 = vmul.f32 %v1479, %v1742
      %v1775 = vmul.f32 %v1481, %v1743
      %v1776 = vmul.f32 %v1483, %v1744
      %v1777 = vmul.f32 %v1485, %v1745
      %v1778 = vmul.f32 %v1487, %v1746
      %v1779 = vmul.f32 %v1489, %v1747
      %v1780 = vmul.f32 %v1491, %v1748
      %v1781 = vmul.f32 %v1493, %v1749
      %v1782 = vsub.f32 0.0, %v1334
      %v1783 = vsub.f32 0.0, %v1335
      %v1784 = vsub.f32 0.0, %v1336
      %v1785 = vsub.f32 0.0, %v1337
      %v1786 = vsub.f32 0.0, %v1338
      %v1787 = vsub.f32 0.0, %v1339
      %v1788 = vsub.f32 0.0, %v1340
      %v1789 = vsub.f32 0.0, %v1341
      %v1790 = vsub.f32 0.0, %v1342
      %v1791 = vsub.f32 0.0, %v1343
      %v1792 = vsub.f32 0.0, %v1344
      %v1793 = vsub.f32 0.0, %v1345
      %v1794 = vsub.f32 0.0, %v1346
      %v1795 = vsub.f32 0.0, %v1347
      %v1796 = vsub.f32 0.0, %v1348
      %v1797 = vsub.f32 0.0, %v1349
      %v1798 = vsub.f32 0.0, %v1350
      %v1799 = vsub.f32 0.0, %v1351
      %v1800 = vsub.f32 0.0, %v1352
      %v1801 = vsub.f32 0.0, %v1353
      %v1802 = vsub.f32 0.0, %v1354
      %v1803 = vsub.f32 0.0, %v1355
      %v1804 = vsub.f32 0.0, %v1356
      %v1805 = vsub.f32 0.0, %v1357
      %v1806 = vsub.f32 0.0, %v1358
      %v1807 = vsub.f32 0.0, %v1359
      %v1808 = vsub.f32 0.0, %v1360
      %v1809 = vsub.f32 0.0, %v1361
      %v1810 = vsub.f32 0.0, %v1362
      %v1811 = vsub.f32 0.0, %v1363
      %v1812 = vsub.f32 0.0, %v1364
      %v1813 = vsub.f32 0.0, %v1365
      %v1814 = vmul.f32 %v1782, %v1334
      %v1815 = vmul.f32 %v1783, %v1335
      %v1816 = vmul.f32 %v1784, %v1336
      %v1817 = vmul.f32 %v1785, %v1337
      %v1818 = vmul.f32 %v1786, %v1338
      %v1819 = vmul.f32 %v1787, %v1339
      %v1820 = vmul.f32 %v1788, %v1340
      %v1821 = vmul.f32 %v1789, %v1341
      %v1822 = vmul.f32 %v1790, %v1342
      %v1823 = vmul.f32 %v1791, %v1343
      %v1824 = vmul.f32 %v1792, %v1344
      %v1825 = vmul.f32 %v1793, %v1345
      %v1826 = vmul.f32 %v1794, %v1346
      %v1827 = vmul.f32 %v1795, %v1347
      %v1828 = vmul.f32 %v1796, %v1348
      %v1829 = vmul.f32 %v1797, %v1349
      %v1830 = vmul.f32 %v1798, %v1350
      %v1831 = vmul.f32 %v1799, %v1351
      %v1832 = vmul.f32 %v1800, %v1352
      %v1833 = vmul.f32 %v1801, %v1353
      %v1834 = vmul.f32 %v1802, %v1354
      %v1835 = vmul.f32 %v1803, %v1355
      %v1836 = vmul.f32 %v1804, %v1356
      %v1837 = vmul.f32 %v1805, %v1357
      %v1838 = vmul.f32 %v1806, %v1358
      %v1839 = vmul.f32 %v1807, %v1359
      %v1840 = vmul.f32 %v1808, %v1360
      %v1841 = vmul.f32 %v1809, %v1361
      %v1842 = vmul.f32 %v1810, %v1362
      %v1843 = vmul.f32 %v1811, %v1363
      %v1844 = vmul.f32 %v1812, %v1364
      %v1845 = vmul.f32 %v1813, %v1365
      %v1846 = vmul.f32 %v1814, 1.442695
      %v1847 = vpow.pop %v1846
      %v1848 = vmul.f32 %v1815, 1.442695
      %v1849 = vpow.pop %v1848
      %v1850 = vmul.f32 %v1816, 1.442695
      %v1851 = vpow.pop %v1850
      %v1852 = vmul.f32 %v1817, 1.442695
      %v1853 = vpow.pop %v1852
      %v1854 = vmul.f32 %v1818, 1.442695
      %v1855 = vpow.pop %v1854
      %v1856 = vmul.f32 %v1819, 1.442695
      %v1857 = vpow.pop %v1856
      %v1858 = vmul.f32 %v1820, 1.442695
      %v1859 = vpow.pop %v1858
      %v1860 = vmul.f32 %v1821, 1.442695
      %v1861 = vpow.pop %v1860
      %v1862 = vmul.f32 %v1822, 1.442695
      %v1863 = vpow.pop %v1862
      %v1864 = vmul.f32 %v1823, 1.442695
      %v1865 = vpow.pop %v1864
      %v1866 = vmul.f32 %v1824, 1.442695
      %v1867 = vpow.pop %v1866
      %v1868 = vmul.f32 %v1825, 1.442695
      %v1869 = vpow.pop %v1868
      %v1870 = vmul.f32 %v1826, 1.442695
      %v1871 = vpow.pop %v1870
      %v1872 = vmul.f32 %v1827, 1.442695
      %v1873 = vpow.pop %v1872
      %v1874 = vmul.f32 %v1828, 1.442695
      %v1875 = vpow.pop %v1874
      %v1876 = vmul.f32 %v1829, 1.442695
      %v1877 = vpow.pop %v1876
      %v1878 = vmul.f32 %v1830, 1.442695
      %v1879 = vpow.pop %v1878
      %v1880 = vmul.f32 %v1831, 1.442695
      %v1881 = vpow.pop %v1880
      %v1882 = vmul.f32 %v1832, 1.442695
      %v1883 = vpow.pop %v1882
      %v1884 = vmul.f32 %v1833, 1.442695
      %v1885 = vpow.pop %v1884
      %v1886 = vmul.f32 %v1834, 1.442695
      %v1887 = vpow.pop %v1886
      %v1888 = vmul.f32 %v1835, 1.442695
      %v1889 = vpow.pop %v1888
      %v1890 = vmul.f32 %v1836, 1.442695
      %v1891 = vpow.pop %v1890
      %v1892 = vmul.f32 %v1837, 1.442695
      %v1893 = vpow.pop %v1892
      %v1894 = vmul.f32 %v1838, 1.442695
      %v1895 = vpow.pop %v1894
      %v1896 = vmul.f32 %v1839, 1.442695
      %v1897 = vpow.pop %v1896
      %v1898 = vmul.f32 %v1840, 1.442695
      %v1899 = vpow.pop %v1898
      %v1900 = vmul.f32 %v1841, 1.442695
      %v1901 = vpow.pop %v1900
      %v1902 = vmul.f32 %v1842, 1.442695
      %v1903 = vpow.pop %v1902
      %v1904 = vmul.f32 %v1843, 1.442695
      %v1905 = vpow.pop %v1904
      %v1906 = vmul.f32 %v1844, 1.442695
      %v1907 = vpow.pop %v1906
      %v1908 = vmul.f32 %v1845, 1.442695
      %v1909 = vpow.pop %v1908
      %v1910 = vmul.f32 %v1750, %v1847
      %v1911 = vmul.f32 %v1751, %v1849
      %v1912 = vmul.f32 %v1752, %v1851
      %v1913 = vmul.f32 %v1753, %v1853
      %v1914 = vmul.f32 %v1754, %v1855
      %v1915 = vmul.f32 %v1755, %v1857
      %v1916 = vmul.f32 %v1756, %v1859
      %v1917 = vmul.f32 %v1757, %v1861
      %v1918 = vmul.f32 %v1758, %v1863
      %v1919 = vmul.f32 %v1759, %v1865
      %v1920 = vmul.f32 %v1760, %v1867
      %v1921 = vmul.f32 %v1761, %v1869
      %v1922 = vmul.f32 %v1762, %v1871
      %v1923 = vmul.f32 %v1763, %v1873
      %v1924 = vmul.f32 %v1764, %v1875
      %v1925 = vmul.f32 %v1765, %v1877
      %v1926 = vmul.f32 %v1766, %v1879
      %v1927 = vmul.f32 %v1767, %v1881
      %v1928 = vmul.f32 %v1768, %v1883
      %v1929 = vmul.f32 %v1769, %v1885
      %v1930 = vmul.f32 %v1770, %v1887
      %v1931 = vmul.f32 %v1771, %v1889
      %v1932 = vmul.f32 %v1772, %v1891
      %v1933 = vmul.f32 %v1773, %v1893
      %v1934 = vmul.f32 %v1774, %v1895
      %v1935 = vmul.f32 %v1775, %v1897
      %v1936 = vmul.f32 %v1776, %v1899
      %v1937 = vmul.f32 %v1777, %v1901
      %v1938 = vmul.f32 %v1778, %v1903
      %v1939 = vmul.f32 %v1779, %v1905
      %v1940 = vmul.f32 %v1780, %v1907
      %v1941 = vmul.f32 %v1781, %v1909
      %v1942 = vsub.f32 1.0, %v1910
      %v1943 = vsub.f32 1.0, %v1911
      %v1944 = vsub.f32 1.0, %v1912
      %v1945 = vsub.f32 1.0, %v1913
      %v1946 = vsub.f32 1.0, %v1914
      %v1947 = vsub.f32 1.0, %v1915
      %v1948 = vsub.f32 1.0, %v1916
      %v1949 = vsub.f32 1.0, %v1917
      %v1950 = vsub.f32 1.0, %v1918
      %v1951 = vsub.f32 1.0, %v1919
      %v1952 = vsub.f32 1.0, %v1920
      %v1953 = vsub.f32 1.0, %v1921
      %v1954 = vsub.f32 1.0, %v1922
      %v1955 = vsub.f32 1.0, %v1923
      %v1956 = vsub.f32 1.0, %v1924
      %v1957 = vsub.f32 1.0, %v1925
      %v1958 = vsub.f32 1.0, %v1926
      %v1959 = vsub.f32 1.0, %v1927
      %v1960 = vsub.f32 1.0, %v1928
      %v1961 = vsub.f32 1.0, %v1929
      %v1962 = vsub.f32 1.0, %v1930
      %v1963 = vsub.f32 1.0, %v1931
      %v1964 = vsub.f32 1.0, %v1932
      %v1965 = vsub.f32 1.0, %v1933
      %v1966 = vsub.f32 1.0, %v1934
      %v1967 = vsub.f32 1.0, %v1935
      %v1968 = vsub.f32 1.0, %v1936
      %v1969 = vsub.f32 1.0, %v1937
      %v1970 = vsub.f32 1.0, %v1938
      %v1971 = vsub.f32 1.0, %v1939
      %v1972 = vsub.f32 1.0, %v1940
      %v1973 = vsub.f32 1.0, %v1941
      %v1974 = vmul.f32 %v1302, %v1942
      %v1975 = vmul.f32 %v1303, %v1943
      %v1976 = vmul.f32 %v1304, %v1944
      %v1977 = vmul.f32 %v1305, %v1945
      %v1978 = vmul.f32 %v1306, %v1946
      %v1979 = vmul.f32 %v1307, %v1947
      %v1980 = vmul.f32 %v1308, %v1948
      %v1981 = vmul.f32 %v1309, %v1949
      %v1982 = vmul.f32 %v1310, %v1950
      %v1983 = vmul.f32 %v1311, %v1951
      %v1984 = vmul.f32 %v1312, %v1952
      %v1985 = vmul.f32 %v1313, %v1953
      %v1986 = vmul.f32 %v1314, %v1954
      %v1987 = vmul.f32 %v1315, %v1955
      %v1988 = vmul.f32 %v1316, %v1956
      %v1989 = vmul.f32 %v1317, %v1957
      %v1990 = vmul.f32 %v1318, %v1958
      %v1991 = vmul.f32 %v1319, %v1959
      %v1992 = vmul.f32 %v1320, %v1960
      %v1993 = vmul.f32 %v1321, %v1961
      %v1994 = vmul.f32 %v1322, %v1962
      %v1995 = vmul.f32 %v1323, %v1963
      %v1996 = vmul.f32 %v1324, %v1964
      %v1997 = vmul.f32 %v1325, %v1965
      %v1998 = vmul.f32 %v1326, %v1966
      %v1999 = vmul.f32 %v1327, %v1967
      %v2000 = vmul.f32 %v1328, %v1968
      %v2001 = vmul.f32 %v1329, %v1969
      %v2002 = vmul.f32 %v1330, %v1970
      %v2003 = vmul.f32 %v1331, %v1971
      %v2004 = vmul.f32 %v1332, %v1972
      %v2005 = vmul.f32 %v1333, %v1973
      %v2006 = vadd.f32 %v1974, 1.0
      %v2007 = vadd.f32 %v1975, 1.0
      %v2008 = vadd.f32 %v1976, 1.0
      %v2009 = vadd.f32 %v1977, 1.0
      %v2010 = vadd.f32 %v1978, 1.0
      %v2011 = vadd.f32 %v1979, 1.0
      %v2012 = vadd.f32 %v1980, 1.0
      %v2013 = vadd.f32 %v1981, 1.0
      %v2014 = vadd.f32 %v1982, 1.0
      %v2015 = vadd.f32 %v1983, 1.0
      %v2016 = vadd.f32 %v1984, 1.0
      %v2017 = vadd.f32 %v1985, 1.0
      %v2018 = vadd.f32 %v1986, 1.0
      %v2019 = vadd.f32 %v1987, 1.0
      %v2020 = vadd.f32 %v1988, 1.0
      %v2021 = vadd.f32 %v1989, 1.0
      %v2022 = vadd.f32 %v1990, 1.0
      %v2023 = vadd.f32 %v1991, 1.0
      %v2024 = vadd.f32 %v1992, 1.0
      %v2025 = vadd.f32 %v1993, 1.0
      %v2026 = vadd.f32 %v1994, 1.0
      %v2027 = vadd.f32 %v1995, 1.0
      %v2028 = vadd.f32 %v1996, 1.0
      %v2029 = vadd.f32 %v1997, 1.0
      %v2030 = vadd.f32 %v1998, 1.0
      %v2031 = vadd.f32 %v1999, 1.0
      %v2032 = vadd.f32 %v2000, 1.0
      %v2033 = vadd.f32 %v2001, 1.0
      %v2034 = vadd.f32 %v2002, 1.0
      %v2035 = vadd.f32 %v2003, 1.0
      %v2036 = vadd.f32 %v2004, 1.0
      %v2037 = vadd.f32 %v2005, 1.0
      %v2038 = vmul.f32 %v1206, %v2006
      %v2039 = vmul.f32 %v1207, %v2007
      %v2040 = vmul.f32 %v1208, %v2008
      %v2041 = vmul.f32 %v1209, %v2009
      %v2042 = vmul.f32 %v1210, %v2010
      %v2043 = vmul.f32 %v1211, %v2011
      %v2044 = vmul.f32 %v1212, %v2012
      %v2045 = vmul.f32 %v1213, %v2013
      %v2046 = vmul.f32 %v1214, %v2014
      %v2047 = vmul.f32 %v1215, %v2015
      %v2048 = vmul.f32 %v1216, %v2016
      %v2049 = vmul.f32 %v1217, %v2017
      %v2050 = vmul.f32 %v1218, %v2018
      %v2051 = vmul.f32 %v1219, %v2019
      %v2052 = vmul.f32 %v1220, %v2020
      %v2053 = vmul.f32 %v1221, %v2021
      %v2054 = vmul.f32 %v1222, %v2022
      %v2055 = vmul.f32 %v1223, %v2023
      %v2056 = vmul.f32 %v1224, %v2024
      %v2057 = vmul.f32 %v1225, %v2025
      %v2058 = vmul.f32 %v1226, %v2026
      %v2059 = vmul.f32 %v1227, %v2027
      %v2060 = vmul.f32 %v1228, %v2028
      %v2061 = vmul.f32 %v1229, %v2029
      %v2062 = vmul.f32 %v1230, %v2030
      %v2063 = vmul.f32 %v1231, %v2031
      %v2064 = vmul.f32 %v1232, %v2032
      %v2065 = vmul.f32 %v1233, %v2033
      %v2066 = vmul.f32 %v1234, %v2034
      %v2067 = vmul.f32 %v1235, %v2035
      %v2068 = vmul.f32 %v1236, %v2036
      %v2069 = vmul.f32 %v1237, %v2037
      %v2070 = vld [vmem:[%s458] sm:$0xff]
      %v2071 = vld [vmem:[%s458 + $0x8] sm:$0xff]
      %v2072 = vld [vmem:[%s458 + $0x10] sm:$0xff]
      %v2073 = vld [vmem:[%s458 + $0x18] sm:$0xff]
      %v2074 = vld [vmem:[%s458 + $0x20] sm:$0xff]
      %v2075 = vld [vmem:[%s458 + $0x28] sm:$0xff]
      %v2076 = vld [vmem:[%s458 + $0x30] sm:$0xff]
      %v2077 = vld [vmem:[%s458 + $0x38] sm:$0xff]
      %v2078 = vld [vmem:[%s458 + $0x40] sm:$0xff]
      %v2079 = vld [vmem:[%s458 + $0x48] sm:$0xff]
      %v2080 = vld [vmem:[%s458 + $0x50] sm:$0xff]
      %v2081 = vld [vmem:[%s458 + $0x58] sm:$0xff]
      %v2082 = vld [vmem:[%s458 + $0x60] sm:$0xff]
      %v2083 = vld [vmem:[%s458 + $0x68] sm:$0xff]
      %v2084 = vld [vmem:[%s458 + $0x70] sm:$0xff]
      %v2085 = vld [vmem:[%s458 + $0x78] sm:$0xff]
      %v2086 = vld [vmem:[%s458 + $0x80] sm:$0xff]
      %v2087 = vld [vmem:[%s458 + $0x88] sm:$0xff]
      %v2088 = vld [vmem:[%s458 + $0x90] sm:$0xff]
      %v2089 = vld [vmem:[%s458 + $0x98] sm:$0xff]
      %v2090 = vld [vmem:[%s458 + $0xa0] sm:$0xff]
      %v2091 = vld [vmem:[%s458 + $0xa8] sm:$0xff]
      %v2092 = vld [vmem:[%s458 + $0xb0] sm:$0xff]
      %v2093 = vld [vmem:[%s458 + $0xb8] sm:$0xff]
      %v2094 = vld [vmem:[%s458 + $0xc0] sm:$0xff]
      %v2095 = vld [vmem:[%s458 + $0xc8] sm:$0xff]
      %v2096 = vld [vmem:[%s458 + $0xd0] sm:$0xff]
      %v2097 = vld [vmem:[%s458 + $0xd8] sm:$0xff]
      %v2098 = vld [vmem:[%s458 + $0xe0] sm:$0xff]
      %v2099 = vld [vmem:[%s458 + $0xe8] sm:$0xff]
      %v2100 = vld [vmem:[%s458 + $0xf0] sm:$0xff]
      %v2101 = vld [vmem:[%s458 + $0xf8] sm:$0xff]
      %v2102 = vmul.f32 %v595, %v2070
      %v2103 = vmul.f32 %v596, %v2071
      %v2104 = vmul.f32 %v597, %v2072
      %v2105 = vmul.f32 %v598, %v2073
      %v2106 = vmul.f32 %v599, %v2074
      %v2107 = vmul.f32 %v600, %v2075
      %v2108 = vmul.f32 %v601, %v2076
      %v2109 = vmul.f32 %v602, %v2077
      %v2110 = vmul.f32 %v603, %v2078
      %v2111 = vmul.f32 %v604, %v2079
      %v2112 = vmul.f32 %v605, %v2080
      %v2113 = vmul.f32 %v606, %v2081
      %v2114 = vmul.f32 %v607, %v2082
      %v2115 = vmul.f32 %v608, %v2083
      %v2116 = vmul.f32 %v609, %v2084
      %v2117 = vmul.f32 %v610, %v2085
      %v2118 = vmul.f32 %v611, %v2086
      %v2119 = vmul.f32 %v612, %v2087
      %v2120 = vmul.f32 %v613, %v2088
      %v2121 = vmul.f32 %v614, %v2089
      %v2122 = vmul.f32 %v615, %v2090
      %v2123 = vmul.f32 %v616, %v2091
      %v2124 = vmul.f32 %v617, %v2092
      %v2125 = vmul.f32 %v618, %v2093
      %v2126 = vmul.f32 %v619, %v2094
      %v2127 = vmul.f32 %v620, %v2095
      %v2128 = vmul.f32 %v621, %v2096
      %v2129 = vmul.f32 %v622, %v2097
      %v2130 = vmul.f32 %v623, %v2098
      %v2131 = vmul.f32 %v624, %v2099
      %v2132 = vmul.f32 %v625, %v2100
      %v2133 = vmul.f32 %v626, %v2101
      %v2134 = vmul.f32 %v2102, %v2038
      %v2135 = vmul.f32 %v2103, %v2039
      %v2136 = vmul.f32 %v2104, %v2040
      %v2137 = vmul.f32 %v2105, %v2041
      %v2138 = vmul.f32 %v2106, %v2042
      %v2139 = vmul.f32 %v2107, %v2043
      %v2140 = vmul.f32 %v2108, %v2044
      %v2141 = vmul.f32 %v2109, %v2045
      %v2142 = vmul.f32 %v2110, %v2046
      %v2143 = vmul.f32 %v2111, %v2047
      %v2144 = vmul.f32 %v2112, %v2048
      %v2145 = vmul.f32 %v2113, %v2049
      %v2146 = vmul.f32 %v2114, %v2050
      %v2147 = vmul.f32 %v2115, %v2051
      %v2148 = vmul.f32 %v2116, %v2052
      %v2149 = vmul.f32 %v2117, %v2053
      %v2150 = vmul.f32 %v2118, %v2054
      %v2151 = vmul.f32 %v2119, %v2055
      %v2152 = vmul.f32 %v2120, %v2056
      %v2153 = vmul.f32 %v2121, %v2057
      %v2154 = vmul.f32 %v2122, %v2058
      %v2155 = vmul.f32 %v2123, %v2059
      %v2156 = vmul.f32 %v2124, %v2060
      %v2157 = vmul.f32 %v2125, %v2061
      %v2158 = vmul.f32 %v2126, %v2062
      %v2159 = vmul.f32 %v2127, %v2063
      %v2160 = vmul.f32 %v2128, %v2064
      %v2161 = vmul.f32 %v2129, %v2065
      %v2162 = vmul.f32 %v2130, %v2066
      %v2163 = vmul.f32 %v2131, %v2067
      %v2164 = vmul.f32 %v2132, %v2068
      %v2165 = vmul.f32 %v2133, %v2069
      %v2166 = vld [vmem:[%s468] sm:$0xff]
      %v2167 = vld [vmem:[%s468 + $0x8] sm:$0xff]
      %v2168 = vld [vmem:[%s468 + $0x10] sm:$0xff]
      %v2169 = vld [vmem:[%s468 + $0x18] sm:$0xff]
      %v2170 = vld [vmem:[%s468 + $0x20] sm:$0xff]
      %v2171 = vld [vmem:[%s468 + $0x28] sm:$0xff]
      %v2172 = vld [vmem:[%s468 + $0x30] sm:$0xff]
      %v2173 = vld [vmem:[%s468 + $0x38] sm:$0xff]
      %v2174 = vld [vmem:[%s468 + $0x40] sm:$0xff]
      %v2175 = vld [vmem:[%s468 + $0x48] sm:$0xff]
      %v2176 = vld [vmem:[%s468 + $0x50] sm:$0xff]
      %v2177 = vld [vmem:[%s468 + $0x58] sm:$0xff]
      %v2178 = vld [vmem:[%s468 + $0x60] sm:$0xff]
      %v2179 = vld [vmem:[%s468 + $0x68] sm:$0xff]
      %v2180 = vld [vmem:[%s468 + $0x70] sm:$0xff]
      %v2181 = vld [vmem:[%s468 + $0x78] sm:$0xff]
      %v2182 = vld [vmem:[%s468 + $0x80] sm:$0xff]
      %v2183 = vld [vmem:[%s468 + $0x88] sm:$0xff]
      %v2184 = vld [vmem:[%s468 + $0x90] sm:$0xff]
      %v2185 = vld [vmem:[%s468 + $0x98] sm:$0xff]
      %v2186 = vld [vmem:[%s468 + $0xa0] sm:$0xff]
      %v2187 = vld [vmem:[%s468 + $0xa8] sm:$0xff]
      %v2188 = vld [vmem:[%s468 + $0xb0] sm:$0xff]
      %v2189 = vld [vmem:[%s468 + $0xb8] sm:$0xff]
      %v2190 = vld [vmem:[%s468 + $0xc0] sm:$0xff]
      %v2191 = vld [vmem:[%s468 + $0xc8] sm:$0xff]
      %v2192 = vld [vmem:[%s468 + $0xd0] sm:$0xff]
      %v2193 = vld [vmem:[%s468 + $0xd8] sm:$0xff]
      %v2194 = vld [vmem:[%s468 + $0xe0] sm:$0xff]
      %v2195 = vld [vmem:[%s468 + $0xe8] sm:$0xff]
      %v2196 = vld [vmem:[%s468 + $0xf0] sm:$0xff]
      %v2197 = vld [vmem:[%s468 + $0xf8] sm:$0xff]
      %2199 = vset.pattern.permute.xlu0 0
      %2200 = vperm.xlu0 %2199, %v2166
      %v2201 = vpop.permute.xlu0 %2200
      %2204 = vset.pattern.permute.xlu0 0
      %2205 = vperm.xlu0 %2204, %v2167
      %v2206 = vpop.permute.xlu0 %2205
      %2209 = vset.pattern.permute.xlu0 0
      %2210 = vperm.xlu0 %2209, %v2168
      %v2211 = vpop.permute.xlu0 %2210
      %2214 = vset.pattern.permute.xlu0 0
      %2215 = vperm.xlu0 %2214, %v2169
      %v2216 = vpop.permute.xlu0 %2215
      %2219 = vset.pattern.permute.xlu0 0
      %2220 = vperm.xlu0 %2219, %v2170
      %v2221 = vpop.permute.xlu0 %2220
      %2224 = vset.pattern.permute.xlu0 0
      %2225 = vperm.xlu0 %2224, %v2171
      %v2226 = vpop.permute.xlu0 %2225
      %2229 = vset.pattern.permute.xlu0 0
      %2230 = vperm.xlu0 %2229, %v2172
      %v2231 = vpop.permute.xlu0 %2230
      %2234 = vset.pattern.permute.xlu0 0
      %2235 = vperm.xlu0 %2234, %v2173
      %v2236 = vpop.permute.xlu0 %2235
      %2239 = vset.pattern.permute.xlu0 0
      %2240 = vperm.xlu0 %2239, %v2174
      %v2241 = vpop.permute.xlu0 %2240
      %2244 = vset.pattern.permute.xlu0 0
      %2245 = vperm.xlu0 %2244, %v2175
      %v2246 = vpop.permute.xlu0 %2245
      %2249 = vset.pattern.permute.xlu0 0
      %2250 = vperm.xlu0 %2249, %v2176
      %v2251 = vpop.permute.xlu0 %2250
      %2254 = vset.pattern.permute.xlu0 0
      %2255 = vperm.xlu0 %2254, %v2177
      %v2256 = vpop.permute.xlu0 %2255
      %2259 = vset.pattern.permute.xlu0 0
      %2260 = vperm.xlu0 %2259, %v2178
      %v2261 = vpop.permute.xlu0 %2260
      %2264 = vset.pattern.permute.xlu0 0
      %2265 = vperm.xlu0 %2264, %v2179
      %v2266 = vpop.permute.xlu0 %2265
      %2269 = vset.pattern.permute.xlu0 0
      %2270 = vperm.xlu0 %2269, %v2180
      %v2271 = vpop.permute.xlu0 %2270
      %2274 = vset.pattern.permute.xlu0 0
      %2275 = vperm.xlu0 %2274, %v2181
      %v2276 = vpop.permute.xlu0 %2275
      %2279 = vset.pattern.permute.xlu0 0
      %2280 = vperm.xlu0 %2279, %v2182
      %v2281 = vpop.permute.xlu0 %2280
      %2284 = vset.pattern.permute.xlu0 0
      %2285 = vperm.xlu0 %2284, %v2183
      %v2286 = vpop.permute.xlu0 %2285
      %2289 = vset.pattern.permute.xlu0 0
      %2290 = vperm.xlu0 %2289, %v2184
      %v2291 = vpop.permute.xlu0 %2290
      %2294 = vset.pattern.permute.xlu0 0
      %2295 = vperm.xlu0 %2294, %v2185
      %v2296 = vpop.permute.xlu0 %2295
      %2299 = vset.pattern.permute.xlu0 0
      %2300 = vperm.xlu0 %2299, %v2186
      %v2301 = vpop.permute.xlu0 %2300
      %2304 = vset.pattern.permute.xlu0 0
      %2305 = vperm.xlu0 %2304, %v2187
      %v2306 = vpop.permute.xlu0 %2305
      %2309 = vset.pattern.permute.xlu0 0
      %2310 = vperm.xlu0 %2309, %v2188
      %v2311 = vpop.permute.xlu0 %2310
      %2314 = vset.pattern.permute.xlu0 0
      %2315 = vperm.xlu0 %2314, %v2189
      %v2316 = vpop.permute.xlu0 %2315
      %2319 = vset.pattern.permute.xlu0 0
      %2320 = vperm.xlu0 %2319, %v2190
      %v2321 = vpop.permute.xlu0 %2320
      %2324 = vset.pattern.permute.xlu0 0
      %2325 = vperm.xlu0 %2324, %v2191
      %v2326 = vpop.permute.xlu0 %2325
      %2329 = vset.pattern.permute.xlu0 0
      %2330 = vperm.xlu0 %2329, %v2192
      %v2331 = vpop.permute.xlu0 %2330
      %2334 = vset.pattern.permute.xlu0 0
      %2335 = vperm.xlu0 %2334, %v2193
      %v2336 = vpop.permute.xlu0 %2335
      %2339 = vset.pattern.permute.xlu0 0
      %2340 = vperm.xlu0 %2339, %v2194
      %v2341 = vpop.permute.xlu0 %2340
      %2344 = vset.pattern.permute.xlu0 0
      %2345 = vperm.xlu0 %2344, %v2195
      %v2346 = vpop.permute.xlu0 %2345
      %2349 = vset.pattern.permute.xlu0 0
      %2350 = vperm.xlu0 %2349, %v2196
      %v2351 = vpop.permute.xlu0 %2350
      %2354 = vset.pattern.permute.xlu0 0
      %2355 = vperm.xlu0 %2354, %v2197
      %v2356 = vpop.permute.xlu0 %2355
      %v2358 = vmul.f32 %v595, %v2201
      %v2359 = vmul.f32 %v596, %v2206
      %v2360 = vmul.f32 %v597, %v2211
      %v2361 = vmul.f32 %v598, %v2216
      %v2362 = vmul.f32 %v599, %v2221
      %v2363 = vmul.f32 %v600, %v2226
      %v2364 = vmul.f32 %v601, %v2231
      %v2365 = vmul.f32 %v602, %v2236
      %v2366 = vmul.f32 %v603, %v2241
      %v2367 = vmul.f32 %v604, %v2246
      %v2368 = vmul.f32 %v605, %v2251
      %v2369 = vmul.f32 %v606, %v2256
      %v2370 = vmul.f32 %v607, %v2261
      %v2371 = vmul.f32 %v608, %v2266
      %v2372 = vmul.f32 %v609, %v2271
      %v2373 = vmul.f32 %v610, %v2276
      %v2374 = vmul.f32 %v611, %v2281
      %v2375 = vmul.f32 %v612, %v2286
      %v2376 = vmul.f32 %v613, %v2291
      %v2377 = vmul.f32 %v614, %v2296
      %v2378 = vmul.f32 %v615, %v2301
      %v2379 = vmul.f32 %v616, %v2306
      %v2380 = vmul.f32 %v617, %v2311
      %v2381 = vmul.f32 %v618, %v2316
      %v2382 = vmul.f32 %v619, %v2321
      %v2383 = vmul.f32 %v620, %v2326
      %v2384 = vmul.f32 %v621, %v2331
      %v2385 = vmul.f32 %v622, %v2336
      %v2386 = vmul.f32 %v623, %v2341
      %v2387 = vmul.f32 %v624, %v2346
      %v2388 = vmul.f32 %v625, %v2351
      %v2389 = vmul.f32 %v626, %v2356
      %2390 = vset.pattern.permute.xlu0 1
      %2391 = vperm.xlu0 %2390, %v2166
      %v2392 = vpop.permute.xlu0 %2391
      %2394 = vset.pattern.permute.xlu0 1
      %2395 = vperm.xlu0 %2394, %v2167
      %v2396 = vpop.permute.xlu0 %2395
      %2398 = vset.pattern.permute.xlu0 1
      %2399 = vperm.xlu0 %2398, %v2168
      %v2400 = vpop.permute.xlu0 %2399
      %2402 = vset.pattern.permute.xlu0 1
      %2403 = vperm.xlu0 %2402, %v2169
      %v2404 = vpop.permute.xlu0 %2403
      %2406 = vset.pattern.permute.xlu0 1
      %2407 = vperm.xlu0 %2406, %v2170
      %v2408 = vpop.permute.xlu0 %2407
      %2410 = vset.pattern.permute.xlu0 1
      %2411 = vperm.xlu0 %2410, %v2171
      %v2412 = vpop.permute.xlu0 %2411
      %2414 = vset.pattern.permute.xlu0 1
      %2415 = vperm.xlu0 %2414, %v2172
      %v2416 = vpop.permute.xlu0 %2415
      %2418 = vset.pattern.permute.xlu0 1
      %2419 = vperm.xlu0 %2418, %v2173
      %v2420 = vpop.permute.xlu0 %2419
      %2422 = vset.pattern.permute.xlu0 1
      %2423 = vperm.xlu0 %2422, %v2174
      %v2424 = vpop.permute.xlu0 %2423
      %2426 = vset.pattern.permute.xlu0 1
      %2427 = vperm.xlu0 %2426, %v2175
      %v2428 = vpop.permute.xlu0 %2427
      %2430 = vset.pattern.permute.xlu0 1
      %2431 = vperm.xlu0 %2430, %v2176
      %v2432 = vpop.permute.xlu0 %2431
      %2434 = vset.pattern.permute.xlu0 1
      %2435 = vperm.xlu0 %2434, %v2177
      %v2436 = vpop.permute.xlu0 %2435
      %2438 = vset.pattern.permute.xlu0 1
      %2439 = vperm.xlu0 %2438, %v2178
      %v2440 = vpop.permute.xlu0 %2439
      %2442 = vset.pattern.permute.xlu0 1
      %2443 = vperm.xlu0 %2442, %v2179
      %v2444 = vpop.permute.xlu0 %2443
      %2446 = vset.pattern.permute.xlu0 1
      %2447 = vperm.xlu0 %2446, %v2180
      %v2448 = vpop.permute.xlu0 %2447
      %2450 = vset.pattern.permute.xlu0 1
      %2451 = vperm.xlu0 %2450, %v2181
      %v2452 = vpop.permute.xlu0 %2451
      %2454 = vset.pattern.permute.xlu0 1
      %2455 = vperm.xlu0 %2454, %v2182
      %v2456 = vpop.permute.xlu0 %2455
      %2458 = vset.pattern.permute.xlu0 1
      %2459 = vperm.xlu0 %2458, %v2183
      %v2460 = vpop.permute.xlu0 %2459
      %2462 = vset.pattern.permute.xlu0 1
      %2463 = vperm.xlu0 %2462, %v2184
      %v2464 = vpop.permute.xlu0 %2463
      %2466 = vset.pattern.permute.xlu0 1
      %2467 = vperm.xlu0 %2466, %v2185
      %v2468 = vpop.permute.xlu0 %2467
      %2470 = vset.pattern.permute.xlu0 1
      %2471 = vperm.xlu0 %2470, %v2186
      %v2472 = vpop.permute.xlu0 %2471
      %2474 = vset.pattern.permute.xlu0 1
      %2475 = vperm.xlu0 %2474, %v2187
      %v2476 = vpop.permute.xlu0 %2475
      %2478 = vset.pattern.permute.xlu0 1
      %2479 = vperm.xlu0 %2478, %v2188
      %v2480 = vpop.permute.xlu0 %2479
      %2482 = vset.pattern.permute.xlu0 1
      %2483 = vperm.xlu0 %2482, %v2189
      %v2484 = vpop.permute.xlu0 %2483
      %2486 = vset.pattern.permute.xlu0 1
      %2487 = vperm.xlu0 %2486, %v2190
      %v2488 = vpop.permute.xlu0 %2487
      %2490 = vset.pattern.permute.xlu0 1
      %2491 = vperm.xlu0 %2490, %v2191
      %v2492 = vpop.permute.xlu0 %2491
      %2494 = vset.pattern.permute.xlu0 1
      %2495 = vperm.xlu0 %2494, %v2192
      %v2496 = vpop.permute.xlu0 %2495
      %2498 = vset.pattern.permute.xlu0 1
      %2499 = vperm.xlu0 %2498, %v2193
      %v2500 = vpop.permute.xlu0 %2499
      %2502 = vset.pattern.permute.xlu0 1
      %2503 = vperm.xlu0 %2502, %v2194
      %v2504 = vpop.permute.xlu0 %2503
      %2506 = vset.pattern.permute.xlu0 1
      %2507 = vperm.xlu0 %2506, %v2195
      %v2508 = vpop.permute.xlu0 %2507
      %2510 = vset.pattern.permute.xlu0 1
      %2511 = vperm.xlu0 %2510, %v2196
      %v2512 = vpop.permute.xlu0 %2511
      %2514 = vset.pattern.permute.xlu0 1
      %2515 = vperm.xlu0 %2514, %v2197
      %v2516 = vpop.permute.xlu0 %2515
      %v2518 = vmul.f32 %v595, %v2392
      %v2519 = vmul.f32 %v596, %v2396
      %v2520 = vmul.f32 %v597, %v2400
      %v2521 = vmul.f32 %v598, %v2404
      %v2522 = vmul.f32 %v599, %v2408
      %v2523 = vmul.f32 %v600, %v2412
      %v2524 = vmul.f32 %v601, %v2416
      %v2525 = vmul.f32 %v602, %v2420
      %v2526 = vmul.f32 %v603, %v2424
      %v2527 = vmul.f32 %v604, %v2428
      %v2528 = vmul.f32 %v605, %v2432
      %v2529 = vmul.f32 %v606, %v2436
      %v2530 = vmul.f32 %v607, %v2440
      %v2531 = vmul.f32 %v608, %v2444
      %v2532 = vmul.f32 %v609, %v2448
      %v2533 = vmul.f32 %v610, %v2452
      %v2534 = vmul.f32 %v611, %v2456
      %v2535 = vmul.f32 %v612, %v2460
      %v2536 = vmul.f32 %v613, %v2464
      %v2537 = vmul.f32 %v614, %v2468
      %v2538 = vmul.f32 %v615, %v2472
      %v2539 = vmul.f32 %v616, %v2476
      %v2540 = vmul.f32 %v617, %v2480
      %v2541 = vmul.f32 %v618, %v2484
      %v2542 = vmul.f32 %v619, %v2488
      %v2543 = vmul.f32 %v620, %v2492
      %v2544 = vmul.f32 %v621, %v2496
      %v2545 = vmul.f32 %v622, %v2500
      %v2546 = vmul.f32 %v623, %v2504
      %v2547 = vmul.f32 %v624, %v2508
      %v2548 = vmul.f32 %v625, %v2512
      %v2549 = vmul.f32 %v626, %v2516
      %2550 = vset.pattern.permute.xlu0 2
      %2551 = vperm.xlu0 %2550, %v2166
      %v2552 = vpop.permute.xlu0 %2551
      %2554 = vset.pattern.permute.xlu0 2
      %2555 = vperm.xlu0 %2554, %v2167
      %v2556 = vpop.permute.xlu0 %2555
      %2558 = vset.pattern.permute.xlu0 2
      %2559 = vperm.xlu0 %2558, %v2168
      %v2560 = vpop.permute.xlu0 %2559
      %2562 = vset.pattern.permute.xlu0 2
      %2563 = vperm.xlu0 %2562, %v2169
      %v2564 = vpop.permute.xlu0 %2563
      %2566 = vset.pattern.permute.xlu0 2
      %2567 = vperm.xlu0 %2566, %v2170
      %v2568 = vpop.permute.xlu0 %2567
      %2570 = vset.pattern.permute.xlu0 2
      %2571 = vperm.xlu0 %2570, %v2171
      %v2572 = vpop.permute.xlu0 %2571
      %2574 = vset.pattern.permute.xlu0 2
      %2575 = vperm.xlu0 %2574, %v2172
      %v2576 = vpop.permute.xlu0 %2575
      %2578 = vset.pattern.permute.xlu0 2
      %2579 = vperm.xlu0 %2578, %v2173
      %v2580 = vpop.permute.xlu0 %2579
      %2582 = vset.pattern.permute.xlu0 2
      %2583 = vperm.xlu0 %2582, %v2174
      %v2584 = vpop.permute.xlu0 %2583
      %2586 = vset.pattern.permute.xlu0 2
      %2587 = vperm.xlu0 %2586, %v2175
      %v2588 = vpop.permute.xlu0 %2587
      %2590 = vset.pattern.permute.xlu0 2
      %2591 = vperm.xlu0 %2590, %v2176
      %v2592 = vpop.permute.xlu0 %2591
      %2594 = vset.pattern.permute.xlu0 2
      %2595 = vperm.xlu0 %2594, %v2177
      %v2596 = vpop.permute.xlu0 %2595
      %2598 = vset.pattern.permute.xlu0 2
      %2599 = vperm.xlu0 %2598, %v2178
      %v2600 = vpop.permute.xlu0 %2599
      %2602 = vset.pattern.permute.xlu0 2
      %2603 = vperm.xlu0 %2602, %v2179
      %v2604 = vpop.permute.xlu0 %2603
      %2606 = vset.pattern.permute.xlu0 2
      %2607 = vperm.xlu0 %2606, %v2180
      %v2608 = vpop.permute.xlu0 %2607
      %2610 = vset.pattern.permute.xlu0 2
      %2611 = vperm.xlu0 %2610, %v2181
      %v2612 = vpop.permute.xlu0 %2611
      %2614 = vset.pattern.permute.xlu0 2
      %2615 = vperm.xlu0 %2614, %v2182
      %v2616 = vpop.permute.xlu0 %2615
      %2618 = vset.pattern.permute.xlu0 2
      %2619 = vperm.xlu0 %2618, %v2183
      %v2620 = vpop.permute.xlu0 %2619
      %2622 = vset.pattern.permute.xlu0 2
      %2623 = vperm.xlu0 %2622, %v2184
      %v2624 = vpop.permute.xlu0 %2623
      %2626 = vset.pattern.permute.xlu0 2
      %2627 = vperm.xlu0 %2626, %v2185
      %v2628 = vpop.permute.xlu0 %2627
      %2630 = vset.pattern.permute.xlu0 2
      %2631 = vperm.xlu0 %2630, %v2186
      %v2632 = vpop.permute.xlu0 %2631
      %2634 = vset.pattern.permute.xlu0 2
      %2635 = vperm.xlu0 %2634, %v2187
      %v2636 = vpop.permute.xlu0 %2635
      %2638 = vset.pattern.permute.xlu0 2
      %2639 = vperm.xlu0 %2638, %v2188
      %v2640 = vpop.permute.xlu0 %2639
      %2642 = vset.pattern.permute.xlu0 2
      %2643 = vperm.xlu0 %2642, %v2189
      %v2644 = vpop.permute.xlu0 %2643
      %2646 = vset.pattern.permute.xlu0 2
      %2647 = vperm.xlu0 %2646, %v2190
      %v2648 = vpop.permute.xlu0 %2647
      %2650 = vset.pattern.permute.xlu0 2
      %2651 = vperm.xlu0 %2650, %v2191
      %v2652 = vpop.permute.xlu0 %2651
      %2654 = vset.pattern.permute.xlu0 2
      %2655 = vperm.xlu0 %2654, %v2192
      %v2656 = vpop.permute.xlu0 %2655
      %2658 = vset.pattern.permute.xlu0 2
      %2659 = vperm.xlu0 %2658, %v2193
      %v2660 = vpop.permute.xlu0 %2659
      %2662 = vset.pattern.permute.xlu0 2
      %2663 = vperm.xlu0 %2662, %v2194
      %v2664 = vpop.permute.xlu0 %2663
      %2666 = vset.pattern.permute.xlu0 2
      %2667 = vperm.xlu0 %2666, %v2195
      %v2668 = vpop.permute.xlu0 %2667
      %2670 = vset.pattern.permute.xlu0 2
      %2671 = vperm.xlu0 %2670, %v2196
      %v2672 = vpop.permute.xlu0 %2671
      %2674 = vset.pattern.permute.xlu0 2
      %2675 = vperm.xlu0 %2674, %v2197
      %v2676 = vpop.permute.xlu0 %2675
      %v2678 = vmul.f32 %v595, %v2552
      %v2679 = vmul.f32 %v596, %v2556
      %v2680 = vmul.f32 %v597, %v2560
      %v2681 = vmul.f32 %v598, %v2564
      %v2682 = vmul.f32 %v599, %v2568
      %v2683 = vmul.f32 %v600, %v2572
      %v2684 = vmul.f32 %v601, %v2576
      %v2685 = vmul.f32 %v602, %v2580
      %v2686 = vmul.f32 %v603, %v2584
      %v2687 = vmul.f32 %v604, %v2588
      %v2688 = vmul.f32 %v605, %v2592
      %v2689 = vmul.f32 %v606, %v2596
      %v2690 = vmul.f32 %v607, %v2600
      %v2691 = vmul.f32 %v608, %v2604
      %v2692 = vmul.f32 %v609, %v2608
      %v2693 = vmul.f32 %v610, %v2612
      %v2694 = vmul.f32 %v611, %v2616
      %v2695 = vmul.f32 %v612, %v2620
      %v2696 = vmul.f32 %v613, %v2624
      %v2697 = vmul.f32 %v614, %v2628
      %v2698 = vmul.f32 %v615, %v2632
      %v2699 = vmul.f32 %v616, %v2636
      %v2700 = vmul.f32 %v617, %v2640
      %v2701 = vmul.f32 %v618, %v2644
      %v2702 = vmul.f32 %v619, %v2648
      %v2703 = vmul.f32 %v620, %v2652
      %v2704 = vmul.f32 %v621, %v2656
      %v2705 = vmul.f32 %v622, %v2660
      %v2706 = vmul.f32 %v623, %v2664
      %v2707 = vmul.f32 %v624, %v2668
      %v2708 = vmul.f32 %v625, %v2672
      %v2709 = vmul.f32 %v626, %v2676
      %2742 = vrot.lane.b32.xlu0 %v2358, 64
      %v2743 = vpop.permute.xlu0 %2742
      %2744 = vrot.lane.b32.xlu0 %v2359, 64
      %v2745 = vpop.permute.xlu0 %2744
      %2746 = vrot.lane.b32.xlu0 %v2360, 64
      %v2747 = vpop.permute.xlu0 %2746
      %2748 = vrot.lane.b32.xlu0 %v2361, 64
      %v2749 = vpop.permute.xlu0 %2748
      %2750 = vrot.lane.b32.xlu0 %v2362, 64
      %v2751 = vpop.permute.xlu0 %2750
      %2752 = vrot.lane.b32.xlu0 %v2363, 64
      %v2753 = vpop.permute.xlu0 %2752
      %2754 = vrot.lane.b32.xlu0 %v2364, 64
      %v2755 = vpop.permute.xlu0 %2754
      %2756 = vrot.lane.b32.xlu0 %v2365, 64
      %v2757 = vpop.permute.xlu0 %2756
      %2758 = vrot.lane.b32.xlu0 %v2366, 64
      %v2759 = vpop.permute.xlu0 %2758
      %2760 = vrot.lane.b32.xlu0 %v2367, 64
      %v2761 = vpop.permute.xlu0 %2760
      %2762 = vrot.lane.b32.xlu0 %v2368, 64
      %v2763 = vpop.permute.xlu0 %2762
      %2764 = vrot.lane.b32.xlu0 %v2369, 64
      %v2765 = vpop.permute.xlu0 %2764
      %2766 = vrot.lane.b32.xlu0 %v2370, 64
      %v2767 = vpop.permute.xlu0 %2766
      %2768 = vrot.lane.b32.xlu0 %v2371, 64
      %v2769 = vpop.permute.xlu0 %2768
      %2770 = vrot.lane.b32.xlu0 %v2372, 64
      %v2771 = vpop.permute.xlu0 %2770
      %2772 = vrot.lane.b32.xlu0 %v2373, 64
      %v2773 = vpop.permute.xlu0 %2772
      %2774 = vrot.lane.b32.xlu0 %v2374, 64
      %v2775 = vpop.permute.xlu0 %2774
      %2776 = vrot.lane.b32.xlu0 %v2375, 64
      %v2777 = vpop.permute.xlu0 %2776
      %2778 = vrot.lane.b32.xlu0 %v2376, 64
      %v2779 = vpop.permute.xlu0 %2778
      %2780 = vrot.lane.b32.xlu0 %v2377, 64
      %v2781 = vpop.permute.xlu0 %2780
      %2782 = vrot.lane.b32.xlu0 %v2378, 64
      %v2783 = vpop.permute.xlu0 %2782
      %2784 = vrot.lane.b32.xlu0 %v2379, 64
      %v2785 = vpop.permute.xlu0 %2784
      %2786 = vrot.lane.b32.xlu0 %v2380, 64
      %v2787 = vpop.permute.xlu0 %2786
      %2788 = vrot.lane.b32.xlu0 %v2381, 64
      %v2789 = vpop.permute.xlu0 %2788
      %2790 = vrot.lane.b32.xlu0 %v2382, 64
      %v2791 = vpop.permute.xlu0 %2790
      %2792 = vrot.lane.b32.xlu0 %v2383, 64
      %v2793 = vpop.permute.xlu0 %2792
      %2794 = vrot.lane.b32.xlu0 %v2384, 64
      %v2795 = vpop.permute.xlu0 %2794
      %2796 = vrot.lane.b32.xlu0 %v2385, 64
      %v2797 = vpop.permute.xlu0 %2796
      %2798 = vrot.lane.b32.xlu0 %v2386, 64
      %v2799 = vpop.permute.xlu0 %2798
      %2800 = vrot.lane.b32.xlu0 %v2387, 64
      %v2801 = vpop.permute.xlu0 %2800
      %2802 = vrot.lane.b32.xlu0 %v2388, 64
      %v2803 = vpop.permute.xlu0 %2802
      %2804 = vrot.lane.b32.xlu0 %v2389, 64
      %v2805 = vpop.permute.xlu0 %2804
      %2870 = vrot.lane.b32.xlu0 %v2678, 64
      %v2871 = vpop.permute.xlu0 %2870
      %2872 = vrot.lane.b32.xlu0 %v2679, 64
      %v2873 = vpop.permute.xlu0 %2872
      %2874 = vrot.lane.b32.xlu0 %v2680, 64
      %v2875 = vpop.permute.xlu0 %2874
      %2876 = vrot.lane.b32.xlu0 %v2681, 64
      %v2877 = vpop.permute.xlu0 %2876
      %2878 = vrot.lane.b32.xlu0 %v2682, 64
      %v2879 = vpop.permute.xlu0 %2878
      %2880 = vrot.lane.b32.xlu0 %v2683, 64
      %v2881 = vpop.permute.xlu0 %2880
      %2882 = vrot.lane.b32.xlu0 %v2684, 64
      %v2883 = vpop.permute.xlu0 %2882
      %2884 = vrot.lane.b32.xlu0 %v2685, 64
      %v2885 = vpop.permute.xlu0 %2884
      %2886 = vrot.lane.b32.xlu0 %v2686, 64
      %v2887 = vpop.permute.xlu0 %2886
      %2888 = vrot.lane.b32.xlu0 %v2687, 64
      %v2889 = vpop.permute.xlu0 %2888
      %2890 = vrot.lane.b32.xlu0 %v2688, 64
      %v2891 = vpop.permute.xlu0 %2890
      %2892 = vrot.lane.b32.xlu0 %v2689, 64
      %v2893 = vpop.permute.xlu0 %2892
      %2894 = vrot.lane.b32.xlu0 %v2690, 64
      %v2895 = vpop.permute.xlu0 %2894
      %2896 = vrot.lane.b32.xlu0 %v2691, 64
      %v2897 = vpop.permute.xlu0 %2896
      %2898 = vrot.lane.b32.xlu0 %v2692, 64
      %v2899 = vpop.permute.xlu0 %2898
      %2900 = vrot.lane.b32.xlu0 %v2693, 64
      %v2901 = vpop.permute.xlu0 %2900
      %2902 = vrot.lane.b32.xlu0 %v2694, 64
      %v2903 = vpop.permute.xlu0 %2902
      %2904 = vrot.lane.b32.xlu0 %v2695, 64
      %v2905 = vpop.permute.xlu0 %2904
      %2906 = vrot.lane.b32.xlu0 %v2696, 64
      %v2907 = vpop.permute.xlu0 %2906
      %2908 = vrot.lane.b32.xlu0 %v2697, 64
      %v2909 = vpop.permute.xlu0 %2908
      %2910 = vrot.lane.b32.xlu0 %v2698, 64
      %v2911 = vpop.permute.xlu0 %2910
      %2912 = vrot.lane.b32.xlu0 %v2699, 64
      %v2913 = vpop.permute.xlu0 %2912
      %2914 = vrot.lane.b32.xlu0 %v2700, 64
      %v2915 = vpop.permute.xlu0 %2914
      %2916 = vrot.lane.b32.xlu0 %v2701, 64
      %v2917 = vpop.permute.xlu0 %2916
      %2918 = vrot.lane.b32.xlu0 %v2702, 64
      %v2919 = vpop.permute.xlu0 %2918
      %2920 = vrot.lane.b32.xlu0 %v2703, 64
      %v2921 = vpop.permute.xlu0 %2920
      %2922 = vrot.lane.b32.xlu0 %v2704, 64
      %v2923 = vpop.permute.xlu0 %2922
      %2924 = vrot.lane.b32.xlu0 %v2705, 64
      %v2925 = vpop.permute.xlu0 %2924
      %2926 = vrot.lane.b32.xlu0 %v2706, 64
      %v2927 = vpop.permute.xlu0 %2926
      %2928 = vrot.lane.b32.xlu0 %v2707, 64
      %v2929 = vpop.permute.xlu0 %2928
      %2930 = vrot.lane.b32.xlu0 %v2708, 64
      %v2931 = vpop.permute.xlu0 %2930
      %2932 = vrot.lane.b32.xlu0 %v2709, 64
      %v2933 = vpop.permute.xlu0 %2932
      %v2966 = vsel %vm787, %v2134, %v2743
      %v2967 = vsel %vm787, %v2135, %v2745
      %v2968 = vsel %vm787, %v2136, %v2747
      %v2969 = vsel %vm787, %v2137, %v2749
      %v2970 = vsel %vm787, %v2138, %v2751
      %v2971 = vsel %vm787, %v2139, %v2753
      %v2972 = vsel %vm787, %v2140, %v2755
      %v2973 = vsel %vm787, %v2141, %v2757
      %v2974 = vsel %vm787, %v2142, %v2759
      %v2975 = vsel %vm787, %v2143, %v2761
      %v2976 = vsel %vm787, %v2144, %v2763
      %v2977 = vsel %vm787, %v2145, %v2765
      %v2978 = vsel %vm787, %v2146, %v2767
      %v2979 = vsel %vm787, %v2147, %v2769
      %v2980 = vsel %vm787, %v2148, %v2771
      %v2981 = vsel %vm787, %v2149, %v2773
      %v2982 = vsel %vm787, %v2150, %v2775
      %v2983 = vsel %vm787, %v2151, %v2777
      %v2984 = vsel %vm787, %v2152, %v2779
      %v2985 = vsel %vm787, %v2153, %v2781
      %v2986 = vsel %vm787, %v2154, %v2783
      %v2987 = vsel %vm787, %v2155, %v2785
      %v2988 = vsel %vm787, %v2156, %v2787
      %v2989 = vsel %vm787, %v2157, %v2789
      %v2990 = vsel %vm787, %v2158, %v2791
      %v2991 = vsel %vm787, %v2159, %v2793
      %v2992 = vsel %vm787, %v2160, %v2795
      %v2993 = vsel %vm787, %v2161, %v2797
      %v2994 = vsel %vm787, %v2162, %v2799
      %v2995 = vsel %vm787, %v2163, %v2801
      %v2996 = vsel %vm787, %v2164, %v2803
      %v2997 = vsel %vm787, %v2165, %v2805
      %v2998 = vsel %vm787, %v2518, %v2871
      %v2999 = vsel %vm787, %v2519, %v2873
      %v3000 = vsel %vm787, %v2520, %v2875
      %v3001 = vsel %vm787, %v2521, %v2877
      %v3002 = vsel %vm787, %v2522, %v2879
      %v3003 = vsel %vm787, %v2523, %v2881
      %v3004 = vsel %vm787, %v2524, %v2883
      %v3005 = vsel %vm787, %v2525, %v2885
      %v3006 = vsel %vm787, %v2526, %v2887
      %v3007 = vsel %vm787, %v2527, %v2889
      %v3008 = vsel %vm787, %v2528, %v2891
      %v3009 = vsel %vm787, %v2529, %v2893
      %v3010 = vsel %vm787, %v2530, %v2895
      %v3011 = vsel %vm787, %v2531, %v2897
      %v3012 = vsel %vm787, %v2532, %v2899
      %v3013 = vsel %vm787, %v2533, %v2901
      %v3014 = vsel %vm787, %v2534, %v2903
      %v3015 = vsel %vm787, %v2535, %v2905
      %v3016 = vsel %vm787, %v2536, %v2907
      %v3017 = vsel %vm787, %v2537, %v2909
      %v3018 = vsel %vm787, %v2538, %v2911
      %v3019 = vsel %vm787, %v2539, %v2913
      %v3020 = vsel %vm787, %v2540, %v2915
      %v3021 = vsel %vm787, %v2541, %v2917
      %v3022 = vsel %vm787, %v2542, %v2919
      %v3023 = vsel %vm787, %v2543, %v2921
      %v3024 = vsel %vm787, %v2544, %v2923
      %v3025 = vsel %vm787, %v2545, %v2925
      %v3026 = vsel %vm787, %v2546, %v2927
      %v3027 = vsel %vm787, %v2547, %v2929
      %v3028 = vsel %vm787, %v2548, %v2931
      %v3029 = vsel %vm787, %v2549, %v2933
      %v3030 = vld [vmem:[%s478] sm:$0xff]
      %v3031 = vld [vmem:[%s478 + $0x8] sm:$0xff]
      %v3032 = vld [vmem:[%s478 + $0x10] sm:$0xff]
      %v3033 = vld [vmem:[%s478 + $0x18] sm:$0xff]
      %v3034 = vld [vmem:[%s478 + $0x20] sm:$0xff]
      %v3035 = vld [vmem:[%s478 + $0x28] sm:$0xff]
      %v3036 = vld [vmem:[%s478 + $0x30] sm:$0xff]
      %v3037 = vld [vmem:[%s478 + $0x38] sm:$0xff]
      %v3038 = vld [vmem:[%s478 + $0x40] sm:$0xff]
      %v3039 = vld [vmem:[%s478 + $0x48] sm:$0xff]
      %v3040 = vld [vmem:[%s478 + $0x50] sm:$0xff]
      %v3041 = vld [vmem:[%s478 + $0x58] sm:$0xff]
      %v3042 = vld [vmem:[%s478 + $0x60] sm:$0xff]
      %v3043 = vld [vmem:[%s478 + $0x68] sm:$0xff]
      %v3044 = vld [vmem:[%s478 + $0x70] sm:$0xff]
      %v3045 = vld [vmem:[%s478 + $0x78] sm:$0xff]
      %v3046 = vld [vmem:[%s478 + $0x80] sm:$0xff]
      %v3047 = vld [vmem:[%s478 + $0x88] sm:$0xff]
      %v3048 = vld [vmem:[%s478 + $0x90] sm:$0xff]
      %v3049 = vld [vmem:[%s478 + $0x98] sm:$0xff]
      %v3050 = vld [vmem:[%s478 + $0xa0] sm:$0xff]
      %v3051 = vld [vmem:[%s478 + $0xa8] sm:$0xff]
      %v3052 = vld [vmem:[%s478 + $0xb0] sm:$0xff]
      %v3053 = vld [vmem:[%s478 + $0xb8] sm:$0xff]
      %v3054 = vld [vmem:[%s478 + $0xc0] sm:$0xff]
      %v3055 = vld [vmem:[%s478 + $0xc8] sm:$0xff]
      %v3056 = vld [vmem:[%s478 + $0xd0] sm:$0xff]
      %v3057 = vld [vmem:[%s478 + $0xd8] sm:$0xff]
      %v3058 = vld [vmem:[%s478 + $0xe0] sm:$0xff]
      %v3059 = vld [vmem:[%s478 + $0xe8] sm:$0xff]
      %v3060 = vld [vmem:[%s478 + $0xf0] sm:$0xff]
      %v3061 = vld [vmem:[%s478 + $0xf8] sm:$0xff]
      %v3062 = vld [vmem:[#allocation2] sm:$0xff]
      %v3063 = vld [vmem:[#allocation2 + $0x8] sm:$0xff]
      %v3064 = vld [vmem:[#allocation2 + $0x10] sm:$0xff]
      %v3065 = vld [vmem:[#allocation2 + $0x18] sm:$0xff]
      %v3066 = vld [vmem:[#allocation2 + $0x20] sm:$0xff]
      %v3067 = vld [vmem:[#allocation2 + $0x28] sm:$0xff]
      %v3068 = vld [vmem:[#allocation2 + $0x30] sm:$0xff]
      %v3069 = vld [vmem:[#allocation2 + $0x38] sm:$0xff]
      %v3070 = vld [vmem:[#allocation2 + $0x40] sm:$0xff]
      %v3071 = vld [vmem:[#allocation2 + $0x48] sm:$0xff]
      %v3072 = vld [vmem:[#allocation2 + $0x50] sm:$0xff]
      %v3073 = vld [vmem:[#allocation2 + $0x58] sm:$0xff]
      %v3074 = vld [vmem:[#allocation2 + $0x60] sm:$0xff]
      %v3075 = vld [vmem:[#allocation2 + $0x68] sm:$0xff]
      %v3076 = vld [vmem:[#allocation2 + $0x70] sm:$0xff]
      %v3077 = vld [vmem:[#allocation2 + $0x78] sm:$0xff]
      %v3078 = vld [vmem:[#allocation2 + $0x80] sm:$0xff]
      %v3079 = vld [vmem:[#allocation2 + $0x88] sm:$0xff]
      %v3080 = vld [vmem:[#allocation2 + $0x90] sm:$0xff]
      %v3081 = vld [vmem:[#allocation2 + $0x98] sm:$0xff]
      %v3082 = vld [vmem:[#allocation2 + $0xa0] sm:$0xff]
      %v3083 = vld [vmem:[#allocation2 + $0xa8] sm:$0xff]
      %v3084 = vld [vmem:[#allocation2 + $0xb0] sm:$0xff]
      %v3085 = vld [vmem:[#allocation2 + $0xb8] sm:$0xff]
      %v3086 = vld [vmem:[#allocation2 + $0xc0] sm:$0xff]
      %v3087 = vld [vmem:[#allocation2 + $0xc8] sm:$0xff]
      %v3088 = vld [vmem:[#allocation2 + $0xd0] sm:$0xff]
      %v3089 = vld [vmem:[#allocation2 + $0xd8] sm:$0xff]
      %v3090 = vld [vmem:[#allocation2 + $0xe0] sm:$0xff]
      %v3091 = vld [vmem:[#allocation2 + $0xe8] sm:$0xff]
      %v3092 = vld [vmem:[#allocation2 + $0xf0] sm:$0xff]
      %v3093 = vld [vmem:[#allocation2 + $0xf8] sm:$0xff]
      %3094 = vset.pattern.permute.xlu0 0
      %3095 = vperm.xlu0 %3094, %v3030
      %v3096 = vpop.permute.xlu0 %3095
      %3097 = vset.pattern.permute.xlu0 0
      %3098 = vperm.xlu0 %3097, %v3031
      %v3099 = vpop.permute.xlu0 %3098
      %3100 = vset.pattern.permute.xlu0 0
      %3101 = vperm.xlu0 %3100, %v3032
      %v3102 = vpop.permute.xlu0 %3101
      %3103 = vset.pattern.permute.xlu0 0
      %3104 = vperm.xlu0 %3103, %v3033
      %v3105 = vpop.permute.xlu0 %3104
      %3106 = vset.pattern.permute.xlu0 0
      %3107 = vperm.xlu0 %3106, %v3034
      %v3108 = vpop.permute.xlu0 %3107
      %3109 = vset.pattern.permute.xlu0 0
      %3110 = vperm.xlu0 %3109, %v3035
      %v3111 = vpop.permute.xlu0 %3110
      %3112 = vset.pattern.permute.xlu0 0
      %3113 = vperm.xlu0 %3112, %v3036
      %v3114 = vpop.permute.xlu0 %3113
      %3115 = vset.pattern.permute.xlu0 0
      %3116 = vperm.xlu0 %3115, %v3037
      %v3117 = vpop.permute.xlu0 %3116
      %3118 = vset.pattern.permute.xlu0 0
      %3119 = vperm.xlu0 %3118, %v3038
      %v3120 = vpop.permute.xlu0 %3119
      %3121 = vset.pattern.permute.xlu0 0
      %3122 = vperm.xlu0 %3121, %v3039
      %v3123 = vpop.permute.xlu0 %3122
      %3124 = vset.pattern.permute.xlu0 0
      %3125 = vperm.xlu0 %3124, %v3040
      %v3126 = vpop.permute.xlu0 %3125
      %3127 = vset.pattern.permute.xlu0 0
      %3128 = vperm.xlu0 %3127, %v3041
      %v3129 = vpop.permute.xlu0 %3128
      %3130 = vset.pattern.permute.xlu0 0
      %3131 = vperm.xlu0 %3130, %v3042
      %v3132 = vpop.permute.xlu0 %3131
      %3133 = vset.pattern.permute.xlu0 0
      %3134 = vperm.xlu0 %3133, %v3043
      %v3135 = vpop.permute.xlu0 %3134
      %3136 = vset.pattern.permute.xlu0 0
      %3137 = vperm.xlu0 %3136, %v3044
      %v3138 = vpop.permute.xlu0 %3137
      %3139 = vset.pattern.permute.xlu0 0
      %3140 = vperm.xlu0 %3139, %v3045
      %v3141 = vpop.permute.xlu0 %3140
      %3142 = vset.pattern.permute.xlu0 0
      %3143 = vperm.xlu0 %3142, %v3046
      %v3144 = vpop.permute.xlu0 %3143
      %3145 = vset.pattern.permute.xlu0 0
      %3146 = vperm.xlu0 %3145, %v3047
      %v3147 = vpop.permute.xlu0 %3146
      %3148 = vset.pattern.permute.xlu0 0
      %3149 = vperm.xlu0 %3148, %v3048
      %v3150 = vpop.permute.xlu0 %3149
      %3151 = vset.pattern.permute.xlu0 0
      %3152 = vperm.xlu0 %3151, %v3049
      %v3153 = vpop.permute.xlu0 %3152
      %3154 = vset.pattern.permute.xlu0 0
      %3155 = vperm.xlu0 %3154, %v3050
      %v3156 = vpop.permute.xlu0 %3155
      %3157 = vset.pattern.permute.xlu0 0
      %3158 = vperm.xlu0 %3157, %v3051
      %v3159 = vpop.permute.xlu0 %3158
      %3160 = vset.pattern.permute.xlu0 0
      %3161 = vperm.xlu0 %3160, %v3052
      %v3162 = vpop.permute.xlu0 %3161
      %3163 = vset.pattern.permute.xlu0 0
      %3164 = vperm.xlu0 %3163, %v3053
      %v3165 = vpop.permute.xlu0 %3164
      %3166 = vset.pattern.permute.xlu0 0
      %3167 = vperm.xlu0 %3166, %v3054
      %v3168 = vpop.permute.xlu0 %3167
      %3169 = vset.pattern.permute.xlu0 0
      %3170 = vperm.xlu0 %3169, %v3055
      %v3171 = vpop.permute.xlu0 %3170
      %3172 = vset.pattern.permute.xlu0 0
      %3173 = vperm.xlu0 %3172, %v3056
      %v3174 = vpop.permute.xlu0 %3173
      %3175 = vset.pattern.permute.xlu0 0
      %3176 = vperm.xlu0 %3175, %v3057
      %v3177 = vpop.permute.xlu0 %3176
      %3178 = vset.pattern.permute.xlu0 0
      %3179 = vperm.xlu0 %3178, %v3058
      %v3180 = vpop.permute.xlu0 %3179
      %3181 = vset.pattern.permute.xlu0 0
      %3182 = vperm.xlu0 %3181, %v3059
      %v3183 = vpop.permute.xlu0 %3182
      %3184 = vset.pattern.permute.xlu0 0
      %3185 = vperm.xlu0 %3184, %v3060
      %v3186 = vpop.permute.xlu0 %3185
      %3187 = vset.pattern.permute.xlu0 0
      %3188 = vperm.xlu0 %3187, %v3061
      %v3189 = vpop.permute.xlu0 %3188
      %vm3190 = vcmp.eq.s32.totalorder %v3096, %v3062
      %vm3191 = vcmp.eq.s32.totalorder %v3099, %v3063
      %vm3192 = vcmp.eq.s32.totalorder %v3102, %v3064
      %vm3193 = vcmp.eq.s32.totalorder %v3105, %v3065
      %vm3194 = vcmp.eq.s32.totalorder %v3108, %v3066
      %vm3195 = vcmp.eq.s32.totalorder %v3111, %v3067
      %vm3196 = vcmp.eq.s32.totalorder %v3114, %v3068
      %vm3197 = vcmp.eq.s32.totalorder %v3117, %v3069
      %vm3198 = vcmp.eq.s32.totalorder %v3120, %v3070
      %vm3199 = vcmp.eq.s32.totalorder %v3123, %v3071
      %vm3200 = vcmp.eq.s32.totalorder %v3126, %v3072
      %vm3201 = vcmp.eq.s32.totalorder %v3129, %v3073
      %vm3202 = vcmp.eq.s32.totalorder %v3132, %v3074
      %vm3203 = vcmp.eq.s32.totalorder %v3135, %v3075
      %vm3204 = vcmp.eq.s32.totalorder %v3138, %v3076
      %vm3205 = vcmp.eq.s32.totalorder %v3141, %v3077
      %vm3206 = vcmp.eq.s32.totalorder %v3144, %v3078
      %vm3207 = vcmp.eq.s32.totalorder %v3147, %v3079
      %vm3208 = vcmp.eq.s32.totalorder %v3150, %v3080
      %vm3209 = vcmp.eq.s32.totalorder %v3153, %v3081
      %vm3210 = vcmp.eq.s32.totalorder %v3156, %v3082
      %vm3211 = vcmp.eq.s32.totalorder %v3159, %v3083
      %vm3212 = vcmp.eq.s32.totalorder %v3162, %v3084
      %vm3213 = vcmp.eq.s32.totalorder %v3165, %v3085
      %vm3214 = vcmp.eq.s32.totalorder %v3168, %v3086
      %vm3215 = vcmp.eq.s32.totalorder %v3171, %v3087
      %vm3216 = vcmp.eq.s32.totalorder %v3174, %v3088
      %vm3217 = vcmp.eq.s32.totalorder %v3177, %v3089
      %vm3218 = vcmp.eq.s32.totalorder %v3180, %v3090
      %vm3219 = vcmp.eq.s32.totalorder %v3183, %v3091
      %vm3220 = vcmp.eq.s32.totalorder %v3186, %v3092
      %vm3221 = vcmp.eq.s32.totalorder %v3189, %v3093
      %v3222 = vsel %vm3190, 1, 0
      %v3223 = vsel %vm3191, 1, 0
      %v3224 = vsel %vm3192, 1, 0
      %v3225 = vsel %vm3193, 1, 0
      %v3226 = vsel %vm3194, 1, 0
      %v3227 = vsel %vm3195, 1, 0
      %v3228 = vsel %vm3196, 1, 0
      %v3229 = vsel %vm3197, 1, 0
      %v3230 = vsel %vm3198, 1, 0
      %v3231 = vsel %vm3199, 1, 0
      %v3232 = vsel %vm3200, 1, 0
      %v3233 = vsel %vm3201, 1, 0
      %v3234 = vsel %vm3202, 1, 0
      %v3235 = vsel %vm3203, 1, 0
      %v3236 = vsel %vm3204, 1, 0
      %v3237 = vsel %vm3205, 1, 0
      %v3238 = vsel %vm3206, 1, 0
      %v3239 = vsel %vm3207, 1, 0
      %v3240 = vsel %vm3208, 1, 0
      %v3241 = vsel %vm3209, 1, 0
      %v3242 = vsel %vm3210, 1, 0
      %v3243 = vsel %vm3211, 1, 0
      %v3244 = vsel %vm3212, 1, 0
      %v3245 = vsel %vm3213, 1, 0
      %v3246 = vsel %vm3214, 1, 0
      %v3247 = vsel %vm3215, 1, 0
      %v3248 = vsel %vm3216, 1, 0
      %v3249 = vsel %vm3217, 1, 0
      %v3250 = vsel %vm3218, 1, 0
      %v3251 = vsel %vm3219, 1, 0
      %v3252 = vsel %vm3220, 1, 0
      %v3253 = vsel %vm3221, 1, 0
      %v3254 = vcvt.s32.f32 %v3222
      %v3255 = vcvt.s32.f32 %v3223
      %v3256 = vcvt.s32.f32 %v3224
      %v3257 = vcvt.s32.f32 %v3225
      %v3258 = vcvt.s32.f32 %v3226
      %v3259 = vcvt.s32.f32 %v3227
      %v3260 = vcvt.s32.f32 %v3228
      %v3261 = vcvt.s32.f32 %v3229
      %v3262 = vcvt.s32.f32 %v3230
      %v3263 = vcvt.s32.f32 %v3231
      %v3264 = vcvt.s32.f32 %v3232
      %v3265 = vcvt.s32.f32 %v3233
      %v3266 = vcvt.s32.f32 %v3234
      %v3267 = vcvt.s32.f32 %v3235
      %v3268 = vcvt.s32.f32 %v3236
      %v3269 = vcvt.s32.f32 %v3237
      %v3270 = vcvt.s32.f32 %v3238
      %v3271 = vcvt.s32.f32 %v3239
      %v3272 = vcvt.s32.f32 %v3240
      %v3273 = vcvt.s32.f32 %v3241
      %v3274 = vcvt.s32.f32 %v3242
      %v3275 = vcvt.s32.f32 %v3243
      %v3276 = vcvt.s32.f32 %v3244
      %v3277 = vcvt.s32.f32 %v3245
      %v3278 = vcvt.s32.f32 %v3246
      %v3279 = vcvt.s32.f32 %v3247
      %v3280 = vcvt.s32.f32 %v3248
      %v3281 = vcvt.s32.f32 %v3249
      %v3282 = vcvt.s32.f32 %v3250
      %v3283 = vcvt.s32.f32 %v3251
      %v3284 = vcvt.s32.f32 %v3252
      %v3285 = vcvt.s32.f32 %v3253
      %v3286 = vpack.c.bf16 %v3255, %v3254
      %v3287 = vpack.c.bf16 %v3257, %v3256
      %v3288 = vpack.c.bf16 %v3259, %v3258
      %v3289 = vpack.c.bf16 %v3261, %v3260
      %v3290 = vpack.c.bf16 %v3263, %v3262
      %v3291 = vpack.c.bf16 %v3265, %v3264
      %v3292 = vpack.c.bf16 %v3267, %v3266
      %v3293 = vpack.c.bf16 %v3269, %v3268
      %v3294 = vpack.c.bf16 %v3271, %v3270
      %v3295 = vpack.c.bf16 %v3273, %v3272
      %v3296 = vpack.c.bf16 %v3275, %v3274
      %v3297 = vpack.c.bf16 %v3277, %v3276
      %v3298 = vpack.c.bf16 %v3279, %v3278
      %v3299 = vpack.c.bf16 %v3281, %v3280
      %v3300 = vpack.c.bf16 %v3283, %v3282
      %v3301 = vpack.c.bf16 %v3285, %v3284
      %v3302 = vpack.c.bf16 %v2967, %v2966
      %v3303 = vpack.c.bf16 %v2999, %v2998
      %v3304 = vpack.c.bf16 %v2969, %v2968
      %v3305 = vpack.c.bf16 %v3001, %v3000
      %v3306 = vpack.c.bf16 %v2971, %v2970
      %v3307 = vpack.c.bf16 %v3003, %v3002
      %v3308 = vpack.c.bf16 %v2973, %v2972
      %v3309 = vpack.c.bf16 %v3005, %v3004
      %v3310 = vpack.c.bf16 %v2975, %v2974
      %v3311 = vpack.c.bf16 %v3007, %v3006
      %v3312 = vpack.c.bf16 %v2977, %v2976
      %v3313 = vpack.c.bf16 %v3009, %v3008
      %v3314 = vpack.c.bf16 %v2979, %v2978
      %v3315 = vpack.c.bf16 %v3011, %v3010
      %v3316 = vpack.c.bf16 %v2981, %v2980
      %v3317 = vpack.c.bf16 %v3013, %v3012
      %v3318 = vpack.c.bf16 %v2983, %v2982
      %v3319 = vpack.c.bf16 %v3015, %v3014
      %v3320 = vpack.c.bf16 %v2985, %v2984
      %v3321 = vpack.c.bf16 %v3017, %v3016
      %v3322 = vpack.c.bf16 %v2987, %v2986
      %v3323 = vpack.c.bf16 %v3019, %v3018
      %v3324 = vpack.c.bf16 %v2989, %v2988
      %v3325 = vpack.c.bf16 %v3021, %v3020
      %v3326 = vpack.c.bf16 %v2991, %v2990
      %v3327 = vpack.c.bf16 %v3023, %v3022
      %v3328 = vpack.c.bf16 %v2993, %v2992
      %v3329 = vpack.c.bf16 %v3025, %v3024
      %v3330 = vpack.c.bf16 %v2995, %v2994
      %v3331 = vpack.c.bf16 %v3027, %v3026
      %v3332 = vpack.c.bf16 %v2997, %v2996
      %v3333 = vpack.c.bf16 %v3029, %v3028
      %3334 = vxpose.xlu0.c.b16.start [1/8] %v3286, 128
      %3335 = vxpose.xlu0.c.b16.cont [2/8] %v3287, 128
      %3336 = vxpose.xlu0.c.b16.cont [3/8] %v3288, 128
      %3337 = vxpose.xlu0.c.b16.cont [4/8] %v3289, 128
      %3338 = vxpose.xlu0.c.b16.cont [5/8] %v3290, 128
      %3339 = vxpose.xlu0.c.b16.cont [6/8] %v3291, 128
      %3340 = vxpose.xlu0.c.b16.cont [7/8] %v3292, 128
      %3341 = vxpose.xlu0.c.b16.end [8/8] %v3293, 128
      %v3342 = vpop.trf.xlu0
      %v3343 = vpop.trf.xlu0
      %v3344 = vpop.trf.xlu0
      %v3345 = vpop.trf.xlu0
      %v3346 = vpop.trf.xlu0
      %v3347 = vpop.trf.xlu0
      %v3348 = vpop.trf.xlu0
      %v3349 = vpop.trf.xlu0
      %3350 = vxpose.xlu0.c.b16.start [1/8] %v3294, 128
      %3351 = vxpose.xlu0.c.b16.cont [2/8] %v3295, 128
      %3352 = vxpose.xlu0.c.b16.cont [3/8] %v3296, 128
      %3353 = vxpose.xlu0.c.b16.cont [4/8] %v3297, 128
      %3354 = vxpose.xlu0.c.b16.cont [5/8] %v3298, 128
      %3355 = vxpose.xlu0.c.b16.cont [6/8] %v3299, 128
      %3356 = vxpose.xlu0.c.b16.cont [7/8] %v3300, 128
      %3357 = vxpose.xlu0.c.b16.end [8/8] %v3301, 128
      %v3358 = vpop.trf.xlu0
      %v3359 = vpop.trf.xlu0
      %v3360 = vpop.trf.xlu0
      %v3361 = vpop.trf.xlu0
      %v3362 = vpop.trf.xlu0
      %v3363 = vpop.trf.xlu0
      %v3364 = vpop.trf.xlu0
      %v3365 = vpop.trf.xlu0
      %3366 = vmatprep.subr.bf16.mxu0 %v3317
      %3367 = vmatpush1.bf16.msra.mxu0 %v3316
      %3368 = vmatprep.subr.bf16.mxu0 %v3315
      %3369 = vmatpush1.bf16.msra.mxu0 %v3314
      %3370 = vmatprep.subr.bf16.mxu0 %v3313
      %3371 = vmatpush1.bf16.msra.mxu0 %v3312
      %3372 = vmatprep.subr.bf16.mxu0 %v3311
      %3373 = vmatpush1.bf16.msra.mxu0 %v3310
      %3374 = vmatprep.subr.bf16.mxu0 %v3309
      %3375 = vmatpush1.bf16.msra.mxu0 %v3308
      %3376 = vmatprep.subr.bf16.mxu0 %v3307
      %3377 = vmatpush1.bf16.msra.mxu0 %v3306
      %3378 = vmatprep.subr.bf16.mxu0 %v3305
      %3379 = vmatpush1.bf16.msra.mxu0 %v3304
      %3380 = vmatprep.subr.bf16.mxu0 %v3303
      %3381 = vmatpush1.bf16.msra.mxu0 %v3302
      %3382 = vmatprep.subr.bf16.mxu0 %v3333
      %3383 = vmatpush2.bf16.msra.mxu0 %v3332
      %3384 = vmatprep.subr.bf16.mxu0 %v3331
      %3385 = vmatpush2.bf16.msra.mxu0 %v3330
      %3386 = vmatprep.subr.bf16.mxu0 %v3329
      %3387 = vmatpush2.bf16.msra.mxu0 %v3328
      %3388 = vmatprep.subr.bf16.mxu0 %v3327
      %3389 = vmatpush2.bf16.msra.mxu0 %v3326
      %3390 = vmatprep.subr.bf16.mxu0 %v3325
      %3391 = vmatpush2.bf16.msra.mxu0 %v3324
      %3392 = vmatprep.subr.bf16.mxu0 %v3323
      %3393 = vmatpush2.bf16.msra.mxu0 %v3322
      %3394 = vmatprep.subr.bf16.mxu0 %v3321
      %3395 = vmatpush2.bf16.msra.mxu0 %v3320
      %3396 = vmatprep.subr.bf16.mxu0 %v3319
      %3397 = vmatpush2.bf16.msra.mxu0 %v3318
      %3398 = vmatprep.mubr.bf16.mxu0 %v3358
      %3399 = vmatmul.mubr.bf16.gmra.mxu0 %v3342
      %v3400 = vpop.f32.mrf.mxu0
      %v3401 = vadd.f32 0.0, %v3400
      %v3402 = vpop.f32.mrf.mxu0
      %v3403 = vadd.f32 0.0, %v3402
      %v3404 = vpop.f32.mrf.mxu0
      %v3405 = vadd.f32 0.0, %v3404
      %v3406 = vpop.f32.mrf.mxu0
      %v3407 = vadd.f32 0.0, %v3406
      %3408 = vdwg.mxu0
      %v3409 = vld [vmem:[%s486] sm:$0xff]
      %v3410 = vld [vmem:[%s486 + $0x8] sm:$0xff]
      %v3411 = vld [vmem:[%s486 + $0x10] sm:$0xff]
      %v3412 = vld [vmem:[%s486 + $0x18] sm:$0xff]
      %v3413 = vadd.f32 %v3409, %v3401
      %v3414 = vadd.f32 %v3410, %v3403
      %v3415 = vadd.f32 %v3411, %v3405
      %v3416 = vadd.f32 %v3412, %v3407
      %3417 = vst [vmem:[%s486] sm:$0xff] %v3413
      %3418 = vst [vmem:[%s486 + $0x8] sm:$0xff] %v3414
      %3419 = vst [vmem:[%s486 + $0x10] sm:$0xff] %v3415
      %3420 = vst [vmem:[%s486 + $0x18] sm:$0xff] %v3416
      %p3421 = scmp.lt.s32.totalorder %s22, 1
      %s3422 = scalar_select %p3421, %s22, 1
      %s3423 = smul.addr %s3422, 4
      %s3424 = smul.addr %s3423, 8
      %s3425 = scalar_lea.vmem %s7, %s3424
      // Predicated region
      $region53: #{_linear_attn_first_impl.1} parent=47 // pred_check
        %p3426 = pneg %p249
      $region54: #{_linear_attn_first_impl.1} parent=47 // pred_check_branch
        %3428 = sbr.rel (%p3426) target = $region56
      $region55: #{_linear_attn_first_impl.1} parent=47 // pred_region
        _
      $region56: #{_linear_attn_first_impl.1} parent=47 // pred_fallthru
        _
    $region48: #{_linear_attn_first_impl.1} parent=5 // pred_fallthru
      _
    %p3429 = scmp.le.s32.totalorder 2, %s13
    // Predicated region
    $region57: #{_linear_attn_first_impl.1} parent=5 // pred_check
      %p3430 = pneg %p3429
    $region58: #{_linear_attn_first_impl.1} parent=5 // pred_check_branch
      %3432 = sbr.rel (%p3430) target = $region60
    $region59: #{_linear_attn_first_impl.1} parent=5 // pred_region
      %s3433 = ssub.s32 %s13, 2
      // Predicated region
      $region61: #{_linear_attn_first_impl.1} parent=59 // pred_check
        %p3434 = pneg %p255
      $region62: #{_linear_attn_first_impl.1} parent=59 // pred_check_branch
        %3436 = sbr.rel (%p3434) target = $region64
      $region63: #{_linear_attn_first_impl.1} parent=59 // pred_region
        %p3437 = scmp.lt.s32.totalorder %s24, 1
        %s3438 = scalar_select %p3437, %s24, 1
        %s3439 = smul.addr %s3438, 4
        %s3440 = smul.addr %s3439, 8
        %s3441 = scalar_lea.vmem %s7, %s3440
      $region64: #{_linear_attn_first_impl.1} parent=59 // pred_fallthru
        _
    $region60: #{_linear_attn_first_impl.1} parent=5 // pred_fallthru
      _
  $region6: #{_linear_attn_first_impl.1} parent=0 // loop_footer
    %s17 = sadd.s32 1, %s13
  $region7: #{_linear_attn_first_impl.1} parent=0 // loop_footer_branch
    %12 = sbr.rel target = $region3
  $region8: #{_linear_attn_first_impl.1} parent=0 // loop_exit
    _

</llo_original>
